<compile_context>
chip_gen: v7x
topology: tpu7x:2x2x1
jax: 0.10.0
libtpu: 0.0.40
codegen_flags: <defaults>
</compile_context>

<pallas_src>
import jax
import jax.numpy as jnp
from jax import lax
from jax.experimental import pallas as pl
from jax.experimental.pallas import tpu as pltpu

LANE = 128
SUBLANE = 8


def _round_up(n, m):
    return (n + m - 1) // m * m


def mlp_kernel(x_ref, w1_ref, b1_ref, w2_ref, b2_ref, w3_ref, b3_ref, o_ref):
    # Whole forward fused per batch tile: three MXU matmuls + VPU bias/ReLU,
    # no HBM round trips between layers.  Precision pinned to full f32.
    x = x_ref[...]
    h1 = jnp.dot(x, w1_ref[...],
                 preferred_element_type=jnp.float32,
                 precision=lax.Precision.HIGHEST) + b1_ref[...]
    h1 = jnp.maximum(h1, 0.0)
    h2 = jnp.dot(h1, w2_ref[...],
                 preferred_element_type=jnp.float32,
                 precision=lax.Precision.HIGHEST) + b2_ref[...]
    h2 = jnp.maximum(h2, 0.0)
    logits = jnp.dot(h2, w3_ref[...],
                     preferred_element_type=jnp.float32,
                     precision=lax.Precision.HIGHEST) + b3_ref[...]
    o_ref[...] = logits.astype(o_ref.dtype)


def pytorch_mlp_forward(x_nchw, params):
    """Forward pass matching PyTorchMLP.forward.

    x_nchw: (B, C, H, W) float32 (any trailing shape; flattened from dim 1)
    params: dict with w1 (F,50), b1 (1,50), w2 (50,25), b2 (1,25),
            w3 (25,num_classes), b3 (1,num_classes)   [W stored as (in, out)]
    returns logits: (B, num_classes) float32
    """
    B = x_nchw.shape[0]
    x = x_nchw.reshape(B, -1).astype(jnp.float32)  # torch.flatten(x, start_dim=1)
    F = x.shape[1]

    w1, b1 = params["w1"], params["b1"]
    w2, b2 = params["w2"], params["b2"]
    w3, b3 = params["w3"], params["b3"]
    h1_dim, h2_dim = w1.shape[1], w2.shape[1]
    num_classes = w3.shape[1]

    # Zero-pad feature dims to lane width (semantics preserving: ReLU(0)=0 and
    # zero weight rows/cols contribute nothing).  128 is the minimum lane
    # width; do NOT pad to 256 (would only add zero-FLOPs).
    H1 = _round_up(h1_dim, LANE)        # 50  -> 128
    H2 = _round_up(h2_dim, LANE)        # 25  -> 128
    NC = _round_up(num_classes, LANE)   # e.g. 10 -> 128

    w1p = jnp.pad(w1, ((0, 0), (0, H1 - h1_dim)))
    b1p = jnp.pad(b1, ((0, 0), (0, H1 - h1_dim)))
    w2p = jnp.pad(w2, ((0, H1 - h1_dim), (0, H2 - h2_dim)))
    b2p = jnp.pad(b2, ((0, 0), (0, H2 - h2_dim)))
    w3p = jnp.pad(w3, ((0, H2 - h2_dim), (0, NC - num_classes)))
    b3p = jnp.pad(b3, ((0, 0), (0, NC - num_classes)))

    # Pad the batch only to the 8-sublane granule (usually a no-op).  The
    # ragged tail w.r.t. the batch tile is handled by a cdiv grid with a
    # clipped final block -- NOT by a full jnp.pad copy of x.
    Bp = _round_up(B, SUBLANE)
    if Bp != B:
        x = jnp.pad(x, ((0, Bp - B), (0, 0)))

    # Batch tile selection:
    #   * target up to 2048 rows,
    #   * keep the double-buffered x tile (2*TB*F*4 B) under ~24 MiB so the
    #     whole working set fits v7x's 64 MiB VMEM with headroom,
    #   * cap so the grid has >=2 steps whenever possible, so both v7x
    #     TensorCores get work under dimension_semantics=("parallel",).
    tb_vmem_cap = max(SUBLANE, ((24 << 20) // (2 * 4 * F)) // SUBLANE * SUBLANE)
    TB = min(2048, tb_vmem_cap, Bp)
    if Bp > SUBLANE:
        TB = min(TB, _round_up(pl.cdiv(Bp, 2), SUBLANE))
    TB = max(TB, SUBLANE)

    grid = (pl.cdiv(Bp, TB),)

    # Cost estimate from the padded shapes actually moved / computed.
    flops = 2 * Bp * (F * H1 + H1 * H2 + H2 * NC)
    bytes_accessed = 4 * (
        Bp * F
        + F * H1 + H1
        + H1 * H2 + H2
        + H2 * NC + NC
        + Bp * NC
    )
    cost = pl.CostEstimate(flops=flops, transcendentals=0, bytes_accessed=bytes_accessed)

    # Explicit scoped-VMEM budget sized from TB (double-buffered x / out /
    # intermediates + weights), clamped to [32 MiB, 48 MiB] so it is valid on
    # v5e (16 MiB default scoped), v6e and v7x (64 MiB physical).
    weight_bytes = 4 * (F * H1 + H1 + H1 * H2 + H2 + H2 * NC + NC)
    vmem_need = 4 * (2 * TB * F + 2 * TB * NC + 2 * TB * max(H1, H2)) + 2 * weight_bytes
    vmem_limit = int(min(max(vmem_need + (8 << 20), 32 << 20), 48 << 20))

    out = pl.pallas_call(
        mlp_kernel,
        out_shape=jax.ShapeDtypeStruct((Bp, NC), jnp.float32),
        grid=grid,
        in_specs=[
            pl.BlockSpec((TB, F), lambda i: (i, 0)),   # x tile: pipelined over batch
            pl.BlockSpec((F, H1), lambda i: (0, 0)),   # weights/biases: VMEM-resident
            pl.BlockSpec((1, H1), lambda i: (0, 0)),
            pl.BlockSpec((H1, H2), lambda i: (0, 0)),
            pl.BlockSpec((1, H2), lambda i: (0, 0)),
            pl.BlockSpec((H2, NC), lambda i: (0, 0)),
            pl.BlockSpec((1, NC), lambda i: (0, 0)),
        ],
        out_specs=pl.BlockSpec((TB, NC), lambda i: (i, 0)),
        compiler_params=pltpu.CompilerParams(
            dimension_semantics=("parallel",),  # shard batch tiles across TCs on v7x
            vmem_limit_bytes=vmem_limit,
        ),
        cost_estimate=cost,
    )(x, w1p, b1p, w2p, b2p, w3p, b3p)

    # Strip batch and class padding.
    return out[:B, :num_classes]


def init_params(key, num_features, num_classes):
    """Deterministic init mimicking torch.nn.Linear default (U[-1/sqrt(in), 1/sqrt(in)])."""
    def linear(k, fan_in, fan_out):
        kw, kb = jax.random.split(k)
        bound = 1.0 / jnp.sqrt(jnp.float32(fan_in))
        w = jax.random.uniform(kw, (fan_in, fan_out), jnp.float32, -bound, bound)
        b = jax.random.uniform(kb, (1, fan_out), jnp.float32, -bound, bound)
        return w, b

    k1, k2, k3 = jax.random.split(key, 3)
    w1, b1 = linear(k1, num_features, 50)
    w2, b2 = linear(k2, 50, 25)
    w3, b3 = linear(k3, 25, num_classes)
    return {"w1": w1, "b1": b1, "w2": w2, "b2": b2, "w3": w3, "b3": b3}


if __name__ == "__main__":
    key = jax.random.PRNGKey(0)
    kx, kp = jax.random.split(key)

    B, C, H, W = 2, 4, 16, 16
    num_features = C * H * W  # 1024
    num_classes = 10

    x = jax.random.normal(kx, (B, C, H, W), jnp.float32)
    params = init_params(kp, num_features, num_classes)

    logits = pytorch_mlp_forward(x, params)
    logits = jax.block_until_ready(logits)

    # Reference check in plain JAX (same math, full-f32 precision, outside the kernel).
    xf = x.reshape(B, -1)
    h1 = jnp.maximum(
        jnp.dot(xf, params["w1"], precision=lax.Precision.HIGHEST) + params["b1"], 0.0)
    h2 = jnp.maximum(
        jnp.dot(h1, params["w2"], precision=lax.Precision.HIGHEST) + params["b2"], 0.0)
    ref = jnp.dot(h2, params["w3"], precision=lax.Precision.HIGHEST) + params["b3"]

    assert logits.shape == (B, num_classes)
    assert jnp.allclose(logits, ref, atol=1e-4, rtol=1e-4)

    print("KERNEL_OK")
</pallas_src>

<mosaic_0001>
module attributes {stable_mosaic.version = 11 : i64} {
  func.func @mlp_kernel(%arg0: i32, %arg1: memref<8x1024xf32, #tpu.memory_space<vmem>>, %arg2: memref<1024x128xf32, #tpu.memory_space<vmem>>, %arg3: memref<1x128xf32, #tpu.memory_space<vmem>>, %arg4: memref<128x128xf32, #tpu.memory_space<vmem>>, %arg5: memref<1x128xf32, #tpu.memory_space<vmem>>, %arg6: memref<128x128xf32, #tpu.memory_space<vmem>>, %arg7: memref<1x128xf32, #tpu.memory_space<vmem>>, %arg8: memref<8x128xf32, #tpu.memory_space<vmem>>) attributes {dimension_semantics = [#tpu.dimension_semantics<parallel>], iteration_bounds = array<i64: 1>, scalar_prefetch = 0 : i64, scratch_operands = 0 : i64, tpu.core_type = #tpu.core_type<tc>, window_params = [{transform_indices = @transform_0, window_bounds = array<i64: 8, 1024>}, {pipeline_mode = #tpu.pipeline_mode<synchronous>, transform_indices = @transform_1, window_bounds = array<i64: 1024, 128>}, {pipeline_mode = #tpu.pipeline_mode<synchronous>, transform_indices = @transform_2, window_bounds = array<i64: 1, 128>}, {pipeline_mode = #tpu.pipeline_mode<synchronous>, transform_indices = @transform_3, window_bounds = array<i64: 128, 128>}, {pipeline_mode = #tpu.pipeline_mode<synchronous>, transform_indices = @transform_4, window_bounds = array<i64: 1, 128>}, {pipeline_mode = #tpu.pipeline_mode<synchronous>, transform_indices = @transform_5, window_bounds = array<i64: 128, 128>}, {pipeline_mode = #tpu.pipeline_mode<synchronous>, transform_indices = @transform_6, window_bounds = array<i64: 1, 128>}, {transform_indices = @transform_7, window_bounds = array<i64: 8, 128>}]} {
    %c0 = arith.constant 0 : index
    %c0_0 = arith.constant 0 : index
    %0 = vector.load %arg1[%c0, %c0_0] : memref<8x1024xf32, #tpu.memory_space<vmem>>, vector<8x1024xf32>
    %c0_1 = arith.constant 0 : index
    %c0_2 = arith.constant 0 : index
    %1 = vector.load %arg2[%c0_1, %c0_2] : memref<1024x128xf32, #tpu.memory_space<vmem>>, vector<1024x128xf32>
    %cst = arith.constant dense<0.000000e+00> : vector<8x128xf32>
    %2 = tpu.matmul %0, %1, %cst {dimension_numbers = #tpu.dot_dimension_numbers<[1], [0], [0], [1], [0, 0, 1, 1], [], []>, precision = #tpu.contract_precision<fp32>} : vector<8x1024xf32>, vector<1024x128xf32>, vector<8x128xf32> -> vector<8x128xf32>
    %c0_3 = arith.constant 0 : index
    %c0_4 = arith.constant 0 : index
    %3 = vector.load %arg3[%c0_3, %c0_4] : memref<1x128xf32, #tpu.memory_space<vmem>>, vector<1x128xf32>
    %4 = vector.broadcast %3 : vector<1x128xf32> to vector<8x128xf32>
    %5 = arith.addf %2, %4 : vector<8x128xf32>
    %cst_5 = arith.constant 0.000000e+00 : f32
    %6 = vector.broadcast %cst_5 : f32 to vector<8x128xf32>
    %7 = arith.maximumf %5, %6 : vector<8x128xf32>
    %c0_6 = arith.constant 0 : index
    %c0_7 = arith.constant 0 : index
    %8 = vector.load %arg4[%c0_6, %c0_7] : memref<128x128xf32, #tpu.memory_space<vmem>>, vector<128x128xf32>
    %cst_8 = arith.constant dense<0.000000e+00> : vector<8x128xf32>
    %9 = tpu.matmul %7, %8, %cst_8 {dimension_numbers = #tpu.dot_dimension_numbers<[1], [0], [0], [1], [0, 0, 1, 1], [], []>, precision = #tpu.contract_precision<fp32>} : vector<8x128xf32>, vector<128x128xf32>, vector<8x128xf32> -> vector<8x128xf32>
    %c0_9 = arith.constant 0 : index
    %c0_10 = arith.constant 0 : index
    %10 = vector.load %arg5[%c0_9, %c0_10] : memref<1x128xf32, #tpu.memory_space<vmem>>, vector<1x128xf32>
    %11 = vector.broadcast %10 : vector<1x128xf32> to vector<8x128xf32>
    %12 = arith.addf %9, %11 : vector<8x128xf32>
    %cst_11 = arith.constant 0.000000e+00 : f32
    %13 = vector.broadcast %cst_11 : f32 to vector<8x128xf32>
    %14 = arith.maximumf %12, %13 : vector<8x128xf32>
    %c0_12 = arith.constant 0 : index
    %c0_13 = arith.constant 0 : index
    %15 = vector.load %arg6[%c0_12, %c0_13] : memref<128x128xf32, #tpu.memory_space<vmem>>, vector<128x128xf32>
    %cst_14 = arith.constant dense<0.000000e+00> : vector<8x128xf32>
    %16 = tpu.matmul %14, %15, %cst_14 {dimension_numbers = #tpu.dot_dimension_numbers<[1], [0], [0], [1], [0, 0, 1, 1], [], []>, precision = #tpu.contract_precision<fp32>} : vector<8x128xf32>, vector<128x128xf32>, vector<8x128xf32> -> vector<8x128xf32>
    %c0_15 = arith.constant 0 : index
    %c0_16 = arith.constant 0 : index
    %17 = vector.load %arg7[%c0_15, %c0_16] : memref<1x128xf32, #tpu.memory_space<vmem>>, vector<1x128xf32>
    %18 = vector.broadcast %17 : vector<1x128xf32> to vector<8x128xf32>
    %19 = arith.addf %16, %18 : vector<8x128xf32>
    %c0_17 = arith.constant 0 : index
    %c0_18 = arith.constant 0 : index
    %20 = vector.load %arg8[%c0_17, %c0_18] : memref<8x128xf32, #tpu.memory_space<vmem>>, vector<8x128xf32>
    tpu.vector_store %arg8[%c0_17, %c0_18], %19 {strides = array<i32>} : memref<8x128xf32, #tpu.memory_space<vmem>>, vector<8x128xf32>,
    return
  }
  func.func @transform_0(%arg0: i32) -> (i32, i32) {
    %c0_i32 = arith.constant 0 : i32
    %c0_i32_0 = arith.constant 0 : i32
    return %arg0, %c0_i32 : i32, i32
  }
  func.func @transform_1(%arg0: i32) -> (i32, i32) {
    %c0_i32 = arith.constant 0 : i32
    %c0_i32_0 = arith.constant 0 : i32
    %c0_i32_1 = arith.constant 0 : i32
    return %c0_i32, %c0_i32_0 : i32, i32
  }
  func.func @transform_2(%arg0: i32) -> (i32, i32) {
    %c0_i32 = arith.constant 0 : i32
    %c0_i32_0 = arith.constant 0 : i32
    %c0_i32_1 = arith.constant 0 : i32
    return %c0_i32, %c0_i32_0 : i32, i32
  }
  func.func @transform_3(%arg0: i32) -> (i32, i32) {
    %c0_i32 = arith.constant 0 : i32
    %c0_i32_0 = arith.constant 0 : i32
    %c0_i32_1 = arith.constant 0 : i32
    return %c0_i32, %c0_i32_0 : i32, i32
  }
  func.func @transform_4(%arg0: i32) -> (i32, i32) {
    %c0_i32 = arith.constant 0 : i32
    %c0_i32_0 = arith.constant 0 : i32
    %c0_i32_1 = arith.constant 0 : i32
    return %c0_i32, %c0_i32_0 : i32, i32
  }
  func.func @transform_5(%arg0: i32) -> (i32, i32) {
    %c0_i32 = arith.constant 0 : i32
    %c0_i32_0 = arith.constant 0 : i32
    %c0_i32_1 = arith.constant 0 : i32
    return %c0_i32, %c0_i32_0 : i32, i32
  }
  func.func @transform_6(%arg0: i32) -> (i32, i32) {
    %c0_i32 = arith.constant 0 : i32
    %c0_i32_0 = arith.constant 0 : i32
    %c0_i32_1 = arith.constant 0 : i32
    return %c0_i32, %c0_i32_0 : i32, i32
  }
  func.func @transform_7(%arg0: i32) -> (i32, i32) {
    %c0_i32 = arith.constant 0 : i32
    %c0_i32_0 = arith.constant 0 : i32
    return %arg0, %c0_i32 : i32, i32
  }
}

</mosaic_0001>

<llo_original>
// kernel: tpu_custom_call.1
$region0: #{tpu_custom_call.1}
  #allocation0 [shape = 'u32[]', space=smem, size = 0x4, offset = 0x4, fixed_abs, tag = 'smem constant byte address 0x4 - core index']
  #allocation1 [shape = 'u32[144,128]{1,0:T(1,128)}', space=vmem, size = 0x12000, scoped, tag = 'internal scratch']
  %s0 = inlined_call_operand.hbm [shape: f32[8,1024], index: 0, kind: input, shape index: {}]
  %s1 = inlined_call_operand.hbm [shape: f32[1024,128], index: 1, kind: input, shape index: {}]
  %s2 = inlined_call_operand.vmem [shape: f32[1,128], index: 2, kind: input, shape index: {}]
  %s3 = inlined_call_operand.hbm [shape: f32[128,128], index: 3, kind: input, shape index: {}]
  %s4 = inlined_call_operand.vmem [shape: f32[1,128], index: 4, kind: input, shape index: {}]
  %s5 = inlined_call_operand.hbm [shape: f32[128,128], index: 5, kind: input, shape index: {}]
  %s6 = inlined_call_operand.vmem [shape: f32[1,128], index: 6, kind: input, shape index: {}]
  %s7 = inlined_call_operand.hbm [shape: f32[8,128], index: 7, kind: output, shape index: {}]
  %s8 = sld [smem:[#allocation0]]
  $region54: #{tpu_custom_call.1} parent=0
    _
  %s10 = ssub.s32 1, %s8
  %s11 = scalar_select 0, %s10, %s8
  $region1: #{tpu_custom_call.1} parent=0
    #allocation2 [shape = 'u8[32768]{0}', space=vmem, size = 0x8000, scoped, tag = 'input window, operand 0, single buffered']
    #allocation3 [shape = 's32[1]{0}', space=sflag, size = 0x4, scoped, tag = 'scoped memory for tpu_custom_call.1']
    #allocation4 [shape = 's32[1]{0}', space=sflag, size = 0x4, scoped, tag = 'scoped memory for tpu_custom_call.1']
    #allocation5 [shape = 'u8[524288]{0}', space=vmem, size = 0x80000, scoped, tag = 'input window, operand 1, single buffered']
    #allocation6 [shape = 's32[1]{0}', space=sflag, size = 0x4, scoped, tag = 'scoped memory for tpu_custom_call.1']
    #allocation7 [shape = 'u8[65536]{0}', space=vmem, size = 0x10000, scoped, tag = 'input window, operand 3, single buffered']
    #allocation8 [shape = 'u8[65536]{0}', space=vmem, size = 0x10000, scoped, tag = 'input window, operand 5, single buffered']
    #allocation9 [shape = 's32[1]{0}', space=sflag, size = 0x4, scoped, tag = 'scoped memory for tpu_custom_call.1']
    #allocation10 [shape = 'u8[4096]{0}', space=vmem, size = 0x1000, scoped, tag = 'output window, operand 0, single buffered']
    %12 = vsyncpa [#allocation3], 0
    %13 = vsyncpa [#allocation6], 0
    %14 = vsyncpa [#allocation9], 0
    %15 = vsyncpa [#allocation4], 0
    // Predicated region
    $region2: #{tpu_custom_call.1} parent=1 // pred_check
      _
    $region3: #{tpu_custom_call.1} parent=1 // pred_check_branch
      %17 = sbr.rel (0) target = $region5
    $region4: #{tpu_custom_call.1} parent=1 // pred_region
      %s19 = ssub.s32 1024, 1024
      %20 = vsyncadd [#allocation3], %s19
      %s22 = sshll.u32 [#allocation2], 4
      %s23 = int_to_ptr.vmem [resolvable:$true] %s22
      %25 = dma.hbm_to_vmem [thread:$0]  %s0, 1024, %s23, [#allocation3]
    $region5: #{tpu_custom_call.1} parent=1 // pred_fallthru
      _
    // Predicated region
    $region6: #{tpu_custom_call.1} parent=1 // pred_check
      _
    $region7: #{tpu_custom_call.1} parent=1 // pred_check_branch
      %27 = sbr.rel (0) target = $region9
    $region8: #{tpu_custom_call.1} parent=1 // pred_region
      %s29 = ssub.s32 16384, 16384
      %30 = vsyncadd [#allocation6], %s29
      %s31 = sshll.u32 [#allocation5], 4
      %s32 = int_to_ptr.vmem [resolvable:$true] %s31
      %37 = dma.hbm_to_vmem [thread:$0]  %s1, 16384, %s32, [#allocation6], 128, 128, 8
    $region9: #{tpu_custom_call.1} parent=1 // pred_fallthru
      _
    // Predicated region
    $region10: #{tpu_custom_call.1} parent=1 // pred_check
      _
    $region11: #{tpu_custom_call.1} parent=1 // pred_check_branch
      %39 = sbr.rel (0) target = $region13
    $region12: #{tpu_custom_call.1} parent=1 // pred_region
      _
    $region13: #{tpu_custom_call.1} parent=1 // pred_fallthru
      _
    // Predicated region
    $region14: #{tpu_custom_call.1} parent=1 // pred_check
      _
    $region15: #{tpu_custom_call.1} parent=1 // pred_check_branch
      %41 = sbr.rel (0) target = $region17
    $region16: #{tpu_custom_call.1} parent=1 // pred_region
      %s43 = ssub.s32 2048, 2048
      %44 = vsyncadd [#allocation6], %s43
      %s45 = sshll.u32 [#allocation7], 4
      %s46 = int_to_ptr.vmem [resolvable:$true] %s45
      %51 = dma.hbm_to_vmem [thread:$0]  %s3, 2048, %s46, [#allocation6], 128, 128, 8
    $region17: #{tpu_custom_call.1} parent=1 // pred_fallthru
      _
    // Predicated region
    $region18: #{tpu_custom_call.1} parent=1 // pred_check
      _
    $region19: #{tpu_custom_call.1} parent=1 // pred_check_branch
      %53 = sbr.rel (0) target = $region21
    $region20: #{tpu_custom_call.1} parent=1 // pred_region
      _
    $region21: #{tpu_custom_call.1} parent=1 // pred_fallthru
      _
    // Predicated region
    $region22: #{tpu_custom_call.1} parent=1 // pred_check
      _
    $region23: #{tpu_custom_call.1} parent=1 // pred_check_branch
      %55 = sbr.rel (0) target = $region25
    $region24: #{tpu_custom_call.1} parent=1 // pred_region
      %s57 = ssub.s32 2048, 2048
      %58 = vsyncadd [#allocation9], %s57
      %s59 = sshll.u32 [#allocation8], 4
      %s60 = int_to_ptr.vmem [resolvable:$true] %s59
      %65 = dma.hbm_to_vmem [thread:$0]  %s5, 2048, %s60, [#allocation9], 128, 128, 8
    $region25: #{tpu_custom_call.1} parent=1 // pred_fallthru
      _
    // Predicated region
    $region26: #{tpu_custom_call.1} parent=1 // pred_check
      _
    $region27: #{tpu_custom_call.1} parent=1 // pred_check_branch
      %67 = sbr.rel (0) target = $region29
    $region28: #{tpu_custom_call.1} parent=1 // pred_region
      _
    $region29: #{tpu_custom_call.1} parent=1 // pred_fallthru
      _
    // Predicated region
    $region30: #{tpu_custom_call.1} parent=1 // pred_check
      _
    $region31: #{tpu_custom_call.1} parent=1 // pred_check_branch
      %69 = sbr.rel (0) target = $region33
    $region32: #{tpu_custom_call.1} parent=1 // pred_region
      %70 = dma.done [#allocation3], 1024
    $region33: #{tpu_custom_call.1} parent=1 // pred_fallthru
      _
    // Predicated region
    $region34: #{tpu_custom_call.1} parent=1 // pred_check
      _
    $region35: #{tpu_custom_call.1} parent=1 // pred_check_branch
      %72 = sbr.rel (0) target = $region37
    $region36: #{tpu_custom_call.1} parent=1 // pred_region
      %73 = dma.done [#allocation6], 16384
    $region37: #{tpu_custom_call.1} parent=1 // pred_fallthru
      _
    // Predicated region
    $region38: #{tpu_custom_call.1} parent=1 // pred_check
      _
    $region39: #{tpu_custom_call.1} parent=1 // pred_check_branch
      %75 = sbr.rel (0) target = $region41
    $region40: #{tpu_custom_call.1} parent=1 // pred_region
      %76 = dma.done [#allocation6], 2048
    $region41: #{tpu_custom_call.1} parent=1 // pred_fallthru
      _
    // Predicated region
    $region42: #{tpu_custom_call.1} parent=1 // pred_check
      _
    $region43: #{tpu_custom_call.1} parent=1 // pred_check_branch
      %78 = sbr.rel (0) target = $region45
    $region44: #{tpu_custom_call.1} parent=1 // pred_region
      %79 = dma.done [#allocation9], 2048
    $region45: #{tpu_custom_call.1} parent=1 // pred_fallthru
      _
    %v80 = vld [vmem:[#allocation2] sm:$0xff]
    %v81 = vld [vmem:[#allocation2 + $0x8] sm:$0xff]
    %v82 = vld [vmem:[#allocation2 + $0x10] sm:$0xff]
    %v83 = vld [vmem:[#allocation2 + $0x18] sm:$0xff]
    %v84 = vld [vmem:[#allocation2 + $0x20] sm:$0xff]
    %v85 = vld [vmem:[#allocation2 + $0x28] sm:$0xff]
    %v86 = vld [vmem:[#allocation2 + $0x30] sm:$0xff]
    %v87 = vld [vmem:[#allocation2 + $0x38] sm:$0xff]
    %v88 = vld [vmem:[#allocation5] sm:$0xff]
    %v89 = vld [vmem:[#allocation5 + $0x8] sm:$0xff]
    %v90 = vld [vmem:[#allocation5 + $0x10] sm:$0xff]
    %v91 = vld [vmem:[#allocation5 + $0x18] sm:$0xff]
    %v92 = vld [vmem:[#allocation5 + $0x20] sm:$0xff]
    %v93 = vld [vmem:[#allocation5 + $0x28] sm:$0xff]
    %v94 = vld [vmem:[#allocation5 + $0x30] sm:$0xff]
    %v95 = vld [vmem:[#allocation5 + $0x38] sm:$0xff]
    %v96 = vld [vmem:[#allocation5 + $0x40] sm:$0xff]
    %v97 = vld [vmem:[#allocation5 + $0x48] sm:$0xff]
    %v98 = vld [vmem:[#allocation5 + $0x50] sm:$0xff]
    %v99 = vld [vmem:[#allocation5 + $0x58] sm:$0xff]
    %v100 = vld [vmem:[#allocation5 + $0x60] sm:$0xff]
    %v101 = vld [vmem:[#allocation5 + $0x68] sm:$0xff]
    %v102 = vld [vmem:[#allocation5 + $0x70] sm:$0xff]
    %v103 = vld [vmem:[#allocation5 + $0x78] sm:$0xff]
    %v104 = vld [vmem:[#allocation5 + $0x80] sm:$0xff]
    %v105 = vld [vmem:[#allocation5 + $0x88] sm:$0xff]
    %v106 = vld [vmem:[#allocation5 + $0x90] sm:$0xff]
    %v107 = vld [vmem:[#allocation5 + $0x98] sm:$0xff]
    %v108 = vld [vmem:[#allocation5 + $0xa0] sm:$0xff]
    %v109 = vld [vmem:[#allocation5 + $0xa8] sm:$0xff]
    %v110 = vld [vmem:[#allocation5 + $0xb0] sm:$0xff]
    %v111 = vld [vmem:[#allocation5 + $0xb8] sm:$0xff]
    %v112 = vld [vmem:[#allocation5 + $0xc0] sm:$0xff]
    %v113 = vld [vmem:[#allocation5 + $0xc8] sm:$0xff]
    %v114 = vld [vmem:[#allocation5 + $0xd0] sm:$0xff]
    %v115 = vld [vmem:[#allocation5 + $0xd8] sm:$0xff]
    %v116 = vld [vmem:[#allocation5 + $0xe0] sm:$0xff]
    %v117 = vld [vmem:[#allocation5 + $0xe8] sm:$0xff]
    %v118 = vld [vmem:[#allocation5 + $0xf0] sm:$0xff]
    %v119 = vld [vmem:[#allocation5 + $0xf8] sm:$0xff]
    %v120 = vld [vmem:[#allocation5 + $0x100] sm:$0xff]
    %v121 = vld [vmem:[#allocation5 + $0x108] sm:$0xff]
    %v122 = vld [vmem:[#allocation5 + $0x110] sm:$0xff]
    %v123 = vld [vmem:[#allocation5 + $0x118] sm:$0xff]
    %v124 = vld [vmem:[#allocation5 + $0x120] sm:$0xff]
    %v125 = vld [vmem:[#allocation5 + $0x128] sm:$0xff]
    %v126 = vld [vmem:[#allocation5 + $0x130] sm:$0xff]
    %v127 = vld [vmem:[#allocation5 + $0x138] sm:$0xff]
    %v128 = vld [vmem:[#allocation5 + $0x140] sm:$0xff]
    %v129 = vld [vmem:[#allocation5 + $0x148] sm:$0xff]
    %v130 = vld [vmem:[#allocation5 + $0x150] sm:$0xff]
    %v131 = vld [vmem:[#allocation5 + $0x158] sm:$0xff]
    %v132 = vld [vmem:[#allocation5 + $0x160] sm:$0xff]
    %v133 = vld [vmem:[#allocation5 + $0x168] sm:$0xff]
    %v134 = vld [vmem:[#allocation5 + $0x170] sm:$0xff]
    %v135 = vld [vmem:[#allocation5 + $0x178] sm:$0xff]
    %v136 = vld [vmem:[#allocation5 + $0x180] sm:$0xff]
    %v137 = vld [vmem:[#allocation5 + $0x188] sm:$0xff]
    %v138 = vld [vmem:[#allocation5 + $0x190] sm:$0xff]
    %v139 = vld [vmem:[#allocation5 + $0x198] sm:$0xff]
    %v140 = vld [vmem:[#allocation5 + $0x1a0] sm:$0xff]
    %v141 = vld [vmem:[#allocation5 + $0x1a8] sm:$0xff]
    %v142 = vld [vmem:[#allocation5 + $0x1b0] sm:$0xff]
    %v143 = vld [vmem:[#allocation5 + $0x1b8] sm:$0xff]
    %v144 = vld [vmem:[#allocation5 + $0x1c0] sm:$0xff]
    %v145 = vld [vmem:[#allocation5 + $0x1c8] sm:$0xff]
    %v146 = vld [vmem:[#allocation5 + $0x1d0] sm:$0xff]
    %v147 = vld [vmem:[#allocation5 + $0x1d8] sm:$0xff]
    %v148 = vld [vmem:[#allocation5 + $0x1e0] sm:$0xff]
    %v149 = vld [vmem:[#allocation5 + $0x1e8] sm:$0xff]
    %v150 = vld [vmem:[#allocation5 + $0x1f0] sm:$0xff]
    %v151 = vld [vmem:[#allocation5 + $0x1f8] sm:$0xff]
    %v152 = vld [vmem:[#allocation5 + $0x200] sm:$0xff]
    %v153 = vld [vmem:[#allocation5 + $0x208] sm:$0xff]
    %v154 = vld [vmem:[#allocation5 + $0x210] sm:$0xff]
    %v155 = vld [vmem:[#allocation5 + $0x218] sm:$0xff]
    %v156 = vld [vmem:[#allocation5 + $0x220] sm:$0xff]
    %v157 = vld [vmem:[#allocation5 + $0x228] sm:$0xff]
    %v158 = vld [vmem:[#allocation5 + $0x230] sm:$0xff]
    %v159 = vld [vmem:[#allocation5 + $0x238] sm:$0xff]
    %v160 = vld [vmem:[#allocation5 + $0x240] sm:$0xff]
    %v161 = vld [vmem:[#allocation5 + $0x248] sm:$0xff]
    %v162 = vld [vmem:[#allocation5 + $0x250] sm:$0xff]
    %v163 = vld [vmem:[#allocation5 + $0x258] sm:$0xff]
    %v164 = vld [vmem:[#allocation5 + $0x260] sm:$0xff]
    %v165 = vld [vmem:[#allocation5 + $0x268] sm:$0xff]
    %v166 = vld [vmem:[#allocation5 + $0x270] sm:$0xff]
    %v167 = vld [vmem:[#allocation5 + $0x278] sm:$0xff]
    %v168 = vld [vmem:[#allocation5 + $0x280] sm:$0xff]
    %v169 = vld [vmem:[#allocation5 + $0x288] sm:$0xff]
    %v170 = vld [vmem:[#allocation5 + $0x290] sm:$0xff]
    %v171 = vld [vmem:[#allocation5 + $0x298] sm:$0xff]
    %v172 = vld [vmem:[#allocation5 + $0x2a0] sm:$0xff]
    %v173 = vld [vmem:[#allocation5 + $0x2a8] sm:$0xff]
    %v174 = vld [vmem:[#allocation5 + $0x2b0] sm:$0xff]
    %v175 = vld [vmem:[#allocation5 + $0x2b8] sm:$0xff]
    %v176 = vld [vmem:[#allocation5 + $0x2c0] sm:$0xff]
    %v177 = vld [vmem:[#allocation5 + $0x2c8] sm:$0xff]
    %v178 = vld [vmem:[#allocation5 + $0x2d0] sm:$0xff]
    %v179 = vld [vmem:[#allocation5 + $0x2d8] sm:$0xff]
    %v180 = vld [vmem:[#allocation5 + $0x2e0] sm:$0xff]
    %v181 = vld [vmem:[#allocation5 + $0x2e8] sm:$0xff]
    %v182 = vld [vmem:[#allocation5 + $0x2f0] sm:$0xff]
    %v183 = vld [vmem:[#allocation5 + $0x2f8] sm:$0xff]
    %v184 = vld [vmem:[#allocation5 + $0x300] sm:$0xff]
    %v185 = vld [vmem:[#allocation5 + $0x308] sm:$0xff]
    %v186 = vld [vmem:[#allocation5 + $0x310] sm:$0xff]
    %v187 = vld [vmem:[#allocation5 + $0x318] sm:$0xff]
    %v188 = vld [vmem:[#allocation5 + $0x320] sm:$0xff]
    %v189 = vld [vmem:[#allocation5 + $0x328] sm:$0xff]
    %v190 = vld [vmem:[#allocation5 + $0x330] sm:$0xff]
    %v191 = vld [vmem:[#allocation5 + $0x338] sm:$0xff]
    %v192 = vld [vmem:[#allocation5 + $0x340] sm:$0xff]
    %v193 = vld [vmem:[#allocation5 + $0x348] sm:$0xff]
    %v194 = vld [vmem:[#allocation5 + $0x350] sm:$0xff]
    %v195 = vld [vmem:[#allocation5 + $0x358] sm:$0xff]
    %v196 = vld [vmem:[#allocation5 + $0x360] sm:$0xff]
    %v197 = vld [vmem:[#allocation5 + $0x368] sm:$0xff]
    %v198 = vld [vmem:[#allocation5 + $0x370] sm:$0xff]
    %v199 = vld [vmem:[#allocation5 + $0x378] sm:$0xff]
    %v200 = vld [vmem:[#allocation5 + $0x380] sm:$0xff]
    %v201 = vld [vmem:[#allocation5 + $0x388] sm:$0xff]
    %v202 = vld [vmem:[#allocation5 + $0x390] sm:$0xff]
    %v203 = vld [vmem:[#allocation5 + $0x398] sm:$0xff]
    %v204 = vld [vmem:[#allocation5 + $0x3a0] sm:$0xff]
    %v205 = vld [vmem:[#allocation5 + $0x3a8] sm:$0xff]
    %v206 = vld [vmem:[#allocation5 + $0x3b0] sm:$0xff]
    %v207 = vld [vmem:[#allocation5 + $0x3b8] sm:$0xff]
    %v208 = vld [vmem:[#allocation5 + $0x3c0] sm:$0xff]
    %v209 = vld [vmem:[#allocation5 + $0x3c8] sm:$0xff]
    %v210 = vld [vmem:[#allocation5 + $0x3d0] sm:$0xff]
    %v211 = vld [vmem:[#allocation5 + $0x3d8] sm:$0xff]
    %v212 = vld [vmem:[#allocation5 + $0x3e0] sm:$0xff]
    %v213 = vld [vmem:[#allocation5 + $0x3e8] sm:$0xff]
    %v214 = vld [vmem:[#allocation5 + $0x3f0] sm:$0xff]
    %v215 = vld [vmem:[#allocation5 + $0x3f8] sm:$0xff]
    %v216 = vld [vmem:[%s2] sm:$0x1]
    %v218 = vlaneseq
    %v219 = vshrl.u32 %v218, 7
    %v220 = vsub.s32 0, %v219
    %v221 = vrot.slane %v216, %v220
    %223 = vmatprep.subr.mxu0 0.0
    %v224 = vand.u32 %v88, 4294901760
    %225 = vmatpush1.msra.mxu0 %v224
    %226 = vmatprep.subr.mxu0 0.0
    %v227 = vand.u32 %v89, 4294901760
    %228 = vmatpush1.msra.mxu0 %v227
    %229 = vmatprep.subr.mxu0 0.0
    %v230 = vand.u32 %v90, 4294901760
    %231 = vmatpush1.msra.mxu0 %v230
    %232 = vmatprep.subr.mxu0 0.0
    %v233 = vand.u32 %v91, 4294901760
    %234 = vmatpush1.msra.mxu0 %v233
    %235 = vmatprep.subr.mxu0 0.0
    %v236 = vand.u32 %v92, 4294901760
    %237 = vmatpush1.msra.mxu0 %v236
    %238 = vmatprep.subr.mxu0 0.0
    %v239 = vand.u32 %v93, 4294901760
    %240 = vmatpush1.msra.mxu0 %v239
    %241 = vmatprep.subr.mxu0 0.0
    %v242 = vand.u32 %v94, 4294901760
    %243 = vmatpush1.msra.mxu0 %v242
    %244 = vmatprep.subr.mxu0 0.0
    %v245 = vand.u32 %v95, 4294901760
    %246 = vmatpush1.msra.mxu0 %v245
    %247 = vmatprep.subr.mxu0 0.0
    %v248 = vand.u32 %v96, 4294901760
    %249 = vmatpush1.msra.mxu0 %v248
    %250 = vmatprep.subr.mxu0 0.0
    %v251 = vand.u32 %v97, 4294901760
    %252 = vmatpush1.msra.mxu0 %v251
    %253 = vmatprep.subr.mxu0 0.0
    %v254 = vand.u32 %v98, 4294901760
    %255 = vmatpush1.msra.mxu0 %v254
    %256 = vmatprep.subr.mxu0 0.0
    %v257 = vand.u32 %v99, 4294901760
    %258 = vmatpush1.msra.mxu0 %v257
    %259 = vmatprep.subr.mxu0 0.0
    %v260 = vand.u32 %v100, 4294901760
    %261 = vmatpush1.msra.mxu0 %v260
    %262 = vmatprep.subr.mxu0 0.0
    %v263 = vand.u32 %v101, 4294901760
    %264 = vmatpush1.msra.mxu0 %v263
    %265 = vmatprep.subr.mxu0 0.0
    %v266 = vand.u32 %v102, 4294901760
    %267 = vmatpush1.msra.mxu0 %v266
    %268 = vmatprep.subr.mxu0 0.0
    %v269 = vand.u32 %v103, 4294901760
    %270 = vmatpush1.msra.mxu0 %v269
    %271 = vmatprep.subr.mxu0 0.0
    %v272 = vand.u32 %v104, 4294901760
    %273 = vmatpush1.msra.mxu0 %v272
    %274 = vmatprep.subr.mxu0 0.0
    %v275 = vand.u32 %v105, 4294901760
    %276 = vmatpush1.msra.mxu0 %v275
    %277 = vmatprep.subr.mxu0 0.0
    %v278 = vand.u32 %v106, 4294901760
    %279 = vmatpush1.msra.mxu0 %v278
    %280 = vmatprep.subr.mxu0 0.0
    %v281 = vand.u32 %v107, 4294901760
    %282 = vmatpush1.msra.mxu0 %v281
    %283 = vmatprep.subr.mxu0 0.0
    %v284 = vand.u32 %v108, 4294901760
    %285 = vmatpush1.msra.mxu0 %v284
    %286 = vmatprep.subr.mxu0 0.0
    %v287 = vand.u32 %v109, 4294901760
    %288 = vmatpush1.msra.mxu0 %v287
    %289 = vmatprep.subr.mxu0 0.0
    %v290 = vand.u32 %v110, 4294901760
    %291 = vmatpush1.msra.mxu0 %v290
    %292 = vmatprep.subr.mxu0 0.0
    %v293 = vand.u32 %v111, 4294901760
    %294 = vmatpush1.msra.mxu0 %v293
    %295 = vmatprep.subr.mxu0 0.0
    %v296 = vand.u32 %v112, 4294901760
    %297 = vmatpush1.msra.mxu0 %v296
    %298 = vmatprep.subr.mxu0 0.0
    %v299 = vand.u32 %v113, 4294901760
    %300 = vmatpush1.msra.mxu0 %v299
    %301 = vmatprep.subr.mxu0 0.0
    %v302 = vand.u32 %v114, 4294901760
    %303 = vmatpush1.msra.mxu0 %v302
    %304 = vmatprep.subr.mxu0 0.0
    %v305 = vand.u32 %v115, 4294901760
    %306 = vmatpush1.msra.mxu0 %v305
    %307 = vmatprep.subr.mxu0 0.0
    %v308 = vand.u32 %v116, 4294901760
    %309 = vmatpush1.msra.mxu0 %v308
    %310 = vmatprep.subr.mxu0 0.0
    %v311 = vand.u32 %v117, 4294901760
    %312 = vmatpush1.msra.mxu0 %v311
    %313 = vmatprep.subr.mxu0 0.0
    %v314 = vand.u32 %v118, 4294901760
    %315 = vmatpush1.msra.mxu0 %v314
    %316 = vmatprep.subr.mxu0 0.0
    %v317 = vand.u32 %v119, 4294901760
    %318 = vmatpush1.msra.mxu0 %v317
    %v319 = vand.u32 %v81, 4294901760
    %v320 = vsub.f32 %v81, %v319
    %v321 = vand.u32 %v320, 4294901760
    %v322 = vsub.f32 %v320, %v321
    %v323 = vand.u32 %v322, 4294901760
    %324 = vmatprep.mubr.f32.mxu0 %v323
    %v325 = vand.u32 %v80, 4294901760
    %v326 = vsub.f32 %v80, %v325
    %v327 = vand.u32 %v326, 4294901760
    %v328 = vsub.f32 %v326, %v327
    %v329 = vand.u32 %v328, 4294901760
    %330 = vmatmul.mubr.f32.gmra.mrb[0].mxu0 %v329
    %v331 = vpop.f32.mrb[0].mxu0
    %v332 = vadd.f32 %v221, %v331
    %v333 = vpop.f32.mrb[0].mxu0
    %334 = vdwg.mxu0
    %335 = vmatprep.subr.mxu0 0.0
    %v336 = vand.u32 %v88, 4294901760
    %v337 = vsub.f32 %v88, %v336
    %v338 = vand.u32 %v337, 4294901760
    %v339 = vsub.f32 %v337, %v338
    %v340 = vand.u32 %v339, 4294901760
    %341 = vmatpush1.msra.mxu0 %v340
    %342 = vmatprep.subr.mxu0 0.0
    %v343 = vand.u32 %v89, 4294901760
    %v344 = vsub.f32 %v89, %v343
    %v345 = vand.u32 %v344, 4294901760
    %v346 = vsub.f32 %v344, %v345
    %v347 = vand.u32 %v346, 4294901760
    %348 = vmatpush1.msra.mxu0 %v347
    %349 = vmatprep.subr.mxu0 0.0
    %v350 = vand.u32 %v90, 4294901760
    %v351 = vsub.f32 %v90, %v350
    %v352 = vand.u32 %v351, 4294901760
    %v353 = vsub.f32 %v351, %v352
    %v354 = vand.u32 %v353, 4294901760
    %355 = vmatpush1.msra.mxu0 %v354
    %356 = vmatprep.subr.mxu0 0.0
    %v357 = vand.u32 %v91, 4294901760
    %v358 = vsub.f32 %v91, %v357
    %v359 = vand.u32 %v358, 4294901760
    %v360 = vsub.f32 %v358, %v359
    %v361 = vand.u32 %v360, 4294901760
    %362 = vmatpush1.msra.mxu0 %v361
    %363 = vmatprep.subr.mxu0 0.0
    %v364 = vand.u32 %v92, 4294901760
    %v365 = vsub.f32 %v92, %v364
    %v366 = vand.u32 %v365, 4294901760
    %v367 = vsub.f32 %v365, %v366
    %v368 = vand.u32 %v367, 4294901760
    %369 = vmatpush1.msra.mxu0 %v368
    %370 = vmatprep.subr.mxu0 0.0
    %v371 = vand.u32 %v93, 4294901760
    %v372 = vsub.f32 %v93, %v371
    %v373 = vand.u32 %v372, 4294901760
    %v374 = vsub.f32 %v372, %v373
    %v375 = vand.u32 %v374, 4294901760
    %376 = vmatpush1.msra.mxu0 %v375
    %377 = vmatprep.subr.mxu0 0.0
    %v378 = vand.u32 %v94, 4294901760
    %v379 = vsub.f32 %v94, %v378
    %v380 = vand.u32 %v379, 4294901760
    %v381 = vsub.f32 %v379, %v380
    %v382 = vand.u32 %v381, 4294901760
    %383 = vmatpush1.msra.mxu0 %v382
    %384 = vmatprep.subr.mxu0 0.0
    %v385 = vand.u32 %v95, 4294901760
    %v386 = vsub.f32 %v95, %v385
    %v387 = vand.u32 %v386, 4294901760
    %v388 = vsub.f32 %v386, %v387
    %v389 = vand.u32 %v388, 4294901760
    %390 = vmatpush1.msra.mxu0 %v389
    %391 = vmatprep.subr.mxu0 0.0
    %v392 = vand.u32 %v96, 4294901760
    %v393 = vsub.f32 %v96, %v392
    %v394 = vand.u32 %v393, 4294901760
    %v395 = vsub.f32 %v393, %v394
    %v396 = vand.u32 %v395, 4294901760
    %397 = vmatpush1.msra.mxu0 %v396
    %398 = vmatprep.subr.mxu0 0.0
    %v399 = vand.u32 %v97, 4294901760
    %v400 = vsub.f32 %v97, %v399
    %v401 = vand.u32 %v400, 4294901760
    %v402 = vsub.f32 %v400, %v401
    %v403 = vand.u32 %v402, 4294901760
    %404 = vmatpush1.msra.mxu0 %v403
    %405 = vmatprep.subr.mxu0 0.0
    %v406 = vand.u32 %v98, 4294901760
    %v407 = vsub.f32 %v98, %v406
    %v408 = vand.u32 %v407, 4294901760
    %v409 = vsub.f32 %v407, %v408
    %v410 = vand.u32 %v409, 4294901760
    %411 = vmatpush1.msra.mxu0 %v410
    %412 = vmatprep.subr.mxu0 0.0
    %v413 = vand.u32 %v99, 4294901760
    %v414 = vsub.f32 %v99, %v413
    %v415 = vand.u32 %v414, 4294901760
    %v416 = vsub.f32 %v414, %v415
    %v417 = vand.u32 %v416, 4294901760
    %418 = vmatpush1.msra.mxu0 %v417
    %419 = vmatprep.subr.mxu0 0.0
    %v420 = vand.u32 %v100, 4294901760
    %v421 = vsub.f32 %v100, %v420
    %v422 = vand.u32 %v421, 4294901760
    %v423 = vsub.f32 %v421, %v422
    %v424 = vand.u32 %v423, 4294901760
    %425 = vmatpush1.msra.mxu0 %v424
    %426 = vmatprep.subr.mxu0 0.0
    %v427 = vand.u32 %v101, 4294901760
    %v428 = vsub.f32 %v101, %v427
    %v429 = vand.u32 %v428, 4294901760
    %v430 = vsub.f32 %v428, %v429
    %v431 = vand.u32 %v430, 4294901760
    %432 = vmatpush1.msra.mxu0 %v431
    %433 = vmatprep.subr.mxu0 0.0
    %v434 = vand.u32 %v102, 4294901760
    %v435 = vsub.f32 %v102, %v434
    %v436 = vand.u32 %v435, 4294901760
    %v437 = vsub.f32 %v435, %v436
    %v438 = vand.u32 %v437, 4294901760
    %439 = vmatpush1.msra.mxu0 %v438
    %440 = vmatprep.subr.mxu0 0.0
    %v441 = vand.u32 %v103, 4294901760
    %v442 = vsub.f32 %v103, %v441
    %v443 = vand.u32 %v442, 4294901760
    %v444 = vsub.f32 %v442, %v443
    %v445 = vand.u32 %v444, 4294901760
    %446 = vmatpush1.msra.mxu0 %v445
    %447 = vmatprep.subr.mxu0 0.0
    %v448 = vand.u32 %v104, 4294901760
    %v449 = vsub.f32 %v104, %v448
    %v450 = vand.u32 %v449, 4294901760
    %v451 = vsub.f32 %v449, %v450
    %v452 = vand.u32 %v451, 4294901760
    %453 = vmatpush1.msra.mxu0 %v452
    %454 = vmatprep.subr.mxu0 0.0
    %v455 = vand.u32 %v105, 4294901760
    %v456 = vsub.f32 %v105, %v455
    %v457 = vand.u32 %v456, 4294901760
    %v458 = vsub.f32 %v456, %v457
    %v459 = vand.u32 %v458, 4294901760
    %460 = vmatpush1.msra.mxu0 %v459
    %461 = vmatprep.subr.mxu0 0.0
    %v462 = vand.u32 %v106, 4294901760
    %v463 = vsub.f32 %v106, %v462
    %v464 = vand.u32 %v463, 4294901760
    %v465 = vsub.f32 %v463, %v464
    %v466 = vand.u32 %v465, 4294901760
    %467 = vmatpush1.msra.mxu0 %v466
    %468 = vmatprep.subr.mxu0 0.0
    %v469 = vand.u32 %v107, 4294901760
    %v470 = vsub.f32 %v107, %v469
    %v471 = vand.u32 %v470, 4294901760
    %v472 = vsub.f32 %v470, %v471
    %v473 = vand.u32 %v472, 4294901760
    %474 = vmatpush1.msra.mxu0 %v473
    %475 = vmatprep.subr.mxu0 0.0
    %v476 = vand.u32 %v108, 4294901760
    %v477 = vsub.f32 %v108, %v476
    %v478 = vand.u32 %v477, 4294901760
    %v479 = vsub.f32 %v477, %v478
    %v480 = vand.u32 %v479, 4294901760
    %481 = vmatpush1.msra.mxu0 %v480
    %482 = vmatprep.subr.mxu0 0.0
    %v483 = vand.u32 %v109, 4294901760
    %v484 = vsub.f32 %v109, %v483
    %v485 = vand.u32 %v484, 4294901760
    %v486 = vsub.f32 %v484, %v485
    %v487 = vand.u32 %v486, 4294901760
    %488 = vmatpush1.msra.mxu0 %v487
    %489 = vmatprep.subr.mxu0 0.0
    %v490 = vand.u32 %v110, 4294901760
    %v491 = vsub.f32 %v110, %v490
    %v492 = vand.u32 %v491, 4294901760
    %v493 = vsub.f32 %v491, %v492
    %v494 = vand.u32 %v493, 4294901760
    %495 = vmatpush1.msra.mxu0 %v494
    %496 = vmatprep.subr.mxu0 0.0
    %v497 = vand.u32 %v111, 4294901760
    %v498 = vsub.f32 %v111, %v497
    %v499 = vand.u32 %v498, 4294901760
    %v500 = vsub.f32 %v498, %v499
    %v501 = vand.u32 %v500, 4294901760
    %502 = vmatpush1.msra.mxu0 %v501
    %503 = vmatprep.subr.mxu0 0.0
    %v504 = vand.u32 %v112, 4294901760
    %v505 = vsub.f32 %v112, %v504
    %v506 = vand.u32 %v505, 4294901760
    %v507 = vsub.f32 %v505, %v506
    %v508 = vand.u32 %v507, 4294901760
    %509 = vmatpush1.msra.mxu0 %v508
    %510 = vmatprep.subr.mxu0 0.0
    %v511 = vand.u32 %v113, 4294901760
    %v512 = vsub.f32 %v113, %v511
    %v513 = vand.u32 %v512, 4294901760
    %v514 = vsub.f32 %v512, %v513
    %v515 = vand.u32 %v514, 4294901760
    %516 = vmatpush1.msra.mxu0 %v515
    %517 = vmatprep.subr.mxu0 0.0
    %v518 = vand.u32 %v114, 4294901760
    %v519 = vsub.f32 %v114, %v518
    %v520 = vand.u32 %v519, 4294901760
    %v521 = vsub.f32 %v519, %v520
    %v522 = vand.u32 %v521, 4294901760
    %523 = vmatpush1.msra.mxu0 %v522
    %524 = vmatprep.subr.mxu0 0.0
    %v525 = vand.u32 %v115, 4294901760
    %v526 = vsub.f32 %v115, %v525
    %v527 = vand.u32 %v526, 4294901760
    %v528 = vsub.f32 %v526, %v527
    %v529 = vand.u32 %v528, 4294901760
    %530 = vmatpush1.msra.mxu0 %v529
    %531 = vmatprep.subr.mxu0 0.0
    %v532 = vand.u32 %v116, 4294901760
    %v533 = vsub.f32 %v116, %v532
    %v534 = vand.u32 %v533, 4294901760
    %v535 = vsub.f32 %v533, %v534
    %v536 = vand.u32 %v535, 4294901760
    %537 = vmatpush1.msra.mxu0 %v536
    %538 = vmatprep.subr.mxu0 0.0
    %v539 = vand.u32 %v117, 4294901760
    %v540 = vsub.f32 %v117, %v539
    %v541 = vand.u32 %v540, 4294901760
    %v542 = vsub.f32 %v540, %v541
    %v543 = vand.u32 %v542, 4294901760
    %544 = vmatpush1.msra.mxu0 %v543
    %545 = vmatprep.subr.mxu0 0.0
    %v546 = vand.u32 %v118, 4294901760
    %v547 = vsub.f32 %v118, %v546
    %v548 = vand.u32 %v547, 4294901760
    %v549 = vsub.f32 %v547, %v548
    %v550 = vand.u32 %v549, 4294901760
    %551 = vmatpush1.msra.mxu0 %v550
    %552 = vmatprep.subr.mxu0 0.0
    %v553 = vand.u32 %v119, 4294901760
    %v554 = vsub.f32 %v119, %v553
    %v555 = vand.u32 %v554, 4294901760
    %v556 = vsub.f32 %v554, %v555
    %v557 = vand.u32 %v556, 4294901760
    %558 = vmatpush1.msra.mxu0 %v557
    %v559 = vand.u32 %v81, 4294901760
    %560 = vmatprep.mubr.f32.mxu0 %v559
    %v561 = vand.u32 %v80, 4294901760
    %562 = vmatmul.mubr.f32.gmra.mrb[0].mxu0 %v561
    %v563 = vpop.f32.mrb[0].mxu0
    %v564 = vadd.f32 %v332, %v563
    %v565 = vpop.f32.mrb[0].mxu0
    %566 = vdwg.mxu0
    %567 = vmatprep.subr.mxu0 0.0
    %v568 = vand.u32 %v88, 4294901760
    %v569 = vsub.f32 %v88, %v568
    %570 = vmatpush1.msra.mxu0 %v569
    %571 = vmatprep.subr.mxu0 0.0
    %v572 = vand.u32 %v89, 4294901760
    %v573 = vsub.f32 %v89, %v572
    %574 = vmatpush1.msra.mxu0 %v573
    %575 = vmatprep.subr.mxu0 0.0
    %v576 = vand.u32 %v90, 4294901760
    %v577 = vsub.f32 %v90, %v576
    %578 = vmatpush1.msra.mxu0 %v577
    %579 = vmatprep.subr.mxu0 0.0
    %v580 = vand.u32 %v91, 4294901760
    %v581 = vsub.f32 %v91, %v580
    %582 = vmatpush1.msra.mxu0 %v581
    %583 = vmatprep.subr.mxu0 0.0
    %v584 = vand.u32 %v92, 4294901760
    %v585 = vsub.f32 %v92, %v584
    %586 = vmatpush1.msra.mxu0 %v585
    %587 = vmatprep.subr.mxu0 0.0
    %v588 = vand.u32 %v93, 4294901760
    %v589 = vsub.f32 %v93, %v588
    %590 = vmatpush1.msra.mxu0 %v589
    %591 = vmatprep.subr.mxu0 0.0
    %v592 = vand.u32 %v94, 4294901760
    %v593 = vsub.f32 %v94, %v592
    %594 = vmatpush1.msra.mxu0 %v593
    %595 = vmatprep.subr.mxu0 0.0
    %v596 = vand.u32 %v95, 4294901760
    %v597 = vsub.f32 %v95, %v596
    %598 = vmatpush1.msra.mxu0 %v597
    %599 = vmatprep.subr.mxu0 0.0
    %v600 = vand.u32 %v96, 4294901760
    %v601 = vsub.f32 %v96, %v600
    %602 = vmatpush1.msra.mxu0 %v601
    %603 = vmatprep.subr.mxu0 0.0
    %v604 = vand.u32 %v97, 4294901760
    %v605 = vsub.f32 %v97, %v604
    %606 = vmatpush1.msra.mxu0 %v605
    %607 = vmatprep.subr.mxu0 0.0
    %v608 = vand.u32 %v98, 4294901760
    %v609 = vsub.f32 %v98, %v608
    %610 = vmatpush1.msra.mxu0 %v609
    %611 = vmatprep.subr.mxu0 0.0
    %v612 = vand.u32 %v99, 4294901760
    %v613 = vsub.f32 %v99, %v612
    %614 = vmatpush1.msra.mxu0 %v613
    %615 = vmatprep.subr.mxu0 0.0
    %v616 = vand.u32 %v100, 4294901760
    %v617 = vsub.f32 %v100, %v616
    %618 = vmatpush1.msra.mxu0 %v617
    %619 = vmatprep.subr.mxu0 0.0
    %v620 = vand.u32 %v101, 4294901760
    %v621 = vsub.f32 %v101, %v620
    %622 = vmatpush1.msra.mxu0 %v621
    %623 = vmatprep.subr.mxu0 0.0
    %v624 = vand.u32 %v102, 4294901760
    %v625 = vsub.f32 %v102, %v624
    %626 = vmatpush1.msra.mxu0 %v625
    %627 = vmatprep.subr.mxu0 0.0
    %v628 = vand.u32 %v103, 4294901760
    %v629 = vsub.f32 %v103, %v628
    %630 = vmatpush1.msra.mxu0 %v629
    %631 = vmatprep.subr.mxu0 0.0
    %v632 = vand.u32 %v104, 4294901760
    %v633 = vsub.f32 %v104, %v632
    %634 = vmatpush1.msra.mxu0 %v633
    %635 = vmatprep.subr.mxu0 0.0
    %v636 = vand.u32 %v105, 4294901760
    %v637 = vsub.f32 %v105, %v636
    %638 = vmatpush1.msra.mxu0 %v637
    %639 = vmatprep.subr.mxu0 0.0
    %v640 = vand.u32 %v106, 4294901760
    %v641 = vsub.f32 %v106, %v640
    %642 = vmatpush1.msra.mxu0 %v641
    %643 = vmatprep.subr.mxu0 0.0
    %v644 = vand.u32 %v107, 4294901760
    %v645 = vsub.f32 %v107, %v644
    %646 = vmatpush1.msra.mxu0 %v645
    %647 = vmatprep.subr.mxu0 0.0
    %v648 = vand.u32 %v108, 4294901760
    %v649 = vsub.f32 %v108, %v648
    %650 = vmatpush1.msra.mxu0 %v649
    %651 = vmatprep.subr.mxu0 0.0
    %v652 = vand.u32 %v109, 4294901760
    %v653 = vsub.f32 %v109, %v652
    %654 = vmatpush1.msra.mxu0 %v653
    %655 = vmatprep.subr.mxu0 0.0
    %v656 = vand.u32 %v110, 4294901760
    %v657 = vsub.f32 %v110, %v656
    %658 = vmatpush1.msra.mxu0 %v657
    %659 = vmatprep.subr.mxu0 0.0
    %v660 = vand.u32 %v111, 4294901760
    %v661 = vsub.f32 %v111, %v660
    %662 = vmatpush1.msra.mxu0 %v661
    %663 = vmatprep.subr.mxu0 0.0
    %v664 = vand.u32 %v112, 4294901760
    %v665 = vsub.f32 %v112, %v664
    %666 = vmatpush1.msra.mxu0 %v665
    %667 = vmatprep.subr.mxu0 0.0
    %v668 = vand.u32 %v113, 4294901760
    %v669 = vsub.f32 %v113, %v668
    %670 = vmatpush1.msra.mxu0 %v669
    %671 = vmatprep.subr.mxu0 0.0
    %v672 = vand.u32 %v114, 4294901760
    %v673 = vsub.f32 %v114, %v672
    %674 = vmatpush1.msra.mxu0 %v673
    %675 = vmatprep.subr.mxu0 0.0
    %v676 = vand.u32 %v115, 4294901760
    %v677 = vsub.f32 %v115, %v676
    %678 = vmatpush1.msra.mxu0 %v677
    %679 = vmatprep.subr.mxu0 0.0
    %v680 = vand.u32 %v116, 4294901760
    %v681 = vsub.f32 %v116, %v680
    %682 = vmatpush1.msra.mxu0 %v681
    %683 = vmatprep.subr.mxu0 0.0
    %v684 = vand.u32 %v117, 4294901760
    %v685 = vsub.f32 %v117, %v684
    %686 = vmatpush1.msra.mxu0 %v685
    %687 = vmatprep.subr.mxu0 0.0
    %v688 = vand.u32 %v118, 4294901760
    %v689 = vsub.f32 %v118, %v688
    %690 = vmatpush1.msra.mxu0 %v689
    %691 = vmatprep.subr.mxu0 0.0
    %v692 = vand.u32 %v119, 4294901760
    %v693 = vsub.f32 %v119, %v692
    %694 = vmatpush1.msra.mxu0 %v693
    %v695 = vand.u32 %v81, 4294901760
    %v696 = vsub.f32 %v81, %v695
    %697 = vmatprep.mubr.f32.mxu0 %v696
    %v698 = vand.u32 %v80, 4294901760
    %v699 = vsub.f32 %v80, %v698
    %700 = vmatmul.mubr.f32.gmra.mrb[0].mxu0 %v699
    %v701 = vpop.f32.mrb[0].mxu0
    %v702 = vadd.f32 %v564, %v701
    %v703 = vpop.f32.mrb[0].mxu0
    %704 = vdwg.mxu0
    %705 = vmatprep.subr.mxu0 0.0
    %v706 = vand.u32 %v88, 4294901760
    %707 = vmatpush1.msra.mxu0 %v706
    %708 = vmatprep.subr.mxu0 0.0
    %v709 = vand.u32 %v89, 4294901760
    %710 = vmatpush1.msra.mxu0 %v709
    %711 = vmatprep.subr.mxu0 0.0
    %v712 = vand.u32 %v90, 4294901760
    %713 = vmatpush1.msra.mxu0 %v712
    %714 = vmatprep.subr.mxu0 0.0
    %v715 = vand.u32 %v91, 4294901760
    %716 = vmatpush1.msra.mxu0 %v715
    %717 = vmatprep.subr.mxu0 0.0
    %v718 = vand.u32 %v92, 4294901760
    %719 = vmatpush1.msra.mxu0 %v718
    %720 = vmatprep.subr.mxu0 0.0
    %v721 = vand.u32 %v93, 4294901760
    %722 = vmatpush1.msra.mxu0 %v721
    %723 = vmatprep.subr.mxu0 0.0
    %v724 = vand.u32 %v94, 4294901760
    %725 = vmatpush1.msra.mxu0 %v724
    %726 = vmatprep.subr.mxu0 0.0
    %v727 = vand.u32 %v95, 4294901760
    %728 = vmatpush1.msra.mxu0 %v727
    %729 = vmatprep.subr.mxu0 0.0
    %v730 = vand.u32 %v96, 4294901760
    %731 = vmatpush1.msra.mxu0 %v730
    %732 = vmatprep.subr.mxu0 0.0
    %v733 = vand.u32 %v97, 4294901760
    %734 = vmatpush1.msra.mxu0 %v733
    %735 = vmatprep.subr.mxu0 0.0
    %v736 = vand.u32 %v98, 4294901760
    %737 = vmatpush1.msra.mxu0 %v736
    %738 = vmatprep.subr.mxu0 0.0
    %v739 = vand.u32 %v99, 4294901760
    %740 = vmatpush1.msra.mxu0 %v739
    %741 = vmatprep.subr.mxu0 0.0
    %v742 = vand.u32 %v100, 4294901760
    %743 = vmatpush1.msra.mxu0 %v742
    %744 = vmatprep.subr.mxu0 0.0
    %v745 = vand.u32 %v101, 4294901760
    %746 = vmatpush1.msra.mxu0 %v745
    %747 = vmatprep.subr.mxu0 0.0
    %v748 = vand.u32 %v102, 4294901760
    %749 = vmatpush1.msra.mxu0 %v748
    %750 = vmatprep.subr.mxu0 0.0
    %v751 = vand.u32 %v103, 4294901760
    %752 = vmatpush1.msra.mxu0 %v751
    %753 = vmatprep.subr.mxu0 0.0
    %v754 = vand.u32 %v104, 4294901760
    %755 = vmatpush1.msra.mxu0 %v754
    %756 = vmatprep.subr.mxu0 0.0
    %v757 = vand.u32 %v105, 4294901760
    %758 = vmatpush1.msra.mxu0 %v757
    %759 = vmatprep.subr.mxu0 0.0
    %v760 = vand.u32 %v106, 4294901760
    %761 = vmatpush1.msra.mxu0 %v760
    %762 = vmatprep.subr.mxu0 0.0
    %v763 = vand.u32 %v107, 4294901760
    %764 = vmatpush1.msra.mxu0 %v763
    %765 = vmatprep.subr.mxu0 0.0
    %v766 = vand.u32 %v108, 4294901760
    %767 = vmatpush1.msra.mxu0 %v766
    %768 = vmatprep.subr.mxu0 0.0
    %v769 = vand.u32 %v109, 4294901760
    %770 = vmatpush1.msra.mxu0 %v769
    %771 = vmatprep.subr.mxu0 0.0
    %v772 = vand.u32 %v110, 4294901760
    %773 = vmatpush1.msra.mxu0 %v772
    %774 = vmatprep.subr.mxu0 0.0
    %v775 = vand.u32 %v111, 4294901760
    %776 = vmatpush1.msra.mxu0 %v775
    %777 = vmatprep.subr.mxu0 0.0
    %v778 = vand.u32 %v112, 4294901760
    %779 = vmatpush1.msra.mxu0 %v778
    %780 = vmatprep.subr.mxu0 0.0
    %v781 = vand.u32 %v113, 4294901760
    %782 = vmatpush1.msra.mxu0 %v781
    %783 = vmatprep.subr.mxu0 0.0
    %v784 = vand.u32 %v114, 4294901760
    %785 = vmatpush1.msra.mxu0 %v784
    %786 = vmatprep.subr.mxu0 0.0
    %v787 = vand.u32 %v115, 4294901760
    %788 = vmatpush1.msra.mxu0 %v787
    %789 = vmatprep.subr.mxu0 0.0
    %v790 = vand.u32 %v116, 4294901760
    %791 = vmatpush1.msra.mxu0 %v790
    %792 = vmatprep.subr.mxu0 0.0
    %v793 = vand.u32 %v117, 4294901760
    %794 = vmatpush1.msra.mxu0 %v793
    %795 = vmatprep.subr.mxu0 0.0
    %v796 = vand.u32 %v118, 4294901760
    %797 = vmatpush1.msra.mxu0 %v796
    %798 = vmatprep.subr.mxu0 0.0
    %v799 = vand.u32 %v119, 4294901760
    %800 = vmatpush1.msra.mxu0 %v799
    %v801 = vand.u32 %v81, 4294901760
    %v802 = vsub.f32 %v81, %v801
    %v803 = vand.u32 %v802, 4294901760
    %804 = vmatprep.mubr.f32.mxu0 %v803
    %v805 = vand.u32 %v80, 4294901760
    %v806 = vsub.f32 %v80, %v805
    %v807 = vand.u32 %v806, 4294901760
    %808 = vmatmul.mubr.f32.gmra.mrb[0].mxu0 %v807
    %v809 = vpop.f32.mrb[0].mxu0
    %v810 = vadd.f32 %v702, %v809
    %v811 = vpop.f32.mrb[0].mxu0
    %812 = vdwg.mxu0
    %813 = vmatprep.subr.mxu0 0.0
    %v814 = vand.u32 %v88, 4294901760
    %v815 = vsub.f32 %v88, %v814
    %v816 = vand.u32 %v815, 4294901760
    %817 = vmatpush1.msra.mxu0 %v816
    %818 = vmatprep.subr.mxu0 0.0
    %v819 = vand.u32 %v89, 4294901760
    %v820 = vsub.f32 %v89, %v819
    %v821 = vand.u32 %v820, 4294901760
    %822 = vmatpush1.msra.mxu0 %v821
    %823 = vmatprep.subr.mxu0 0.0
    %v824 = vand.u32 %v90, 4294901760
    %v825 = vsub.f32 %v90, %v824
    %v826 = vand.u32 %v825, 4294901760
    %827 = vmatpush1.msra.mxu0 %v826
    %828 = vmatprep.subr.mxu0 0.0
    %v829 = vand.u32 %v91, 4294901760
    %v830 = vsub.f32 %v91, %v829
    %v831 = vand.u32 %v830, 4294901760
    %832 = vmatpush1.msra.mxu0 %v831
    %833 = vmatprep.subr.mxu0 0.0
    %v834 = vand.u32 %v92, 4294901760
    %v835 = vsub.f32 %v92, %v834
    %v836 = vand.u32 %v835, 4294901760
    %837 = vmatpush1.msra.mxu0 %v836
    %838 = vmatprep.subr.mxu0 0.0
    %v839 = vand.u32 %v93, 4294901760
    %v840 = vsub.f32 %v93, %v839
    %v841 = vand.u32 %v840, 4294901760
    %842 = vmatpush1.msra.mxu0 %v841
    %843 = vmatprep.subr.mxu0 0.0
    %v844 = vand.u32 %v94, 4294901760
    %v845 = vsub.f32 %v94, %v844
    %v846 = vand.u32 %v845, 4294901760
    %847 = vmatpush1.msra.mxu0 %v846
    %848 = vmatprep.subr.mxu0 0.0
    %v849 = vand.u32 %v95, 4294901760
    %v850 = vsub.f32 %v95, %v849
    %v851 = vand.u32 %v850, 4294901760
    %852 = vmatpush1.msra.mxu0 %v851
    %853 = vmatprep.subr.mxu0 0.0
    %v854 = vand.u32 %v96, 4294901760
    %v855 = vsub.f32 %v96, %v854
    %v856 = vand.u32 %v855, 4294901760
    %857 = vmatpush1.msra.mxu0 %v856
    %858 = vmatprep.subr.mxu0 0.0
    %v859 = vand.u32 %v97, 4294901760
    %v860 = vsub.f32 %v97, %v859
    %v861 = vand.u32 %v860, 4294901760
    %862 = vmatpush1.msra.mxu0 %v861
    %863 = vmatprep.subr.mxu0 0.0
    %v864 = vand.u32 %v98, 4294901760
    %v865 = vsub.f32 %v98, %v864
    %v866 = vand.u32 %v865, 4294901760
    %867 = vmatpush1.msra.mxu0 %v866
    %868 = vmatprep.subr.mxu0 0.0
    %v869 = vand.u32 %v99, 4294901760
    %v870 = vsub.f32 %v99, %v869
    %v871 = vand.u32 %v870, 4294901760
    %872 = vmatpush1.msra.mxu0 %v871
    %873 = vmatprep.subr.mxu0 0.0
    %v874 = vand.u32 %v100, 4294901760
    %v875 = vsub.f32 %v100, %v874
    %v876 = vand.u32 %v875, 4294901760
    %877 = vmatpush1.msra.mxu0 %v876
    %878 = vmatprep.subr.mxu0 0.0
    %v879 = vand.u32 %v101, 4294901760
    %v880 = vsub.f32 %v101, %v879
    %v881 = vand.u32 %v880, 4294901760
    %882 = vmatpush1.msra.mxu0 %v881
    %883 = vmatprep.subr.mxu0 0.0
    %v884 = vand.u32 %v102, 4294901760
    %v885 = vsub.f32 %v102, %v884
    %v886 = vand.u32 %v885, 4294901760
    %887 = vmatpush1.msra.mxu0 %v886
    %888 = vmatprep.subr.mxu0 0.0
    %v889 = vand.u32 %v103, 4294901760
    %v890 = vsub.f32 %v103, %v889
    %v891 = vand.u32 %v890, 4294901760
    %892 = vmatpush1.msra.mxu0 %v891
    %893 = vmatprep.subr.mxu0 0.0
    %v894 = vand.u32 %v104, 4294901760
    %v895 = vsub.f32 %v104, %v894
    %v896 = vand.u32 %v895, 4294901760
    %897 = vmatpush1.msra.mxu0 %v896
    %898 = vmatprep.subr.mxu0 0.0
    %v899 = vand.u32 %v105, 4294901760
    %v900 = vsub.f32 %v105, %v899
    %v901 = vand.u32 %v900, 4294901760
    %902 = vmatpush1.msra.mxu0 %v901
    %903 = vmatprep.subr.mxu0 0.0
    %v904 = vand.u32 %v106, 4294901760
    %v905 = vsub.f32 %v106, %v904
    %v906 = vand.u32 %v905, 4294901760
    %907 = vmatpush1.msra.mxu0 %v906
    %908 = vmatprep.subr.mxu0 0.0
    %v909 = vand.u32 %v107, 4294901760
    %v910 = vsub.f32 %v107, %v909
    %v911 = vand.u32 %v910, 4294901760
    %912 = vmatpush1.msra.mxu0 %v911
    %913 = vmatprep.subr.mxu0 0.0
    %v914 = vand.u32 %v108, 4294901760
    %v915 = vsub.f32 %v108, %v914
    %v916 = vand.u32 %v915, 4294901760
    %917 = vmatpush1.msra.mxu0 %v916
    %918 = vmatprep.subr.mxu0 0.0
    %v919 = vand.u32 %v109, 4294901760
    %v920 = vsub.f32 %v109, %v919
    %v921 = vand.u32 %v920, 4294901760
    %922 = vmatpush1.msra.mxu0 %v921
    %923 = vmatprep.subr.mxu0 0.0
    %v924 = vand.u32 %v110, 4294901760
    %v925 = vsub.f32 %v110, %v924
    %v926 = vand.u32 %v925, 4294901760
    %927 = vmatpush1.msra.mxu0 %v926
    %928 = vmatprep.subr.mxu0 0.0
    %v929 = vand.u32 %v111, 4294901760
    %v930 = vsub.f32 %v111, %v929
    %v931 = vand.u32 %v930, 4294901760
    %932 = vmatpush1.msra.mxu0 %v931
    %933 = vmatprep.subr.mxu0 0.0
    %v934 = vand.u32 %v112, 4294901760
    %v935 = vsub.f32 %v112, %v934
    %v936 = vand.u32 %v935, 4294901760
    %937 = vmatpush1.msra.mxu0 %v936
    %938 = vmatprep.subr.mxu0 0.0
    %v939 = vand.u32 %v113, 4294901760
    %v940 = vsub.f32 %v113, %v939
    %v941 = vand.u32 %v940, 4294901760
    %942 = vmatpush1.msra.mxu0 %v941
    %943 = vmatprep.subr.mxu0 0.0
    %v944 = vand.u32 %v114, 4294901760
    %v945 = vsub.f32 %v114, %v944
    %v946 = vand.u32 %v945, 4294901760
    %947 = vmatpush1.msra.mxu0 %v946
    %948 = vmatprep.subr.mxu0 0.0
    %v949 = vand.u32 %v115, 4294901760
    %v950 = vsub.f32 %v115, %v949
    %v951 = vand.u32 %v950, 4294901760
    %952 = vmatpush1.msra.mxu0 %v951
    %953 = vmatprep.subr.mxu0 0.0
    %v954 = vand.u32 %v116, 4294901760
    %v955 = vsub.f32 %v116, %v954
    %v956 = vand.u32 %v955, 4294901760
    %957 = vmatpush1.msra.mxu0 %v956
    %958 = vmatprep.subr.mxu0 0.0
    %v959 = vand.u32 %v117, 4294901760
    %v960 = vsub.f32 %v117, %v959
    %v961 = vand.u32 %v960, 4294901760
    %962 = vmatpush1.msra.mxu0 %v961
    %963 = vmatprep.subr.mxu0 0.0
    %v964 = vand.u32 %v118, 4294901760
    %v965 = vsub.f32 %v118, %v964
    %v966 = vand.u32 %v965, 4294901760
    %967 = vmatpush1.msra.mxu0 %v966
    %968 = vmatprep.subr.mxu0 0.0
    %v969 = vand.u32 %v119, 4294901760
    %v970 = vsub.f32 %v119, %v969
    %v971 = vand.u32 %v970, 4294901760
    %972 = vmatpush1.msra.mxu0 %v971
    %v973 = vand.u32 %v81, 4294901760
    %974 = vmatprep.mubr.f32.mxu0 %v973
    %v975 = vand.u32 %v80, 4294901760
    %976 = vmatmul.mubr.f32.gmra.mrb[0].mxu0 %v975
    %v977 = vpop.f32.mrb[0].mxu0
    %v978 = vadd.f32 %v810, %v977
    %v979 = vpop.f32.mrb[0].mxu0
    %980 = vdwg.mxu0
    %981 = vmatprep.subr.mxu0 0.0
    %v982 = vand.u32 %v88, 4294901760
    %983 = vmatpush1.msra.mxu0 %v982
    %984 = vmatprep.subr.mxu0 0.0
    %v985 = vand.u32 %v89, 4294901760
    %986 = vmatpush1.msra.mxu0 %v985
    %987 = vmatprep.subr.mxu0 0.0
    %v988 = vand.u32 %v90, 4294901760
    %989 = vmatpush1.msra.mxu0 %v988
    %990 = vmatprep.subr.mxu0 0.0
    %v991 = vand.u32 %v91, 4294901760
    %992 = vmatpush1.msra.mxu0 %v991
    %993 = vmatprep.subr.mxu0 0.0
    %v994 = vand.u32 %v92, 4294901760
    %995 = vmatpush1.msra.mxu0 %v994
    %996 = vmatprep.subr.mxu0 0.0
    %v997 = vand.u32 %v93, 4294901760
    %998 = vmatpush1.msra.mxu0 %v997
    %999 = vmatprep.subr.mxu0 0.0
    %v1000 = vand.u32 %v94, 4294901760
    %1001 = vmatpush1.msra.mxu0 %v1000
    %1002 = vmatprep.subr.mxu0 0.0
    %v1003 = vand.u32 %v95, 4294901760
    %1004 = vmatpush1.msra.mxu0 %v1003
    %1005 = vmatprep.subr.mxu0 0.0
    %v1006 = vand.u32 %v96, 4294901760
    %1007 = vmatpush1.msra.mxu0 %v1006
    %1008 = vmatprep.subr.mxu0 0.0
    %v1009 = vand.u32 %v97, 4294901760
    %1010 = vmatpush1.msra.mxu0 %v1009
    %1011 = vmatprep.subr.mxu0 0.0
    %v1012 = vand.u32 %v98, 4294901760
    %1013 = vmatpush1.msra.mxu0 %v1012
    %1014 = vmatprep.subr.mxu0 0.0
    %v1015 = vand.u32 %v99, 4294901760
    %1016 = vmatpush1.msra.mxu0 %v1015
    %1017 = vmatprep.subr.mxu0 0.0
    %v1018 = vand.u32 %v100, 4294901760
    %1019 = vmatpush1.msra.mxu0 %v1018
    %1020 = vmatprep.subr.mxu0 0.0
    %v1021 = vand.u32 %v101, 4294901760
    %1022 = vmatpush1.msra.mxu0 %v1021
    %1023 = vmatprep.subr.mxu0 0.0
    %v1024 = vand.u32 %v102, 4294901760
    %1025 = vmatpush1.msra.mxu0 %v1024
    %1026 = vmatprep.subr.mxu0 0.0
    %v1027 = vand.u32 %v103, 4294901760
    %1028 = vmatpush1.msra.mxu0 %v1027
    %1029 = vmatprep.subr.mxu0 0.0
    %v1030 = vand.u32 %v104, 4294901760
    %1031 = vmatpush1.msra.mxu0 %v1030
    %1032 = vmatprep.subr.mxu0 0.0
    %v1033 = vand.u32 %v105, 4294901760
    %1034 = vmatpush1.msra.mxu0 %v1033
    %1035 = vmatprep.subr.mxu0 0.0
    %v1036 = vand.u32 %v106, 4294901760
    %1037 = vmatpush1.msra.mxu0 %v1036
    %1038 = vmatprep.subr.mxu0 0.0
    %v1039 = vand.u32 %v107, 4294901760
    %1040 = vmatpush1.msra.mxu0 %v1039
    %1041 = vmatprep.subr.mxu0 0.0
    %v1042 = vand.u32 %v108, 4294901760
    %1043 = vmatpush1.msra.mxu0 %v1042
    %1044 = vmatprep.subr.mxu0 0.0
    %v1045 = vand.u32 %v109, 4294901760
    %1046 = vmatpush1.msra.mxu0 %v1045
    %1047 = vmatprep.subr.mxu0 0.0
    %v1048 = vand.u32 %v110, 4294901760
    %1049 = vmatpush1.msra.mxu0 %v1048
    %1050 = vmatprep.subr.mxu0 0.0
    %v1051 = vand.u32 %v111, 4294901760
    %1052 = vmatpush1.msra.mxu0 %v1051
    %1053 = vmatprep.subr.mxu0 0.0
    %v1054 = vand.u32 %v112, 4294901760
    %1055 = vmatpush1.msra.mxu0 %v1054
    %1056 = vmatprep.subr.mxu0 0.0
    %v1057 = vand.u32 %v113, 4294901760
    %1058 = vmatpush1.msra.mxu0 %v1057
    %1059 = vmatprep.subr.mxu0 0.0
    %v1060 = vand.u32 %v114, 4294901760
    %1061 = vmatpush1.msra.mxu0 %v1060
    %1062 = vmatprep.subr.mxu0 0.0
    %v1063 = vand.u32 %v115, 4294901760
    %1064 = vmatpush1.msra.mxu0 %v1063
    %1065 = vmatprep.subr.mxu0 0.0
    %v1066 = vand.u32 %v116, 4294901760
    %1067 = vmatpush1.msra.mxu0 %v1066
    %1068 = vmatprep.subr.mxu0 0.0
    %v1069 = vand.u32 %v117, 4294901760
    %1070 = vmatpush1.msra.mxu0 %v1069
    %1071 = vmatprep.subr.mxu0 0.0
    %v1072 = vand.u32 %v118, 4294901760
    %1073 = vmatpush1.msra.mxu0 %v1072
    %1074 = vmatprep.subr.mxu0 0.0
    %v1075 = vand.u32 %v119, 4294901760
    %1076 = vmatpush1.msra.mxu0 %v1075
    %v1077 = vand.u32 %v81, 4294901760
    %1078 = vmatprep.mubr.f32.mxu0 %v1077
    %v1079 = vand.u32 %v80, 4294901760
    %1080 = vmatmul.mubr.f32.gmra.mrb[0].mxu0 %v1079
    %v1081 = vpop.f32.mrb[0].mxu0
    %v1082 = vadd.f32 %v978, %v1081
    %v1083 = vpop.f32.mrb[0].mxu0
    %1084 = vdwg.mxu0
    %1085 = vmatprep.subr.mxu0 0.0
    %v1086 = vand.u32 %v120, 4294901760
    %1087 = vmatpush1.msra.mxu0 %v1086
    %1088 = vmatprep.subr.mxu0 0.0
    %v1089 = vand.u32 %v121, 4294901760
    %1090 = vmatpush1.msra.mxu0 %v1089
    %1091 = vmatprep.subr.mxu0 0.0
    %v1092 = vand.u32 %v122, 4294901760
    %1093 = vmatpush1.msra.mxu0 %v1092
    %1094 = vmatprep.subr.mxu0 0.0
    %v1095 = vand.u32 %v123, 4294901760
    %1096 = vmatpush1.msra.mxu0 %v1095
    %1097 = vmatprep.subr.mxu0 0.0
    %v1098 = vand.u32 %v124, 4294901760
    %1099 = vmatpush1.msra.mxu0 %v1098
    %1100 = vmatprep.subr.mxu0 0.0
    %v1101 = vand.u32 %v125, 4294901760
    %1102 = vmatpush1.msra.mxu0 %v1101
    %1103 = vmatprep.subr.mxu0 0.0
    %v1104 = vand.u32 %v126, 4294901760
    %1105 = vmatpush1.msra.mxu0 %v1104
    %1106 = vmatprep.subr.mxu0 0.0
    %v1107 = vand.u32 %v127, 4294901760
    %1108 = vmatpush1.msra.mxu0 %v1107
    %1109 = vmatprep.subr.mxu0 0.0
    %v1110 = vand.u32 %v128, 4294901760
    %1111 = vmatpush1.msra.mxu0 %v1110
    %1112 = vmatprep.subr.mxu0 0.0
    %v1113 = vand.u32 %v129, 4294901760
    %1114 = vmatpush1.msra.mxu0 %v1113
    %1115 = vmatprep.subr.mxu0 0.0
    %v1116 = vand.u32 %v130, 4294901760
    %1117 = vmatpush1.msra.mxu0 %v1116
    %1118 = vmatprep.subr.mxu0 0.0
    %v1119 = vand.u32 %v131, 4294901760
    %1120 = vmatpush1.msra.mxu0 %v1119
    %1121 = vmatprep.subr.mxu0 0.0
    %v1122 = vand.u32 %v132, 4294901760
    %1123 = vmatpush1.msra.mxu0 %v1122
    %1124 = vmatprep.subr.mxu0 0.0
    %v1125 = vand.u32 %v133, 4294901760
    %1126 = vmatpush1.msra.mxu0 %v1125
    %1127 = vmatprep.subr.mxu0 0.0
    %v1128 = vand.u32 %v134, 4294901760
    %1129 = vmatpush1.msra.mxu0 %v1128
    %1130 = vmatprep.subr.mxu0 0.0
    %v1131 = vand.u32 %v135, 4294901760
    %1132 = vmatpush1.msra.mxu0 %v1131
    %1133 = vmatprep.subr.mxu0 0.0
    %v1134 = vand.u32 %v136, 4294901760
    %1135 = vmatpush1.msra.mxu0 %v1134
    %1136 = vmatprep.subr.mxu0 0.0
    %v1137 = vand.u32 %v137, 4294901760
    %1138 = vmatpush1.msra.mxu0 %v1137
    %1139 = vmatprep.subr.mxu0 0.0
    %v1140 = vand.u32 %v138, 4294901760
    %1141 = vmatpush1.msra.mxu0 %v1140
    %1142 = vmatprep.subr.mxu0 0.0
    %v1143 = vand.u32 %v139, 4294901760
    %1144 = vmatpush1.msra.mxu0 %v1143
    %1145 = vmatprep.subr.mxu0 0.0
    %v1146 = vand.u32 %v140, 4294901760
    %1147 = vmatpush1.msra.mxu0 %v1146
    %1148 = vmatprep.subr.mxu0 0.0
    %v1149 = vand.u32 %v141, 4294901760
    %1150 = vmatpush1.msra.mxu0 %v1149
    %1151 = vmatprep.subr.mxu0 0.0
    %v1152 = vand.u32 %v142, 4294901760
    %1153 = vmatpush1.msra.mxu0 %v1152
    %1154 = vmatprep.subr.mxu0 0.0
    %v1155 = vand.u32 %v143, 4294901760
    %1156 = vmatpush1.msra.mxu0 %v1155
    %1157 = vmatprep.subr.mxu0 0.0
    %v1158 = vand.u32 %v144, 4294901760
    %1159 = vmatpush1.msra.mxu0 %v1158
    %1160 = vmatprep.subr.mxu0 0.0
    %v1161 = vand.u32 %v145, 4294901760
    %1162 = vmatpush1.msra.mxu0 %v1161
    %1163 = vmatprep.subr.mxu0 0.0
    %v1164 = vand.u32 %v146, 4294901760
    %1165 = vmatpush1.msra.mxu0 %v1164
    %1166 = vmatprep.subr.mxu0 0.0
    %v1167 = vand.u32 %v147, 4294901760
    %1168 = vmatpush1.msra.mxu0 %v1167
    %1169 = vmatprep.subr.mxu0 0.0
    %v1170 = vand.u32 %v148, 4294901760
    %1171 = vmatpush1.msra.mxu0 %v1170
    %1172 = vmatprep.subr.mxu0 0.0
    %v1173 = vand.u32 %v149, 4294901760
    %1174 = vmatpush1.msra.mxu0 %v1173
    %1175 = vmatprep.subr.mxu0 0.0
    %v1176 = vand.u32 %v150, 4294901760
    %1177 = vmatpush1.msra.mxu0 %v1176
    %1178 = vmatprep.subr.mxu0 0.0
    %v1179 = vand.u32 %v151, 4294901760
    %1180 = vmatpush1.msra.mxu0 %v1179
    %v1181 = vand.u32 %v83, 4294901760
    %v1182 = vsub.f32 %v83, %v1181
    %v1183 = vand.u32 %v1182, 4294901760
    %v1184 = vsub.f32 %v1182, %v1183
    %v1185 = vand.u32 %v1184, 4294901760
    %1186 = vmatprep.mubr.f32.mxu0 %v1185
    %v1187 = vand.u32 %v82, 4294901760
    %v1188 = vsub.f32 %v82, %v1187
    %v1189 = vand.u32 %v1188, 4294901760
    %v1190 = vsub.f32 %v1188, %v1189
    %v1191 = vand.u32 %v1190, 4294901760
    %1192 = vmatmul.mubr.f32.gmra.mrb[0].mxu0 %v1191
    %v1193 = vpop.f32.mrb[0].mxu0
    %v1194 = vadd.f32 %v1082, %v1193
    %v1195 = vpop.f32.mrb[0].mxu0
    %1196 = vdwg.mxu0
    %1197 = vmatprep.subr.mxu0 0.0
    %v1198 = vand.u32 %v120, 4294901760
    %v1199 = vsub.f32 %v120, %v1198
    %v1200 = vand.u32 %v1199, 4294901760
    %v1201 = vsub.f32 %v1199, %v1200
    %v1202 = vand.u32 %v1201, 4294901760
    %1203 = vmatpush1.msra.mxu0 %v1202
    %1204 = vmatprep.subr.mxu0 0.0
    %v1205 = vand.u32 %v121, 4294901760
    %v1206 = vsub.f32 %v121, %v1205
    %v1207 = vand.u32 %v1206, 4294901760
    %v1208 = vsub.f32 %v1206, %v1207
    %v1209 = vand.u32 %v1208, 4294901760
    %1210 = vmatpush1.msra.mxu0 %v1209
    %1211 = vmatprep.subr.mxu0 0.0
    %v1212 = vand.u32 %v122, 4294901760
    %v1213 = vsub.f32 %v122, %v1212
    %v1214 = vand.u32 %v1213, 4294901760
    %v1215 = vsub.f32 %v1213, %v1214
    %v1216 = vand.u32 %v1215, 4294901760
    %1217 = vmatpush1.msra.mxu0 %v1216
    %1218 = vmatprep.subr.mxu0 0.0
    %v1219 = vand.u32 %v123, 4294901760
    %v1220 = vsub.f32 %v123, %v1219
    %v1221 = vand.u32 %v1220, 4294901760
    %v1222 = vsub.f32 %v1220, %v1221
    %v1223 = vand.u32 %v1222, 4294901760
    %1224 = vmatpush1.msra.mxu0 %v1223
    %1225 = vmatprep.subr.mxu0 0.0
    %v1226 = vand.u32 %v124, 4294901760
    %v1227 = vsub.f32 %v124, %v1226
    %v1228 = vand.u32 %v1227, 4294901760
    %v1229 = vsub.f32 %v1227, %v1228
    %v1230 = vand.u32 %v1229, 4294901760
    %1231 = vmatpush1.msra.mxu0 %v1230
    %1232 = vmatprep.subr.mxu0 0.0
    %v1233 = vand.u32 %v125, 4294901760
    %v1234 = vsub.f32 %v125, %v1233
    %v1235 = vand.u32 %v1234, 4294901760
    %v1236 = vsub.f32 %v1234, %v1235
    %v1237 = vand.u32 %v1236, 4294901760
    %1238 = vmatpush1.msra.mxu0 %v1237
    %1239 = vmatprep.subr.mxu0 0.0
    %v1240 = vand.u32 %v126, 4294901760
    %v1241 = vsub.f32 %v126, %v1240
    %v1242 = vand.u32 %v1241, 4294901760
    %v1243 = vsub.f32 %v1241, %v1242
    %v1244 = vand.u32 %v1243, 4294901760
    %1245 = vmatpush1.msra.mxu0 %v1244
    %1246 = vmatprep.subr.mxu0 0.0
    %v1247 = vand.u32 %v127, 4294901760
    %v1248 = vsub.f32 %v127, %v1247
    %v1249 = vand.u32 %v1248, 4294901760
    %v1250 = vsub.f32 %v1248, %v1249
    %v1251 = vand.u32 %v1250, 4294901760
    %1252 = vmatpush1.msra.mxu0 %v1251
    %1253 = vmatprep.subr.mxu0 0.0
    %v1254 = vand.u32 %v128, 4294901760
    %v1255 = vsub.f32 %v128, %v1254
    %v1256 = vand.u32 %v1255, 4294901760
    %v1257 = vsub.f32 %v1255, %v1256
    %v1258 = vand.u32 %v1257, 4294901760
    %1259 = vmatpush1.msra.mxu0 %v1258
    %1260 = vmatprep.subr.mxu0 0.0
    %v1261 = vand.u32 %v129, 4294901760
    %v1262 = vsub.f32 %v129, %v1261
    %v1263 = vand.u32 %v1262, 4294901760
    %v1264 = vsub.f32 %v1262, %v1263
    %v1265 = vand.u32 %v1264, 4294901760
    %1266 = vmatpush1.msra.mxu0 %v1265
    %1267 = vmatprep.subr.mxu0 0.0
    %v1268 = vand.u32 %v130, 4294901760
    %v1269 = vsub.f32 %v130, %v1268
    %v1270 = vand.u32 %v1269, 4294901760
    %v1271 = vsub.f32 %v1269, %v1270
    %v1272 = vand.u32 %v1271, 4294901760
    %1273 = vmatpush1.msra.mxu0 %v1272
    %1274 = vmatprep.subr.mxu0 0.0
    %v1275 = vand.u32 %v131, 4294901760
    %v1276 = vsub.f32 %v131, %v1275
    %v1277 = vand.u32 %v1276, 4294901760
    %v1278 = vsub.f32 %v1276, %v1277
    %v1279 = vand.u32 %v1278, 4294901760
    %1280 = vmatpush1.msra.mxu0 %v1279
    %1281 = vmatprep.subr.mxu0 0.0
    %v1282 = vand.u32 %v132, 4294901760
    %v1283 = vsub.f32 %v132, %v1282
    %v1284 = vand.u32 %v1283, 4294901760
    %v1285 = vsub.f32 %v1283, %v1284
    %v1286 = vand.u32 %v1285, 4294901760
    %1287 = vmatpush1.msra.mxu0 %v1286
    %1288 = vmatprep.subr.mxu0 0.0
    %v1289 = vand.u32 %v133, 4294901760
    %v1290 = vsub.f32 %v133, %v1289
    %v1291 = vand.u32 %v1290, 4294901760
    %v1292 = vsub.f32 %v1290, %v1291
    %v1293 = vand.u32 %v1292, 4294901760
    %1294 = vmatpush1.msra.mxu0 %v1293
    %1295 = vmatprep.subr.mxu0 0.0
    %v1296 = vand.u32 %v134, 4294901760
    %v1297 = vsub.f32 %v134, %v1296
    %v1298 = vand.u32 %v1297, 4294901760
    %v1299 = vsub.f32 %v1297, %v1298
    %v1300 = vand.u32 %v1299, 4294901760
    %1301 = vmatpush1.msra.mxu0 %v1300
    %1302 = vmatprep.subr.mxu0 0.0
    %v1303 = vand.u32 %v135, 4294901760
    %v1304 = vsub.f32 %v135, %v1303
    %v1305 = vand.u32 %v1304, 4294901760
    %v1306 = vsub.f32 %v1304, %v1305
    %v1307 = vand.u32 %v1306, 4294901760
    %1308 = vmatpush1.msra.mxu0 %v1307
    %1309 = vmatprep.subr.mxu0 0.0
    %v1310 = vand.u32 %v136, 4294901760
    %v1311 = vsub.f32 %v136, %v1310
    %v1312 = vand.u32 %v1311, 4294901760
    %v1313 = vsub.f32 %v1311, %v1312
    %v1314 = vand.u32 %v1313, 4294901760
    %1315 = vmatpush1.msra.mxu0 %v1314
    %1316 = vmatprep.subr.mxu0 0.0
    %v1317 = vand.u32 %v137, 4294901760
    %v1318 = vsub.f32 %v137, %v1317
    %v1319 = vand.u32 %v1318, 4294901760
    %v1320 = vsub.f32 %v1318, %v1319
    %v1321 = vand.u32 %v1320, 4294901760
    %1322 = vmatpush1.msra.mxu0 %v1321
    %1323 = vmatprep.subr.mxu0 0.0
    %v1324 = vand.u32 %v138, 4294901760
    %v1325 = vsub.f32 %v138, %v1324
    %v1326 = vand.u32 %v1325, 4294901760
    %v1327 = vsub.f32 %v1325, %v1326
    %v1328 = vand.u32 %v1327, 4294901760
    %1329 = vmatpush1.msra.mxu0 %v1328
    %1330 = vmatprep.subr.mxu0 0.0
    %v1331 = vand.u32 %v139, 4294901760
    %v1332 = vsub.f32 %v139, %v1331
    %v1333 = vand.u32 %v1332, 4294901760
    %v1334 = vsub.f32 %v1332, %v1333
    %v1335 = vand.u32 %v1334, 4294901760
    %1336 = vmatpush1.msra.mxu0 %v1335
    %1337 = vmatprep.subr.mxu0 0.0
    %v1338 = vand.u32 %v140, 4294901760
    %v1339 = vsub.f32 %v140, %v1338
    %v1340 = vand.u32 %v1339, 4294901760
    %v1341 = vsub.f32 %v1339, %v1340
    %v1342 = vand.u32 %v1341, 4294901760
    %1343 = vmatpush1.msra.mxu0 %v1342
    %1344 = vmatprep.subr.mxu0 0.0
    %v1345 = vand.u32 %v141, 4294901760
    %v1346 = vsub.f32 %v141, %v1345
    %v1347 = vand.u32 %v1346, 4294901760
    %v1348 = vsub.f32 %v1346, %v1347
    %v1349 = vand.u32 %v1348, 4294901760
    %1350 = vmatpush1.msra.mxu0 %v1349
    %1351 = vmatprep.subr.mxu0 0.0
    %v1352 = vand.u32 %v142, 4294901760
    %v1353 = vsub.f32 %v142, %v1352
    %v1354 = vand.u32 %v1353, 4294901760
    %v1355 = vsub.f32 %v1353, %v1354
    %v1356 = vand.u32 %v1355, 4294901760
    %1357 = vmatpush1.msra.mxu0 %v1356
    %1358 = vmatprep.subr.mxu0 0.0
    %v1359 = vand.u32 %v143, 4294901760
    %v1360 = vsub.f32 %v143, %v1359
    %v1361 = vand.u32 %v1360, 4294901760
    %v1362 = vsub.f32 %v1360, %v1361
    %v1363 = vand.u32 %v1362, 4294901760
    %1364 = vmatpush1.msra.mxu0 %v1363
    %1365 = vmatprep.subr.mxu0 0.0
    %v1366 = vand.u32 %v144, 4294901760
    %v1367 = vsub.f32 %v144, %v1366
    %v1368 = vand.u32 %v1367, 4294901760
    %v1369 = vsub.f32 %v1367, %v1368
    %v1370 = vand.u32 %v1369, 4294901760
    %1371 = vmatpush1.msra.mxu0 %v1370
    %1372 = vmatprep.subr.mxu0 0.0
    %v1373 = vand.u32 %v145, 4294901760
    %v1374 = vsub.f32 %v145, %v1373
    %v1375 = vand.u32 %v1374, 4294901760
    %v1376 = vsub.f32 %v1374, %v1375
    %v1377 = vand.u32 %v1376, 4294901760
    %1378 = vmatpush1.msra.mxu0 %v1377
    %1379 = vmatprep.subr.mxu0 0.0
    %v1380 = vand.u32 %v146, 4294901760
    %v1381 = vsub.f32 %v146, %v1380
    %v1382 = vand.u32 %v1381, 4294901760
    %v1383 = vsub.f32 %v1381, %v1382
    %v1384 = vand.u32 %v1383, 4294901760
    %1385 = vmatpush1.msra.mxu0 %v1384
    %1386 = vmatprep.subr.mxu0 0.0
    %v1387 = vand.u32 %v147, 4294901760
    %v1388 = vsub.f32 %v147, %v1387
    %v1389 = vand.u32 %v1388, 4294901760
    %v1390 = vsub.f32 %v1388, %v1389
    %v1391 = vand.u32 %v1390, 4294901760
    %1392 = vmatpush1.msra.mxu0 %v1391
    %1393 = vmatprep.subr.mxu0 0.0
    %v1394 = vand.u32 %v148, 4294901760
    %v1395 = vsub.f32 %v148, %v1394
    %v1396 = vand.u32 %v1395, 4294901760
    %v1397 = vsub.f32 %v1395, %v1396
    %v1398 = vand.u32 %v1397, 4294901760
    %1399 = vmatpush1.msra.mxu0 %v1398
    %1400 = vmatprep.subr.mxu0 0.0
    %v1401 = vand.u32 %v149, 4294901760
    %v1402 = vsub.f32 %v149, %v1401
    %v1403 = vand.u32 %v1402, 4294901760
    %v1404 = vsub.f32 %v1402, %v1403
    %v1405 = vand.u32 %v1404, 4294901760
    %1406 = vmatpush1.msra.mxu0 %v1405
    %1407 = vmatprep.subr.mxu0 0.0
    %v1408 = vand.u32 %v150, 4294901760
    %v1409 = vsub.f32 %v150, %v1408
    %v1410 = vand.u32 %v1409, 4294901760
    %v1411 = vsub.f32 %v1409, %v1410
    %v1412 = vand.u32 %v1411, 4294901760
    %1413 = vmatpush1.msra.mxu0 %v1412
    %1414 = vmatprep.subr.mxu0 0.0
    %v1415 = vand.u32 %v151, 4294901760
    %v1416 = vsub.f32 %v151, %v1415
    %v1417 = vand.u32 %v1416, 4294901760
    %v1418 = vsub.f32 %v1416, %v1417
    %v1419 = vand.u32 %v1418, 4294901760
    %1420 = vmatpush1.msra.mxu0 %v1419
    %v1421 = vand.u32 %v83, 4294901760
    %1422 = vmatprep.mubr.f32.mxu0 %v1421
    %v1423 = vand.u32 %v82, 4294901760
    %1424 = vmatmul.mubr.f32.gmra.mrb[0].mxu0 %v1423
    %v1425 = vpop.f32.mrb[0].mxu0
    %v1426 = vadd.f32 %v1194, %v1425
    %v1427 = vpop.f32.mrb[0].mxu0
    %1428 = vdwg.mxu0
    %1429 = vmatprep.subr.mxu0 0.0
    %v1430 = vand.u32 %v120, 4294901760
    %v1431 = vsub.f32 %v120, %v1430
    %1432 = vmatpush1.msra.mxu0 %v1431
    %1433 = vmatprep.subr.mxu0 0.0
    %v1434 = vand.u32 %v121, 4294901760
    %v1435 = vsub.f32 %v121, %v1434
    %1436 = vmatpush1.msra.mxu0 %v1435
    %1437 = vmatprep.subr.mxu0 0.0
    %v1438 = vand.u32 %v122, 4294901760
    %v1439 = vsub.f32 %v122, %v1438
    %1440 = vmatpush1.msra.mxu0 %v1439
    %1441 = vmatprep.subr.mxu0 0.0
    %v1442 = vand.u32 %v123, 4294901760
    %v1443 = vsub.f32 %v123, %v1442
    %1444 = vmatpush1.msra.mxu0 %v1443
    %1445 = vmatprep.subr.mxu0 0.0
    %v1446 = vand.u32 %v124, 4294901760
    %v1447 = vsub.f32 %v124, %v1446
    %1448 = vmatpush1.msra.mxu0 %v1447
    %1449 = vmatprep.subr.mxu0 0.0
    %v1450 = vand.u32 %v125, 4294901760
    %v1451 = vsub.f32 %v125, %v1450
    %1452 = vmatpush1.msra.mxu0 %v1451
    %1453 = vmatprep.subr.mxu0 0.0
    %v1454 = vand.u32 %v126, 4294901760
    %v1455 = vsub.f32 %v126, %v1454
    %1456 = vmatpush1.msra.mxu0 %v1455
    %1457 = vmatprep.subr.mxu0 0.0
    %v1458 = vand.u32 %v127, 4294901760
    %v1459 = vsub.f32 %v127, %v1458
    %1460 = vmatpush1.msra.mxu0 %v1459
    %1461 = vmatprep.subr.mxu0 0.0
    %v1462 = vand.u32 %v128, 4294901760
    %v1463 = vsub.f32 %v128, %v1462
    %1464 = vmatpush1.msra.mxu0 %v1463
    %1465 = vmatprep.subr.mxu0 0.0
    %v1466 = vand.u32 %v129, 4294901760
    %v1467 = vsub.f32 %v129, %v1466
    %1468 = vmatpush1.msra.mxu0 %v1467
    %1469 = vmatprep.subr.mxu0 0.0
    %v1470 = vand.u32 %v130, 4294901760
    %v1471 = vsub.f32 %v130, %v1470
    %1472 = vmatpush1.msra.mxu0 %v1471
    %1473 = vmatprep.subr.mxu0 0.0
    %v1474 = vand.u32 %v131, 4294901760
    %v1475 = vsub.f32 %v131, %v1474
    %1476 = vmatpush1.msra.mxu0 %v1475
    %1477 = vmatprep.subr.mxu0 0.0
    %v1478 = vand.u32 %v132, 4294901760
    %v1479 = vsub.f32 %v132, %v1478
    %1480 = vmatpush1.msra.mxu0 %v1479
    %1481 = vmatprep.subr.mxu0 0.0
    %v1482 = vand.u32 %v133, 4294901760
    %v1483 = vsub.f32 %v133, %v1482
    %1484 = vmatpush1.msra.mxu0 %v1483
    %1485 = vmatprep.subr.mxu0 0.0
    %v1486 = vand.u32 %v134, 4294901760
    %v1487 = vsub.f32 %v134, %v1486
    %1488 = vmatpush1.msra.mxu0 %v1487
    %1489 = vmatprep.subr.mxu0 0.0
    %v1490 = vand.u32 %v135, 4294901760
    %v1491 = vsub.f32 %v135, %v1490
    %1492 = vmatpush1.msra.mxu0 %v1491
    %1493 = vmatprep.subr.mxu0 0.0
    %v1494 = vand.u32 %v136, 4294901760
    %v1495 = vsub.f32 %v136, %v1494
    %1496 = vmatpush1.msra.mxu0 %v1495
    %1497 = vmatprep.subr.mxu0 0.0
    %v1498 = vand.u32 %v137, 4294901760
    %v1499 = vsub.f32 %v137, %v1498
    %1500 = vmatpush1.msra.mxu0 %v1499
    %1501 = vmatprep.subr.mxu0 0.0
    %v1502 = vand.u32 %v138, 4294901760
    %v1503 = vsub.f32 %v138, %v1502
    %1504 = vmatpush1.msra.mxu0 %v1503
    %1505 = vmatprep.subr.mxu0 0.0
    %v1506 = vand.u32 %v139, 4294901760
    %v1507 = vsub.f32 %v139, %v1506
    %1508 = vmatpush1.msra.mxu0 %v1507
    %1509 = vmatprep.subr.mxu0 0.0
    %v1510 = vand.u32 %v140, 4294901760
    %v1511 = vsub.f32 %v140, %v1510
    %1512 = vmatpush1.msra.mxu0 %v1511
    %1513 = vmatprep.subr.mxu0 0.0
    %v1514 = vand.u32 %v141, 4294901760
    %v1515 = vsub.f32 %v141, %v1514
    %1516 = vmatpush1.msra.mxu0 %v1515
    %1517 = vmatprep.subr.mxu0 0.0
    %v1518 = vand.u32 %v142, 4294901760
    %v1519 = vsub.f32 %v142, %v1518
    %1520 = vmatpush1.msra.mxu0 %v1519
    %1521 = vmatprep.subr.mxu0 0.0
    %v1522 = vand.u32 %v143, 4294901760
    %v1523 = vsub.f32 %v143, %v1522
    %1524 = vmatpush1.msra.mxu0 %v1523
    %1525 = vmatprep.subr.mxu0 0.0
    %v1526 = vand.u32 %v144, 4294901760
    %v1527 = vsub.f32 %v144, %v1526
    %1528 = vmatpush1.msra.mxu0 %v1527
    %1529 = vmatprep.subr.mxu0 0.0
    %v1530 = vand.u32 %v145, 4294901760
    %v1531 = vsub.f32 %v145, %v1530
    %1532 = vmatpush1.msra.mxu0 %v1531
    %1533 = vmatprep.subr.mxu0 0.0
    %v1534 = vand.u32 %v146, 4294901760
    %v1535 = vsub.f32 %v146, %v1534
    %1536 = vmatpush1.msra.mxu0 %v1535
    %1537 = vmatprep.subr.mxu0 0.0
    %v1538 = vand.u32 %v147, 4294901760
    %v1539 = vsub.f32 %v147, %v1538
    %1540 = vmatpush1.msra.mxu0 %v1539
    %1541 = vmatprep.subr.mxu0 0.0
    %v1542 = vand.u32 %v148, 4294901760
    %v1543 = vsub.f32 %v148, %v1542
    %1544 = vmatpush1.msra.mxu0 %v1543
    %1545 = vmatprep.subr.mxu0 0.0
    %v1546 = vand.u32 %v149, 4294901760
    %v1547 = vsub.f32 %v149, %v1546
    %1548 = vmatpush1.msra.mxu0 %v1547
    %1549 = vmatprep.subr.mxu0 0.0
    %v1550 = vand.u32 %v150, 4294901760
    %v1551 = vsub.f32 %v150, %v1550
    %1552 = vmatpush1.msra.mxu0 %v1551
    %1553 = vmatprep.subr.mxu0 0.0
    %v1554 = vand.u32 %v151, 4294901760
    %v1555 = vsub.f32 %v151, %v1554
    %1556 = vmatpush1.msra.mxu0 %v1555
    %v1557 = vand.u32 %v83, 4294901760
    %v1558 = vsub.f32 %v83, %v1557
    %1559 = vmatprep.mubr.f32.mxu0 %v1558
    %v1560 = vand.u32 %v82, 4294901760
    %v1561 = vsub.f32 %v82, %v1560
    %1562 = vmatmul.mubr.f32.gmra.mrb[0].mxu0 %v1561
    %v1563 = vpop.f32.mrb[0].mxu0
    %v1564 = vadd.f32 %v1426, %v1563
    %v1565 = vpop.f32.mrb[0].mxu0
    %1566 = vdwg.mxu0
    %1567 = vmatprep.subr.mxu0 0.0
    %v1568 = vand.u32 %v120, 4294901760
    %1569 = vmatpush1.msra.mxu0 %v1568
    %1570 = vmatprep.subr.mxu0 0.0
    %v1571 = vand.u32 %v121, 4294901760
    %1572 = vmatpush1.msra.mxu0 %v1571
    %1573 = vmatprep.subr.mxu0 0.0
    %v1574 = vand.u32 %v122, 4294901760
    %1575 = vmatpush1.msra.mxu0 %v1574
    %1576 = vmatprep.subr.mxu0 0.0
    %v1577 = vand.u32 %v123, 4294901760
    %1578 = vmatpush1.msra.mxu0 %v1577
    %1579 = vmatprep.subr.mxu0 0.0
    %v1580 = vand.u32 %v124, 4294901760
    %1581 = vmatpush1.msra.mxu0 %v1580
    %1582 = vmatprep.subr.mxu0 0.0
    %v1583 = vand.u32 %v125, 4294901760
    %1584 = vmatpush1.msra.mxu0 %v1583
    %1585 = vmatprep.subr.mxu0 0.0
    %v1586 = vand.u32 %v126, 4294901760
    %1587 = vmatpush1.msra.mxu0 %v1586
    %1588 = vmatprep.subr.mxu0 0.0
    %v1589 = vand.u32 %v127, 4294901760
    %1590 = vmatpush1.msra.mxu0 %v1589
    %1591 = vmatprep.subr.mxu0 0.0
    %v1592 = vand.u32 %v128, 4294901760
    %1593 = vmatpush1.msra.mxu0 %v1592
    %1594 = vmatprep.subr.mxu0 0.0
    %v1595 = vand.u32 %v129, 4294901760
    %1596 = vmatpush1.msra.mxu0 %v1595
    %1597 = vmatprep.subr.mxu0 0.0
    %v1598 = vand.u32 %v130, 4294901760
    %1599 = vmatpush1.msra.mxu0 %v1598
    %1600 = vmatprep.subr.mxu0 0.0
    %v1601 = vand.u32 %v131, 4294901760
    %1602 = vmatpush1.msra.mxu0 %v1601
    %1603 = vmatprep.subr.mxu0 0.0
    %v1604 = vand.u32 %v132, 4294901760
    %1605 = vmatpush1.msra.mxu0 %v1604
    %1606 = vmatprep.subr.mxu0 0.0
    %v1607 = vand.u32 %v133, 4294901760
    %1608 = vmatpush1.msra.mxu0 %v1607
    %1609 = vmatprep.subr.mxu0 0.0
    %v1610 = vand.u32 %v134, 4294901760
    %1611 = vmatpush1.msra.mxu0 %v1610
    %1612 = vmatprep.subr.mxu0 0.0
    %v1613 = vand.u32 %v135, 4294901760
    %1614 = vmatpush1.msra.mxu0 %v1613
    %1615 = vmatprep.subr.mxu0 0.0
    %v1616 = vand.u32 %v136, 4294901760
    %1617 = vmatpush1.msra.mxu0 %v1616
    %1618 = vmatprep.subr.mxu0 0.0
    %v1619 = vand.u32 %v137, 4294901760
    %1620 = vmatpush1.msra.mxu0 %v1619
    %1621 = vmatprep.subr.mxu0 0.0
    %v1622 = vand.u32 %v138, 4294901760
    %1623 = vmatpush1.msra.mxu0 %v1622
    %1624 = vmatprep.subr.mxu0 0.0
    %v1625 = vand.u32 %v139, 4294901760
    %1626 = vmatpush1.msra.mxu0 %v1625
    %1627 = vmatprep.subr.mxu0 0.0
    %v1628 = vand.u32 %v140, 4294901760
    %1629 = vmatpush1.msra.mxu0 %v1628
    %1630 = vmatprep.subr.mxu0 0.0
    %v1631 = vand.u32 %v141, 4294901760
    %1632 = vmatpush1.msra.mxu0 %v1631
    %1633 = vmatprep.subr.mxu0 0.0
    %v1634 = vand.u32 %v142, 4294901760
    %1635 = vmatpush1.msra.mxu0 %v1634
    %1636 = vmatprep.subr.mxu0 0.0
    %v1637 = vand.u32 %v143, 4294901760
    %1638 = vmatpush1.msra.mxu0 %v1637
    %1639 = vmatprep.subr.mxu0 0.0
    %v1640 = vand.u32 %v144, 4294901760
    %1641 = vmatpush1.msra.mxu0 %v1640
    %1642 = vmatprep.subr.mxu0 0.0
    %v1643 = vand.u32 %v145, 4294901760
    %1644 = vmatpush1.msra.mxu0 %v1643
    %1645 = vmatprep.subr.mxu0 0.0
    %v1646 = vand.u32 %v146, 4294901760
    %1647 = vmatpush1.msra.mxu0 %v1646
    %1648 = vmatprep.subr.mxu0 0.0
    %v1649 = vand.u32 %v147, 4294901760
    %1650 = vmatpush1.msra.mxu0 %v1649
    %1651 = vmatprep.subr.mxu0 0.0
    %v1652 = vand.u32 %v148, 4294901760
    %1653 = vmatpush1.msra.mxu0 %v1652
    %1654 = vmatprep.subr.mxu0 0.0
    %v1655 = vand.u32 %v149, 4294901760
    %1656 = vmatpush1.msra.mxu0 %v1655
    %1657 = vmatprep.subr.mxu0 0.0
    %v1658 = vand.u32 %v150, 4294901760
    %1659 = vmatpush1.msra.mxu0 %v1658
    %1660 = vmatprep.subr.mxu0 0.0
    %v1661 = vand.u32 %v151, 4294901760
    %1662 = vmatpush1.msra.mxu0 %v1661
    %v1663 = vand.u32 %v83, 4294901760
    %v1664 = vsub.f32 %v83, %v1663
    %v1665 = vand.u32 %v1664, 4294901760
    %1666 = vmatprep.mubr.f32.mxu0 %v1665
    %v1667 = vand.u32 %v82, 4294901760
    %v1668 = vsub.f32 %v82, %v1667
    %v1669 = vand.u32 %v1668, 4294901760
    %1670 = vmatmul.mubr.f32.gmra.mrb[0].mxu0 %v1669
    %v1671 = vpop.f32.mrb[0].mxu0
    %v1672 = vadd.f32 %v1564, %v1671
    %v1673 = vpop.f32.mrb[0].mxu0
    %1674 = vdwg.mxu0
    %1675 = vmatprep.subr.mxu0 0.0
    %v1676 = vand.u32 %v120, 4294901760
    %v1677 = vsub.f32 %v120, %v1676
    %v1678 = vand.u32 %v1677, 4294901760
    %1679 = vmatpush1.msra.mxu0 %v1678
    %1680 = vmatprep.subr.mxu0 0.0
    %v1681 = vand.u32 %v121, 4294901760
    %v1682 = vsub.f32 %v121, %v1681
    %v1683 = vand.u32 %v1682, 4294901760
    %1684 = vmatpush1.msra.mxu0 %v1683
    %1685 = vmatprep.subr.mxu0 0.0
    %v1686 = vand.u32 %v122, 4294901760
    %v1687 = vsub.f32 %v122, %v1686
    %v1688 = vand.u32 %v1687, 4294901760
    %1689 = vmatpush1.msra.mxu0 %v1688
    %1690 = vmatprep.subr.mxu0 0.0
    %v1691 = vand.u32 %v123, 4294901760
    %v1692 = vsub.f32 %v123, %v1691
    %v1693 = vand.u32 %v1692, 4294901760
    %1694 = vmatpush1.msra.mxu0 %v1693
    %1695 = vmatprep.subr.mxu0 0.0
    %v1696 = vand.u32 %v124, 4294901760
    %v1697 = vsub.f32 %v124, %v1696
    %v1698 = vand.u32 %v1697, 4294901760
    %1699 = vmatpush1.msra.mxu0 %v1698
    %1700 = vmatprep.subr.mxu0 0.0
    %v1701 = vand.u32 %v125, 4294901760
    %v1702 = vsub.f32 %v125, %v1701
    %v1703 = vand.u32 %v1702, 4294901760
    %1704 = vmatpush1.msra.mxu0 %v1703
    %1705 = vmatprep.subr.mxu0 0.0
    %v1706 = vand.u32 %v126, 4294901760
    %v1707 = vsub.f32 %v126, %v1706
    %v1708 = vand.u32 %v1707, 4294901760
    %1709 = vmatpush1.msra.mxu0 %v1708
    %1710 = vmatprep.subr.mxu0 0.0
    %v1711 = vand.u32 %v127, 4294901760
    %v1712 = vsub.f32 %v127, %v1711
    %v1713 = vand.u32 %v1712, 4294901760
    %1714 = vmatpush1.msra.mxu0 %v1713
    %1715 = vmatprep.subr.mxu0 0.0
    %v1716 = vand.u32 %v128, 4294901760
    %v1717 = vsub.f32 %v128, %v1716
    %v1718 = vand.u32 %v1717, 4294901760
    %1719 = vmatpush1.msra.mxu0 %v1718
    %1720 = vmatprep.subr.mxu0 0.0
    %v1721 = vand.u32 %v129, 4294901760
    %v1722 = vsub.f32 %v129, %v1721
    %v1723 = vand.u32 %v1722, 4294901760
    %1724 = vmatpush1.msra.mxu0 %v1723
    %1725 = vmatprep.subr.mxu0 0.0
    %v1726 = vand.u32 %v130, 4294901760
    %v1727 = vsub.f32 %v130, %v1726
    %v1728 = vand.u32 %v1727, 4294901760
    %1729 = vmatpush1.msra.mxu0 %v1728
    %1730 = vmatprep.subr.mxu0 0.0
    %v1731 = vand.u32 %v131, 4294901760
    %v1732 = vsub.f32 %v131, %v1731
    %v1733 = vand.u32 %v1732, 4294901760
    %1734 = vmatpush1.msra.mxu0 %v1733
    %1735 = vmatprep.subr.mxu0 0.0
    %v1736 = vand.u32 %v132, 4294901760
    %v1737 = vsub.f32 %v132, %v1736
    %v1738 = vand.u32 %v1737, 4294901760
    %1739 = vmatpush1.msra.mxu0 %v1738
    %1740 = vmatprep.subr.mxu0 0.0
    %v1741 = vand.u32 %v133, 4294901760
    %v1742 = vsub.f32 %v133, %v1741
    %v1743 = vand.u32 %v1742, 4294901760
    %1744 = vmatpush1.msra.mxu0 %v1743
    %1745 = vmatprep.subr.mxu0 0.0
    %v1746 = vand.u32 %v134, 4294901760
    %v1747 = vsub.f32 %v134, %v1746
    %v1748 = vand.u32 %v1747, 4294901760
    %1749 = vmatpush1.msra.mxu0 %v1748
    %1750 = vmatprep.subr.mxu0 0.0
    %v1751 = vand.u32 %v135, 4294901760
    %v1752 = vsub.f32 %v135, %v1751
    %v1753 = vand.u32 %v1752, 4294901760
    %1754 = vmatpush1.msra.mxu0 %v1753
    %1755 = vmatprep.subr.mxu0 0.0
    %v1756 = vand.u32 %v136, 4294901760
    %v1757 = vsub.f32 %v136, %v1756
    %v1758 = vand.u32 %v1757, 4294901760
    %1759 = vmatpush1.msra.mxu0 %v1758
    %1760 = vmatprep.subr.mxu0 0.0
    %v1761 = vand.u32 %v137, 4294901760
    %v1762 = vsub.f32 %v137, %v1761
    %v1763 = vand.u32 %v1762, 4294901760
    %1764 = vmatpush1.msra.mxu0 %v1763
    %1765 = vmatprep.subr.mxu0 0.0
    %v1766 = vand.u32 %v138, 4294901760
    %v1767 = vsub.f32 %v138, %v1766
    %v1768 = vand.u32 %v1767, 4294901760
    %1769 = vmatpush1.msra.mxu0 %v1768
    %1770 = vmatprep.subr.mxu0 0.0
    %v1771 = vand.u32 %v139, 4294901760
    %v1772 = vsub.f32 %v139, %v1771
    %v1773 = vand.u32 %v1772, 4294901760
    %1774 = vmatpush1.msra.mxu0 %v1773
    %1775 = vmatprep.subr.mxu0 0.0
    %v1776 = vand.u32 %v140, 4294901760
    %v1777 = vsub.f32 %v140, %v1776
    %v1778 = vand.u32 %v1777, 4294901760
    %1779 = vmatpush1.msra.mxu0 %v1778
    %1780 = vmatprep.subr.mxu0 0.0
    %v1781 = vand.u32 %v141, 4294901760
    %v1782 = vsub.f32 %v141, %v1781
    %v1783 = vand.u32 %v1782, 4294901760
    %1784 = vmatpush1.msra.mxu0 %v1783
    %1785 = vmatprep.subr.mxu0 0.0
    %v1786 = vand.u32 %v142, 4294901760
    %v1787 = vsub.f32 %v142, %v1786
    %v1788 = vand.u32 %v1787, 4294901760
    %1789 = vmatpush1.msra.mxu0 %v1788
    %1790 = vmatprep.subr.mxu0 0.0
    %v1791 = vand.u32 %v143, 4294901760
    %v1792 = vsub.f32 %v143, %v1791
    %v1793 = vand.u32 %v1792, 4294901760
    %1794 = vmatpush1.msra.mxu0 %v1793
    %1795 = vmatprep.subr.mxu0 0.0
    %v1796 = vand.u32 %v144, 4294901760
    %v1797 = vsub.f32 %v144, %v1796
    %v1798 = vand.u32 %v1797, 4294901760
    %1799 = vmatpush1.msra.mxu0 %v1798
    %1800 = vmatprep.subr.mxu0 0.0
    %v1801 = vand.u32 %v145, 4294901760
    %v1802 = vsub.f32 %v145, %v1801
    %v1803 = vand.u32 %v1802, 4294901760
    %1804 = vmatpush1.msra.mxu0 %v1803
    %1805 = vmatprep.subr.mxu0 0.0
    %v1806 = vand.u32 %v146, 4294901760
    %v1807 = vsub.f32 %v146, %v1806
    %v1808 = vand.u32 %v1807, 4294901760
    %1809 = vmatpush1.msra.mxu0 %v1808
    %1810 = vmatprep.subr.mxu0 0.0
    %v1811 = vand.u32 %v147, 4294901760
    %v1812 = vsub.f32 %v147, %v1811
    %v1813 = vand.u32 %v1812, 4294901760
    %1814 = vmatpush1.msra.mxu0 %v1813
    %1815 = vmatprep.subr.mxu0 0.0
    %v1816 = vand.u32 %v148, 4294901760
    %v1817 = vsub.f32 %v148, %v1816
    %v1818 = vand.u32 %v1817, 4294901760
    %1819 = vmatpush1.msra.mxu0 %v1818
    %1820 = vmatprep.subr.mxu0 0.0
    %v1821 = vand.u32 %v149, 4294901760
    %v1822 = vsub.f32 %v149, %v1821
    %v1823 = vand.u32 %v1822, 4294901760
    %1824 = vmatpush1.msra.mxu0 %v1823
    %1825 = vmatprep.subr.mxu0 0.0
    %v1826 = vand.u32 %v150, 4294901760
    %v1827 = vsub.f32 %v150, %v1826
    %v1828 = vand.u32 %v1827, 4294901760
    %1829 = vmatpush1.msra.mxu0 %v1828
    %1830 = vmatprep.subr.mxu0 0.0
    %v1831 = vand.u32 %v151, 4294901760
    %v1832 = vsub.f32 %v151, %v1831
    %v1833 = vand.u32 %v1832, 4294901760
    %1834 = vmatpush1.msra.mxu0 %v1833
    %v1835 = vand.u32 %v83, 4294901760
    %1836 = vmatprep.mubr.f32.mxu0 %v1835
    %v1837 = vand.u32 %v82, 4294901760
    %1838 = vmatmul.mubr.f32.gmra.mrb[0].mxu0 %v1837
    %v1839 = vpop.f32.mrb[0].mxu0
    %v1840 = vadd.f32 %v1672, %v1839
    %v1841 = vpop.f32.mrb[0].mxu0
    %1842 = vdwg.mxu0
    %1843 = vmatprep.subr.mxu0 0.0
    %v1844 = vand.u32 %v120, 4294901760
    %1845 = vmatpush1.msra.mxu0 %v1844
    %1846 = vmatprep.subr.mxu0 0.0
    %v1847 = vand.u32 %v121, 4294901760
    %1848 = vmatpush1.msra.mxu0 %v1847
    %1849 = vmatprep.subr.mxu0 0.0
    %v1850 = vand.u32 %v122, 4294901760
    %1851 = vmatpush1.msra.mxu0 %v1850
    %1852 = vmatprep.subr.mxu0 0.0
    %v1853 = vand.u32 %v123, 4294901760
    %1854 = vmatpush1.msra.mxu0 %v1853
    %1855 = vmatprep.subr.mxu0 0.0
    %v1856 = vand.u32 %v124, 4294901760
    %1857 = vmatpush1.msra.mxu0 %v1856
    %1858 = vmatprep.subr.mxu0 0.0
    %v1859 = vand.u32 %v125, 4294901760
    %1860 = vmatpush1.msra.mxu0 %v1859
    %1861 = vmatprep.subr.mxu0 0.0
    %v1862 = vand.u32 %v126, 4294901760
    %1863 = vmatpush1.msra.mxu0 %v1862
    %1864 = vmatprep.subr.mxu0 0.0
    %v1865 = vand.u32 %v127, 4294901760
    %1866 = vmatpush1.msra.mxu0 %v1865
    %1867 = vmatprep.subr.mxu0 0.0
    %v1868 = vand.u32 %v128, 4294901760
    %1869 = vmatpush1.msra.mxu0 %v1868
    %1870 = vmatprep.subr.mxu0 0.0
    %v1871 = vand.u32 %v129, 4294901760
    %1872 = vmatpush1.msra.mxu0 %v1871
    %1873 = vmatprep.subr.mxu0 0.0
    %v1874 = vand.u32 %v130, 4294901760
    %1875 = vmatpush1.msra.mxu0 %v1874
    %1876 = vmatprep.subr.mxu0 0.0
    %v1877 = vand.u32 %v131, 4294901760
    %1878 = vmatpush1.msra.mxu0 %v1877
    %1879 = vmatprep.subr.mxu0 0.0
    %v1880 = vand.u32 %v132, 4294901760
    %1881 = vmatpush1.msra.mxu0 %v1880
    %1882 = vmatprep.subr.mxu0 0.0
    %v1883 = vand.u32 %v133, 4294901760
    %1884 = vmatpush1.msra.mxu0 %v1883
    %1885 = vmatprep.subr.mxu0 0.0
    %v1886 = vand.u32 %v134, 4294901760
    %1887 = vmatpush1.msra.mxu0 %v1886
    %1888 = vmatprep.subr.mxu0 0.0
    %v1889 = vand.u32 %v135, 4294901760
    %1890 = vmatpush1.msra.mxu0 %v1889
    %1891 = vmatprep.subr.mxu0 0.0
    %v1892 = vand.u32 %v136, 4294901760
    %1893 = vmatpush1.msra.mxu0 %v1892
    %1894 = vmatprep.subr.mxu0 0.0
    %v1895 = vand.u32 %v137, 4294901760
    %1896 = vmatpush1.msra.mxu0 %v1895
    %1897 = vmatprep.subr.mxu0 0.0
    %v1898 = vand.u32 %v138, 4294901760
    %1899 = vmatpush1.msra.mxu0 %v1898
    %1900 = vmatprep.subr.mxu0 0.0
    %v1901 = vand.u32 %v139, 4294901760
    %1902 = vmatpush1.msra.mxu0 %v1901
    %1903 = vmatprep.subr.mxu0 0.0
    %v1904 = vand.u32 %v140, 4294901760
    %1905 = vmatpush1.msra.mxu0 %v1904
    %1906 = vmatprep.subr.mxu0 0.0
    %v1907 = vand.u32 %v141, 4294901760
    %1908 = vmatpush1.msra.mxu0 %v1907
    %1909 = vmatprep.subr.mxu0 0.0
    %v1910 = vand.u32 %v142, 4294901760
    %1911 = vmatpush1.msra.mxu0 %v1910
    %1912 = vmatprep.subr.mxu0 0.0
    %v1913 = vand.u32 %v143, 4294901760
    %1914 = vmatpush1.msra.mxu0 %v1913
    %1915 = vmatprep.subr.mxu0 0.0
    %v1916 = vand.u32 %v144, 4294901760
    %1917 = vmatpush1.msra.mxu0 %v1916
    %1918 = vmatprep.subr.mxu0 0.0
    %v1919 = vand.u32 %v145, 4294901760
    %1920 = vmatpush1.msra.mxu0 %v1919
    %1921 = vmatprep.subr.mxu0 0.0
    %v1922 = vand.u32 %v146, 4294901760
    %1923 = vmatpush1.msra.mxu0 %v1922
    %1924 = vmatprep.subr.mxu0 0.0
    %v1925 = vand.u32 %v147, 4294901760
    %1926 = vmatpush1.msra.mxu0 %v1925
    %1927 = vmatprep.subr.mxu0 0.0
    %v1928 = vand.u32 %v148, 4294901760
    %1929 = vmatpush1.msra.mxu0 %v1928
    %1930 = vmatprep.subr.mxu0 0.0
    %v1931 = vand.u32 %v149, 4294901760
    %1932 = vmatpush1.msra.mxu0 %v1931
    %1933 = vmatprep.subr.mxu0 0.0
    %v1934 = vand.u32 %v150, 4294901760
    %1935 = vmatpush1.msra.mxu0 %v1934
    %1936 = vmatprep.subr.mxu0 0.0
    %v1937 = vand.u32 %v151, 4294901760
    %1938 = vmatpush1.msra.mxu0 %v1937
    %v1939 = vand.u32 %v83, 4294901760
    %1940 = vmatprep.mubr.f32.mxu0 %v1939
    %v1941 = vand.u32 %v82, 4294901760
    %1942 = vmatmul.mubr.f32.gmra.mrb[0].mxu0 %v1941
    %v1943 = vpop.f32.mrb[0].mxu0
    %v1944 = vadd.f32 %v1840, %v1943
    %v1945 = vpop.f32.mrb[0].mxu0
    %1946 = vdwg.mxu0
    %1947 = vmatprep.subr.mxu0 0.0
    %v1948 = vand.u32 %v152, 4294901760
    %1949 = vmatpush1.msra.mxu0 %v1948
    %1950 = vmatprep.subr.mxu0 0.0
    %v1951 = vand.u32 %v153, 4294901760
    %1952 = vmatpush1.msra.mxu0 %v1951
    %1953 = vmatprep.subr.mxu0 0.0
    %v1954 = vand.u32 %v154, 4294901760
    %1955 = vmatpush1.msra.mxu0 %v1954
    %1956 = vmatprep.subr.mxu0 0.0
    %v1957 = vand.u32 %v155, 4294901760
    %1958 = vmatpush1.msra.mxu0 %v1957
    %1959 = vmatprep.subr.mxu0 0.0
    %v1960 = vand.u32 %v156, 4294901760
    %1961 = vmatpush1.msra.mxu0 %v1960
    %1962 = vmatprep.subr.mxu0 0.0
    %v1963 = vand.u32 %v157, 4294901760
    %1964 = vmatpush1.msra.mxu0 %v1963
    %1965 = vmatprep.subr.mxu0 0.0
    %v1966 = vand.u32 %v158, 4294901760
    %1967 = vmatpush1.msra.mxu0 %v1966
    %1968 = vmatprep.subr.mxu0 0.0
    %v1969 = vand.u32 %v159, 4294901760
    %1970 = vmatpush1.msra.mxu0 %v1969
    %1971 = vmatprep.subr.mxu0 0.0
    %v1972 = vand.u32 %v160, 4294901760
    %1973 = vmatpush1.msra.mxu0 %v1972
    %1974 = vmatprep.subr.mxu0 0.0
    %v1975 = vand.u32 %v161, 4294901760
    %1976 = vmatpush1.msra.mxu0 %v1975
    %1977 = vmatprep.subr.mxu0 0.0
    %v1978 = vand.u32 %v162, 4294901760
    %1979 = vmatpush1.msra.mxu0 %v1978
    %1980 = vmatprep.subr.mxu0 0.0
    %v1981 = vand.u32 %v163, 4294901760
    %1982 = vmatpush1.msra.mxu0 %v1981
    %1983 = vmatprep.subr.mxu0 0.0
    %v1984 = vand.u32 %v164, 4294901760
    %1985 = vmatpush1.msra.mxu0 %v1984
    %1986 = vmatprep.subr.mxu0 0.0
    %v1987 = vand.u32 %v165, 4294901760
    %1988 = vmatpush1.msra.mxu0 %v1987
    %1989 = vmatprep.subr.mxu0 0.0
    %v1990 = vand.u32 %v166, 4294901760
    %1991 = vmatpush1.msra.mxu0 %v1990
    %1992 = vmatprep.subr.mxu0 0.0
    %v1993 = vand.u32 %v167, 4294901760
    %1994 = vmatpush1.msra.mxu0 %v1993
    %1995 = vmatprep.subr.mxu0 0.0
    %v1996 = vand.u32 %v168, 4294901760
    %1997 = vmatpush1.msra.mxu0 %v1996
    %1998 = vmatprep.subr.mxu0 0.0
    %v1999 = vand.u32 %v169, 4294901760
    %2000 = vmatpush1.msra.mxu0 %v1999
    %2001 = vmatprep.subr.mxu0 0.0
    %v2002 = vand.u32 %v170, 4294901760
    %2003 = vmatpush1.msra.mxu0 %v2002
    %2004 = vmatprep.subr.mxu0 0.0
    %v2005 = vand.u32 %v171, 4294901760
    %2006 = vmatpush1.msra.mxu0 %v2005
    %2007 = vmatprep.subr.mxu0 0.0
    %v2008 = vand.u32 %v172, 4294901760
    %2009 = vmatpush1.msra.mxu0 %v2008
    %2010 = vmatprep.subr.mxu0 0.0
    %v2011 = vand.u32 %v173, 4294901760
    %2012 = vmatpush1.msra.mxu0 %v2011
    %2013 = vmatprep.subr.mxu0 0.0
    %v2014 = vand.u32 %v174, 4294901760
    %2015 = vmatpush1.msra.mxu0 %v2014
    %2016 = vmatprep.subr.mxu0 0.0
    %v2017 = vand.u32 %v175, 4294901760
    %2018 = vmatpush1.msra.mxu0 %v2017
    %2019 = vmatprep.subr.mxu0 0.0
    %v2020 = vand.u32 %v176, 4294901760
    %2021 = vmatpush1.msra.mxu0 %v2020
    %2022 = vmatprep.subr.mxu0 0.0
    %v2023 = vand.u32 %v177, 4294901760
    %2024 = vmatpush1.msra.mxu0 %v2023
    %2025 = vmatprep.subr.mxu0 0.0
    %v2026 = vand.u32 %v178, 4294901760
    %2027 = vmatpush1.msra.mxu0 %v2026
    %2028 = vmatprep.subr.mxu0 0.0
    %v2029 = vand.u32 %v179, 4294901760
    %2030 = vmatpush1.msra.mxu0 %v2029
    %2031 = vmatprep.subr.mxu0 0.0
    %v2032 = vand.u32 %v180, 4294901760
    %2033 = vmatpush1.msra.mxu0 %v2032
    %2034 = vmatprep.subr.mxu0 0.0
    %v2035 = vand.u32 %v181, 4294901760
    %2036 = vmatpush1.msra.mxu0 %v2035
    %2037 = vmatprep.subr.mxu0 0.0
    %v2038 = vand.u32 %v182, 4294901760
    %2039 = vmatpush1.msra.mxu0 %v2038
    %2040 = vmatprep.subr.mxu0 0.0
    %v2041 = vand.u32 %v183, 4294901760
    %2042 = vmatpush1.msra.mxu0 %v2041
    %v2043 = vand.u32 %v85, 4294901760
    %v2044 = vsub.f32 %v85, %v2043
    %v2045 = vand.u32 %v2044, 4294901760
    %v2046 = vsub.f32 %v2044, %v2045
    %v2047 = vand.u32 %v2046, 4294901760
    %2048 = vmatprep.mubr.f32.mxu0 %v2047
    %v2049 = vand.u32 %v84, 4294901760
    %v2050 = vsub.f32 %v84, %v2049
    %v2051 = vand.u32 %v2050, 4294901760
    %v2052 = vsub.f32 %v2050, %v2051
    %v2053 = vand.u32 %v2052, 4294901760
    %2054 = vmatmul.mubr.f32.gmra.mrb[0].mxu0 %v2053
    %v2055 = vpop.f32.mrb[0].mxu0
    %v2056 = vadd.f32 %v1944, %v2055
    %v2057 = vpop.f32.mrb[0].mxu0
    %2058 = vdwg.mxu0
    %2059 = vmatprep.subr.mxu0 0.0
    %v2060 = vand.u32 %v152, 4294901760
    %v2061 = vsub.f32 %v152, %v2060
    %v2062 = vand.u32 %v2061, 4294901760
    %v2063 = vsub.f32 %v2061, %v2062
    %v2064 = vand.u32 %v2063, 4294901760
    %2065 = vmatpush1.msra.mxu0 %v2064
    %2066 = vmatprep.subr.mxu0 0.0
    %v2067 = vand.u32 %v153, 4294901760
    %v2068 = vsub.f32 %v153, %v2067
    %v2069 = vand.u32 %v2068, 4294901760
    %v2070 = vsub.f32 %v2068, %v2069
    %v2071 = vand.u32 %v2070, 4294901760
    %2072 = vmatpush1.msra.mxu0 %v2071
    %2073 = vmatprep.subr.mxu0 0.0
    %v2074 = vand.u32 %v154, 4294901760
    %v2075 = vsub.f32 %v154, %v2074
    %v2076 = vand.u32 %v2075, 4294901760
    %v2077 = vsub.f32 %v2075, %v2076
    %v2078 = vand.u32 %v2077, 4294901760
    %2079 = vmatpush1.msra.mxu0 %v2078
    %2080 = vmatprep.subr.mxu0 0.0
    %v2081 = vand.u32 %v155, 4294901760
    %v2082 = vsub.f32 %v155, %v2081
    %v2083 = vand.u32 %v2082, 4294901760
    %v2084 = vsub.f32 %v2082, %v2083
    %v2085 = vand.u32 %v2084, 4294901760
    %2086 = vmatpush1.msra.mxu0 %v2085
    %2087 = vmatprep.subr.mxu0 0.0
    %v2088 = vand.u32 %v156, 4294901760
    %v2089 = vsub.f32 %v156, %v2088
    %v2090 = vand.u32 %v2089, 4294901760
    %v2091 = vsub.f32 %v2089, %v2090
    %v2092 = vand.u32 %v2091, 4294901760
    %2093 = vmatpush1.msra.mxu0 %v2092
    %2094 = vmatprep.subr.mxu0 0.0
    %v2095 = vand.u32 %v157, 4294901760
    %v2096 = vsub.f32 %v157, %v2095
    %v2097 = vand.u32 %v2096, 4294901760
    %v2098 = vsub.f32 %v2096, %v2097
    %v2099 = vand.u32 %v2098, 4294901760
    %2100 = vmatpush1.msra.mxu0 %v2099
    %2101 = vmatprep.subr.mxu0 0.0
    %v2102 = vand.u32 %v158, 4294901760
    %v2103 = vsub.f32 %v158, %v2102
    %v2104 = vand.u32 %v2103, 4294901760
    %v2105 = vsub.f32 %v2103, %v2104
    %v2106 = vand.u32 %v2105, 4294901760
    %2107 = vmatpush1.msra.mxu0 %v2106
    %2108 = vmatprep.subr.mxu0 0.0
    %v2109 = vand.u32 %v159, 4294901760
    %v2110 = vsub.f32 %v159, %v2109
    %v2111 = vand.u32 %v2110, 4294901760
    %v2112 = vsub.f32 %v2110, %v2111
    %v2113 = vand.u32 %v2112, 4294901760
    %2114 = vmatpush1.msra.mxu0 %v2113
    %2115 = vmatprep.subr.mxu0 0.0
    %v2116 = vand.u32 %v160, 4294901760
    %v2117 = vsub.f32 %v160, %v2116
    %v2118 = vand.u32 %v2117, 4294901760
    %v2119 = vsub.f32 %v2117, %v2118
    %v2120 = vand.u32 %v2119, 4294901760
    %2121 = vmatpush1.msra.mxu0 %v2120
    %2122 = vmatprep.subr.mxu0 0.0
    %v2123 = vand.u32 %v161, 4294901760
    %v2124 = vsub.f32 %v161, %v2123
    %v2125 = vand.u32 %v2124, 4294901760
    %v2126 = vsub.f32 %v2124, %v2125
    %v2127 = vand.u32 %v2126, 4294901760
    %2128 = vmatpush1.msra.mxu0 %v2127
    %2129 = vmatprep.subr.mxu0 0.0
    %v2130 = vand.u32 %v162, 4294901760
    %v2131 = vsub.f32 %v162, %v2130
    %v2132 = vand.u32 %v2131, 4294901760
    %v2133 = vsub.f32 %v2131, %v2132
    %v2134 = vand.u32 %v2133, 4294901760
    %2135 = vmatpush1.msra.mxu0 %v2134
    %2136 = vmatprep.subr.mxu0 0.0
    %v2137 = vand.u32 %v163, 4294901760
    %v2138 = vsub.f32 %v163, %v2137
    %v2139 = vand.u32 %v2138, 4294901760
    %v2140 = vsub.f32 %v2138, %v2139
    %v2141 = vand.u32 %v2140, 4294901760
    %2142 = vmatpush1.msra.mxu0 %v2141
    %2143 = vmatprep.subr.mxu0 0.0
    %v2144 = vand.u32 %v164, 4294901760
    %v2145 = vsub.f32 %v164, %v2144
    %v2146 = vand.u32 %v2145, 4294901760
    %v2147 = vsub.f32 %v2145, %v2146
    %v2148 = vand.u32 %v2147, 4294901760
    %2149 = vmatpush1.msra.mxu0 %v2148
    %2150 = vmatprep.subr.mxu0 0.0
    %v2151 = vand.u32 %v165, 4294901760
    %v2152 = vsub.f32 %v165, %v2151
    %v2153 = vand.u32 %v2152, 4294901760
    %v2154 = vsub.f32 %v2152, %v2153
    %v2155 = vand.u32 %v2154, 4294901760
    %2156 = vmatpush1.msra.mxu0 %v2155
    %2157 = vmatprep.subr.mxu0 0.0
    %v2158 = vand.u32 %v166, 4294901760
    %v2159 = vsub.f32 %v166, %v2158
    %v2160 = vand.u32 %v2159, 4294901760
    %v2161 = vsub.f32 %v2159, %v2160
    %v2162 = vand.u32 %v2161, 4294901760
    %2163 = vmatpush1.msra.mxu0 %v2162
    %2164 = vmatprep.subr.mxu0 0.0
    %v2165 = vand.u32 %v167, 4294901760
    %v2166 = vsub.f32 %v167, %v2165
    %v2167 = vand.u32 %v2166, 4294901760
    %v2168 = vsub.f32 %v2166, %v2167
    %v2169 = vand.u32 %v2168, 4294901760
    %2170 = vmatpush1.msra.mxu0 %v2169
    %2171 = vmatprep.subr.mxu0 0.0
    %v2172 = vand.u32 %v168, 4294901760
    %v2173 = vsub.f32 %v168, %v2172
    %v2174 = vand.u32 %v2173, 4294901760
    %v2175 = vsub.f32 %v2173, %v2174
    %v2176 = vand.u32 %v2175, 4294901760
    %2177 = vmatpush1.msra.mxu0 %v2176
    %2178 = vmatprep.subr.mxu0 0.0
    %v2179 = vand.u32 %v169, 4294901760
    %v2180 = vsub.f32 %v169, %v2179
    %v2181 = vand.u32 %v2180, 4294901760
    %v2182 = vsub.f32 %v2180, %v2181
    %v2183 = vand.u32 %v2182, 4294901760
    %2184 = vmatpush1.msra.mxu0 %v2183
    %2185 = vmatprep.subr.mxu0 0.0
    %v2186 = vand.u32 %v170, 4294901760
    %v2187 = vsub.f32 %v170, %v2186
    %v2188 = vand.u32 %v2187, 4294901760
    %v2189 = vsub.f32 %v2187, %v2188
    %v2190 = vand.u32 %v2189, 4294901760
    %2191 = vmatpush1.msra.mxu0 %v2190
    %2192 = vmatprep.subr.mxu0 0.0
    %v2193 = vand.u32 %v171, 4294901760
    %v2194 = vsub.f32 %v171, %v2193
    %v2195 = vand.u32 %v2194, 4294901760
    %v2196 = vsub.f32 %v2194, %v2195
    %v2197 = vand.u32 %v2196, 4294901760
    %2198 = vmatpush1.msra.mxu0 %v2197
    %2199 = vmatprep.subr.mxu0 0.0
    %v2200 = vand.u32 %v172, 4294901760
    %v2201 = vsub.f32 %v172, %v2200
    %v2202 = vand.u32 %v2201, 4294901760
    %v2203 = vsub.f32 %v2201, %v2202
    %v2204 = vand.u32 %v2203, 4294901760
    %2205 = vmatpush1.msra.mxu0 %v2204
    %2206 = vmatprep.subr.mxu0 0.0
    %v2207 = vand.u32 %v173, 4294901760
    %v2208 = vsub.f32 %v173, %v2207
    %v2209 = vand.u32 %v2208, 4294901760
    %v2210 = vsub.f32 %v2208, %v2209
    %v2211 = vand.u32 %v2210, 4294901760
    %2212 = vmatpush1.msra.mxu0 %v2211
    %2213 = vmatprep.subr.mxu0 0.0
    %v2214 = vand.u32 %v174, 4294901760
    %v2215 = vsub.f32 %v174, %v2214
    %v2216 = vand.u32 %v2215, 4294901760
    %v2217 = vsub.f32 %v2215, %v2216
    %v2218 = vand.u32 %v2217, 4294901760
    %2219 = vmatpush1.msra.mxu0 %v2218
    %2220 = vmatprep.subr.mxu0 0.0
    %v2221 = vand.u32 %v175, 4294901760
    %v2222 = vsub.f32 %v175, %v2221
    %v2223 = vand.u32 %v2222, 4294901760
    %v2224 = vsub.f32 %v2222, %v2223
    %v2225 = vand.u32 %v2224, 4294901760
    %2226 = vmatpush1.msra.mxu0 %v2225
    %2227 = vmatprep.subr.mxu0 0.0
    %v2228 = vand.u32 %v176, 4294901760
    %v2229 = vsub.f32 %v176, %v2228
    %v2230 = vand.u32 %v2229, 4294901760
    %v2231 = vsub.f32 %v2229, %v2230
    %v2232 = vand.u32 %v2231, 4294901760
    %2233 = vmatpush1.msra.mxu0 %v2232
    %2234 = vmatprep.subr.mxu0 0.0
    %v2235 = vand.u32 %v177, 4294901760
    %v2236 = vsub.f32 %v177, %v2235
    %v2237 = vand.u32 %v2236, 4294901760
    %v2238 = vsub.f32 %v2236, %v2237
    %v2239 = vand.u32 %v2238, 4294901760
    %2240 = vmatpush1.msra.mxu0 %v2239
    %2241 = vmatprep.subr.mxu0 0.0
    %v2242 = vand.u32 %v178, 4294901760
    %v2243 = vsub.f32 %v178, %v2242
    %v2244 = vand.u32 %v2243, 4294901760
    %v2245 = vsub.f32 %v2243, %v2244
    %v2246 = vand.u32 %v2245, 4294901760
    %2247 = vmatpush1.msra.mxu0 %v2246
    %2248 = vmatprep.subr.mxu0 0.0
    %v2249 = vand.u32 %v179, 4294901760
    %v2250 = vsub.f32 %v179, %v2249
    %v2251 = vand.u32 %v2250, 4294901760
    %v2252 = vsub.f32 %v2250, %v2251
    %v2253 = vand.u32 %v2252, 4294901760
    %2254 = vmatpush1.msra.mxu0 %v2253
    %2255 = vmatprep.subr.mxu0 0.0
    %v2256 = vand.u32 %v180, 4294901760
    %v2257 = vsub.f32 %v180, %v2256
    %v2258 = vand.u32 %v2257, 4294901760
    %v2259 = vsub.f32 %v2257, %v2258
    %v2260 = vand.u32 %v2259, 4294901760
    %2261 = vmatpush1.msra.mxu0 %v2260
    %2262 = vmatprep.subr.mxu0 0.0
    %v2263 = vand.u32 %v181, 4294901760
    %v2264 = vsub.f32 %v181, %v2263
    %v2265 = vand.u32 %v2264, 4294901760
    %v2266 = vsub.f32 %v2264, %v2265
    %v2267 = vand.u32 %v2266, 4294901760
    %2268 = vmatpush1.msra.mxu0 %v2267
    %2269 = vmatprep.subr.mxu0 0.0
    %v2270 = vand.u32 %v182, 4294901760
    %v2271 = vsub.f32 %v182, %v2270
    %v2272 = vand.u32 %v2271, 4294901760
    %v2273 = vsub.f32 %v2271, %v2272
    %v2274 = vand.u32 %v2273, 4294901760
    %2275 = vmatpush1.msra.mxu0 %v2274
    %2276 = vmatprep.subr.mxu0 0.0
    %v2277 = vand.u32 %v183, 4294901760
    %v2278 = vsub.f32 %v183, %v2277
    %v2279 = vand.u32 %v2278, 4294901760
    %v2280 = vsub.f32 %v2278, %v2279
    %v2281 = vand.u32 %v2280, 4294901760
    %2282 = vmatpush1.msra.mxu0 %v2281
    %v2283 = vand.u32 %v85, 4294901760
    %2284 = vmatprep.mubr.f32.mxu0 %v2283
    %v2285 = vand.u32 %v84, 4294901760
    %2286 = vmatmul.mubr.f32.gmra.mrb[0].mxu0 %v2285
    %v2287 = vpop.f32.mrb[0].mxu0
    %v2288 = vadd.f32 %v2056, %v2287
    %v2289 = vpop.f32.mrb[0].mxu0
    %2290 = vdwg.mxu0
    %2291 = vmatprep.subr.mxu0 0.0
    %v2292 = vand.u32 %v152, 4294901760
    %v2293 = vsub.f32 %v152, %v2292
    %2294 = vmatpush1.msra.mxu0 %v2293
    %2295 = vmatprep.subr.mxu0 0.0
    %v2296 = vand.u32 %v153, 4294901760
    %v2297 = vsub.f32 %v153, %v2296
    %2298 = vmatpush1.msra.mxu0 %v2297
    %2299 = vmatprep.subr.mxu0 0.0
    %v2300 = vand.u32 %v154, 4294901760
    %v2301 = vsub.f32 %v154, %v2300
    %2302 = vmatpush1.msra.mxu0 %v2301
    %2303 = vmatprep.subr.mxu0 0.0
    %v2304 = vand.u32 %v155, 4294901760
    %v2305 = vsub.f32 %v155, %v2304
    %2306 = vmatpush1.msra.mxu0 %v2305
    %2307 = vmatprep.subr.mxu0 0.0
    %v2308 = vand.u32 %v156, 4294901760
    %v2309 = vsub.f32 %v156, %v2308
    %2310 = vmatpush1.msra.mxu0 %v2309
    %2311 = vmatprep.subr.mxu0 0.0
    %v2312 = vand.u32 %v157, 4294901760
    %v2313 = vsub.f32 %v157, %v2312
    %2314 = vmatpush1.msra.mxu0 %v2313
    %2315 = vmatprep.subr.mxu0 0.0
    %v2316 = vand.u32 %v158, 4294901760
    %v2317 = vsub.f32 %v158, %v2316
    %2318 = vmatpush1.msra.mxu0 %v2317
    %2319 = vmatprep.subr.mxu0 0.0
    %v2320 = vand.u32 %v159, 4294901760
    %v2321 = vsub.f32 %v159, %v2320
    %2322 = vmatpush1.msra.mxu0 %v2321
    %2323 = vmatprep.subr.mxu0 0.0
    %v2324 = vand.u32 %v160, 4294901760
    %v2325 = vsub.f32 %v160, %v2324
    %2326 = vmatpush1.msra.mxu0 %v2325
    %2327 = vmatprep.subr.mxu0 0.0
    %v2328 = vand.u32 %v161, 4294901760
    %v2329 = vsub.f32 %v161, %v2328
    %2330 = vmatpush1.msra.mxu0 %v2329
    %2331 = vmatprep.subr.mxu0 0.0
    %v2332 = vand.u32 %v162, 4294901760
    %v2333 = vsub.f32 %v162, %v2332
    %2334 = vmatpush1.msra.mxu0 %v2333
    %2335 = vmatprep.subr.mxu0 0.0
    %v2336 = vand.u32 %v163, 4294901760
    %v2337 = vsub.f32 %v163, %v2336
    %2338 = vmatpush1.msra.mxu0 %v2337
    %2339 = vmatprep.subr.mxu0 0.0
    %v2340 = vand.u32 %v164, 4294901760
    %v2341 = vsub.f32 %v164, %v2340
    %2342 = vmatpush1.msra.mxu0 %v2341
    %2343 = vmatprep.subr.mxu0 0.0
    %v2344 = vand.u32 %v165, 4294901760
    %v2345 = vsub.f32 %v165, %v2344
    %2346 = vmatpush1.msra.mxu0 %v2345
    %2347 = vmatprep.subr.mxu0 0.0
    %v2348 = vand.u32 %v166, 4294901760
    %v2349 = vsub.f32 %v166, %v2348
    %2350 = vmatpush1.msra.mxu0 %v2349
    %2351 = vmatprep.subr.mxu0 0.0
    %v2352 = vand.u32 %v167, 4294901760
    %v2353 = vsub.f32 %v167, %v2352
    %2354 = vmatpush1.msra.mxu0 %v2353
    %2355 = vmatprep.subr.mxu0 0.0
    %v2356 = vand.u32 %v168, 4294901760
    %v2357 = vsub.f32 %v168, %v2356
    %2358 = vmatpush1.msra.mxu0 %v2357
    %2359 = vmatprep.subr.mxu0 0.0
    %v2360 = vand.u32 %v169, 4294901760
    %v2361 = vsub.f32 %v169, %v2360
    %2362 = vmatpush1.msra.mxu0 %v2361
    %2363 = vmatprep.subr.mxu0 0.0
    %v2364 = vand.u32 %v170, 4294901760
    %v2365 = vsub.f32 %v170, %v2364
    %2366 = vmatpush1.msra.mxu0 %v2365
    %2367 = vmatprep.subr.mxu0 0.0
    %v2368 = vand.u32 %v171, 4294901760
    %v2369 = vsub.f32 %v171, %v2368
    %2370 = vmatpush1.msra.mxu0 %v2369
    %2371 = vmatprep.subr.mxu0 0.0
    %v2372 = vand.u32 %v172, 4294901760
    %v2373 = vsub.f32 %v172, %v2372
    %2374 = vmatpush1.msra.mxu0 %v2373
    %2375 = vmatprep.subr.mxu0 0.0
    %v2376 = vand.u32 %v173, 4294901760
    %v2377 = vsub.f32 %v173, %v2376
    %2378 = vmatpush1.msra.mxu0 %v2377
    %2379 = vmatprep.subr.mxu0 0.0
    %v2380 = vand.u32 %v174, 4294901760
    %v2381 = vsub.f32 %v174, %v2380
    %2382 = vmatpush1.msra.mxu0 %v2381
    %2383 = vmatprep.subr.mxu0 0.0
    %v2384 = vand.u32 %v175, 4294901760
    %v2385 = vsub.f32 %v175, %v2384
    %2386 = vmatpush1.msra.mxu0 %v2385
    %2387 = vmatprep.subr.mxu0 0.0
    %v2388 = vand.u32 %v176, 4294901760
    %v2389 = vsub.f32 %v176, %v2388
    %2390 = vmatpush1.msra.mxu0 %v2389
    %2391 = vmatprep.subr.mxu0 0.0
    %v2392 = vand.u32 %v177, 4294901760
    %v2393 = vsub.f32 %v177, %v2392
    %2394 = vmatpush1.msra.mxu0 %v2393
    %2395 = vmatprep.subr.mxu0 0.0
    %v2396 = vand.u32 %v178, 4294901760
    %v2397 = vsub.f32 %v178, %v2396
    %2398 = vmatpush1.msra.mxu0 %v2397
    %2399 = vmatprep.subr.mxu0 0.0
    %v2400 = vand.u32 %v179, 4294901760
    %v2401 = vsub.f32 %v179, %v2400
    %2402 = vmatpush1.msra.mxu0 %v2401
    %2403 = vmatprep.subr.mxu0 0.0
    %v2404 = vand.u32 %v180, 4294901760
    %v2405 = vsub.f32 %v180, %v2404
    %2406 = vmatpush1.msra.mxu0 %v2405
    %2407 = vmatprep.subr.mxu0 0.0
    %v2408 = vand.u32 %v181, 4294901760
    %v2409 = vsub.f32 %v181, %v2408
    %2410 = vmatpush1.msra.mxu0 %v2409
    %2411 = vmatprep.subr.mxu0 0.0
    %v2412 = vand.u32 %v182, 4294901760
    %v2413 = vsub.f32 %v182, %v2412
    %2414 = vmatpush1.msra.mxu0 %v2413
    %2415 = vmatprep.subr.mxu0 0.0
    %v2416 = vand.u32 %v183, 4294901760
    %v2417 = vsub.f32 %v183, %v2416
    %2418 = vmatpush1.msra.mxu0 %v2417
    %v2419 = vand.u32 %v85, 4294901760
    %v2420 = vsub.f32 %v85, %v2419
    %2421 = vmatprep.mubr.f32.mxu0 %v2420
    %v2422 = vand.u32 %v84, 4294901760
    %v2423 = vsub.f32 %v84, %v2422
    %2424 = vmatmul.mubr.f32.gmra.mrb[0].mxu0 %v2423
    %v2425 = vpop.f32.mrb[0].mxu0
    %v2426 = vadd.f32 %v2288, %v2425
    %v2427 = vpop.f32.mrb[0].mxu0
    %2428 = vdwg.mxu0
    %2429 = vmatprep.subr.mxu0 0.0
    %v2430 = vand.u32 %v152, 4294901760
    %2431 = vmatpush1.msra.mxu0 %v2430
    %2432 = vmatprep.subr.mxu0 0.0
    %v2433 = vand.u32 %v153, 4294901760
    %2434 = vmatpush1.msra.mxu0 %v2433
    %2435 = vmatprep.subr.mxu0 0.0
    %v2436 = vand.u32 %v154, 4294901760
    %2437 = vmatpush1.msra.mxu0 %v2436
    %2438 = vmatprep.subr.mxu0 0.0
    %v2439 = vand.u32 %v155, 4294901760
    %2440 = vmatpush1.msra.mxu0 %v2439
    %2441 = vmatprep.subr.mxu0 0.0
    %v2442 = vand.u32 %v156, 4294901760
    %2443 = vmatpush1.msra.mxu0 %v2442
    %2444 = vmatprep.subr.mxu0 0.0
    %v2445 = vand.u32 %v157, 4294901760
    %2446 = vmatpush1.msra.mxu0 %v2445
    %2447 = vmatprep.subr.mxu0 0.0
    %v2448 = vand.u32 %v158, 4294901760
    %2449 = vmatpush1.msra.mxu0 %v2448
    %2450 = vmatprep.subr.mxu0 0.0
    %v2451 = vand.u32 %v159, 4294901760
    %2452 = vmatpush1.msra.mxu0 %v2451
    %2453 = vmatprep.subr.mxu0 0.0
    %v2454 = vand.u32 %v160, 4294901760
    %2455 = vmatpush1.msra.mxu0 %v2454
    %2456 = vmatprep.subr.mxu0 0.0
    %v2457 = vand.u32 %v161, 4294901760
    %2458 = vmatpush1.msra.mxu0 %v2457
    %2459 = vmatprep.subr.mxu0 0.0
    %v2460 = vand.u32 %v162, 4294901760
    %2461 = vmatpush1.msra.mxu0 %v2460
    %2462 = vmatprep.subr.mxu0 0.0
    %v2463 = vand.u32 %v163, 4294901760
    %2464 = vmatpush1.msra.mxu0 %v2463
    %2465 = vmatprep.subr.mxu0 0.0
    %v2466 = vand.u32 %v164, 4294901760
    %2467 = vmatpush1.msra.mxu0 %v2466
    %2468 = vmatprep.subr.mxu0 0.0
    %v2469 = vand.u32 %v165, 4294901760
    %2470 = vmatpush1.msra.mxu0 %v2469
    %2471 = vmatprep.subr.mxu0 0.0
    %v2472 = vand.u32 %v166, 4294901760
    %2473 = vmatpush1.msra.mxu0 %v2472
    %2474 = vmatprep.subr.mxu0 0.0
    %v2475 = vand.u32 %v167, 4294901760
    %2476 = vmatpush1.msra.mxu0 %v2475
    %2477 = vmatprep.subr.mxu0 0.0
    %v2478 = vand.u32 %v168, 4294901760
    %2479 = vmatpush1.msra.mxu0 %v2478
    %2480 = vmatprep.subr.mxu0 0.0
    %v2481 = vand.u32 %v169, 4294901760
    %2482 = vmatpush1.msra.mxu0 %v2481
    %2483 = vmatprep.subr.mxu0 0.0
    %v2484 = vand.u32 %v170, 4294901760
    %2485 = vmatpush1.msra.mxu0 %v2484
    %2486 = vmatprep.subr.mxu0 0.0
    %v2487 = vand.u32 %v171, 4294901760
    %2488 = vmatpush1.msra.mxu0 %v2487
    %2489 = vmatprep.subr.mxu0 0.0
    %v2490 = vand.u32 %v172, 4294901760
    %2491 = vmatpush1.msra.mxu0 %v2490
    %2492 = vmatprep.subr.mxu0 0.0
    %v2493 = vand.u32 %v173, 4294901760
    %2494 = vmatpush1.msra.mxu0 %v2493
    %2495 = vmatprep.subr.mxu0 0.0
    %v2496 = vand.u32 %v174, 4294901760
    %2497 = vmatpush1.msra.mxu0 %v2496
    %2498 = vmatprep.subr.mxu0 0.0
    %v2499 = vand.u32 %v175, 4294901760
    %2500 = vmatpush1.msra.mxu0 %v2499
    %2501 = vmatprep.subr.mxu0 0.0
    %v2502 = vand.u32 %v176, 4294901760
    %2503 = vmatpush1.msra.mxu0 %v2502
    %2504 = vmatprep.subr.mxu0 0.0
    %v2505 = vand.u32 %v177, 4294901760
    %2506 = vmatpush1.msra.mxu0 %v2505
    %2507 = vmatprep.subr.mxu0 0.0
    %v2508 = vand.u32 %v178, 4294901760
    %2509 = vmatpush1.msra.mxu0 %v2508
    %2510 = vmatprep.subr.mxu0 0.0
    %v2511 = vand.u32 %v179, 4294901760
    %2512 = vmatpush1.msra.mxu0 %v2511
    %2513 = vmatprep.subr.mxu0 0.0
    %v2514 = vand.u32 %v180, 4294901760
    %2515 = vmatpush1.msra.mxu0 %v2514
    %2516 = vmatprep.subr.mxu0 0.0
    %v2517 = vand.u32 %v181, 4294901760
    %2518 = vmatpush1.msra.mxu0 %v2517
    %2519 = vmatprep.subr.mxu0 0.0
    %v2520 = vand.u32 %v182, 4294901760
    %2521 = vmatpush1.msra.mxu0 %v2520
    %2522 = vmatprep.subr.mxu0 0.0
    %v2523 = vand.u32 %v183, 4294901760
    %2524 = vmatpush1.msra.mxu0 %v2523
    %v2525 = vand.u32 %v85, 4294901760
    %v2526 = vsub.f32 %v85, %v2525
    %v2527 = vand.u32 %v2526, 4294901760
    %2528 = vmatprep.mubr.f32.mxu0 %v2527
    %v2529 = vand.u32 %v84, 4294901760
    %v2530 = vsub.f32 %v84, %v2529
    %v2531 = vand.u32 %v2530, 4294901760
    %2532 = vmatmul.mubr.f32.gmra.mrb[0].mxu0 %v2531
    %v2533 = vpop.f32.mrb[0].mxu0
    %v2534 = vadd.f32 %v2426, %v2533
    %v2535 = vpop.f32.mrb[0].mxu0
    %2536 = vdwg.mxu0
    %2537 = vmatprep.subr.mxu0 0.0
    %v2538 = vand.u32 %v152, 4294901760
    %v2539 = vsub.f32 %v152, %v2538
    %v2540 = vand.u32 %v2539, 4294901760
    %2541 = vmatpush1.msra.mxu0 %v2540
    %2542 = vmatprep.subr.mxu0 0.0
    %v2543 = vand.u32 %v153, 4294901760
    %v2544 = vsub.f32 %v153, %v2543
    %v2545 = vand.u32 %v2544, 4294901760
    %2546 = vmatpush1.msra.mxu0 %v2545
    %2547 = vmatprep.subr.mxu0 0.0
    %v2548 = vand.u32 %v154, 4294901760
    %v2549 = vsub.f32 %v154, %v2548
    %v2550 = vand.u32 %v2549, 4294901760
    %2551 = vmatpush1.msra.mxu0 %v2550
    %2552 = vmatprep.subr.mxu0 0.0
    %v2553 = vand.u32 %v155, 4294901760
    %v2554 = vsub.f32 %v155, %v2553
    %v2555 = vand.u32 %v2554, 4294901760
    %2556 = vmatpush1.msra.mxu0 %v2555
    %2557 = vmatprep.subr.mxu0 0.0
    %v2558 = vand.u32 %v156, 4294901760
    %v2559 = vsub.f32 %v156, %v2558
    %v2560 = vand.u32 %v2559, 4294901760
    %2561 = vmatpush1.msra.mxu0 %v2560
    %2562 = vmatprep.subr.mxu0 0.0
    %v2563 = vand.u32 %v157, 4294901760
    %v2564 = vsub.f32 %v157, %v2563
    %v2565 = vand.u32 %v2564, 4294901760
    %2566 = vmatpush1.msra.mxu0 %v2565
    %2567 = vmatprep.subr.mxu0 0.0
    %v2568 = vand.u32 %v158, 4294901760
    %v2569 = vsub.f32 %v158, %v2568
    %v2570 = vand.u32 %v2569, 4294901760
    %2571 = vmatpush1.msra.mxu0 %v2570
    %2572 = vmatprep.subr.mxu0 0.0
    %v2573 = vand.u32 %v159, 4294901760
    %v2574 = vsub.f32 %v159, %v2573
    %v2575 = vand.u32 %v2574, 4294901760
    %2576 = vmatpush1.msra.mxu0 %v2575
    %2577 = vmatprep.subr.mxu0 0.0
    %v2578 = vand.u32 %v160, 4294901760
    %v2579 = vsub.f32 %v160, %v2578
    %v2580 = vand.u32 %v2579, 4294901760
    %2581 = vmatpush1.msra.mxu0 %v2580
    %2582 = vmatprep.subr.mxu0 0.0
    %v2583 = vand.u32 %v161, 4294901760
    %v2584 = vsub.f32 %v161, %v2583
    %v2585 = vand.u32 %v2584, 4294901760
    %2586 = vmatpush1.msra.mxu0 %v2585
    %2587 = vmatprep.subr.mxu0 0.0
    %v2588 = vand.u32 %v162, 4294901760
    %v2589 = vsub.f32 %v162, %v2588
    %v2590 = vand.u32 %v2589, 4294901760
    %2591 = vmatpush1.msra.mxu0 %v2590
    %2592 = vmatprep.subr.mxu0 0.0
    %v2593 = vand.u32 %v163, 4294901760
    %v2594 = vsub.f32 %v163, %v2593
    %v2595 = vand.u32 %v2594, 4294901760
    %2596 = vmatpush1.msra.mxu0 %v2595
    %2597 = vmatprep.subr.mxu0 0.0
    %v2598 = vand.u32 %v164, 4294901760
    %v2599 = vsub.f32 %v164, %v2598
    %v2600 = vand.u32 %v2599, 4294901760
    %2601 = vmatpush1.msra.mxu0 %v2600
    %2602 = vmatprep.subr.mxu0 0.0
    %v2603 = vand.u32 %v165, 4294901760
    %v2604 = vsub.f32 %v165, %v2603
    %v2605 = vand.u32 %v2604, 4294901760
    %2606 = vmatpush1.msra.mxu0 %v2605
    %2607 = vmatprep.subr.mxu0 0.0
    %v2608 = vand.u32 %v166, 4294901760
    %v2609 = vsub.f32 %v166, %v2608
    %v2610 = vand.u32 %v2609, 4294901760
    %2611 = vmatpush1.msra.mxu0 %v2610
    %2612 = vmatprep.subr.mxu0 0.0
    %v2613 = vand.u32 %v167, 4294901760
    %v2614 = vsub.f32 %v167, %v2613
    %v2615 = vand.u32 %v2614, 4294901760
    %2616 = vmatpush1.msra.mxu0 %v2615
    %2617 = vmatprep.subr.mxu0 0.0
    %v2618 = vand.u32 %v168, 4294901760
    %v2619 = vsub.f32 %v168, %v2618
    %v2620 = vand.u32 %v2619, 4294901760
    %2621 = vmatpush1.msra.mxu0 %v2620
    %2622 = vmatprep.subr.mxu0 0.0
    %v2623 = vand.u32 %v169, 4294901760
    %v2624 = vsub.f32 %v169, %v2623
    %v2625 = vand.u32 %v2624, 4294901760
    %2626 = vmatpush1.msra.mxu0 %v2625
    %2627 = vmatprep.subr.mxu0 0.0
    %v2628 = vand.u32 %v170, 4294901760
    %v2629 = vsub.f32 %v170, %v2628
    %v2630 = vand.u32 %v2629, 4294901760
    %2631 = vmatpush1.msra.mxu0 %v2630
    %2632 = vmatprep.subr.mxu0 0.0
    %v2633 = vand.u32 %v171, 4294901760
    %v2634 = vsub.f32 %v171, %v2633
    %v2635 = vand.u32 %v2634, 4294901760
    %2636 = vmatpush1.msra.mxu0 %v2635
    %2637 = vmatprep.subr.mxu0 0.0
    %v2638 = vand.u32 %v172, 4294901760
    %v2639 = vsub.f32 %v172, %v2638
    %v2640 = vand.u32 %v2639, 4294901760
    %2641 = vmatpush1.msra.mxu0 %v2640
    %2642 = vmatprep.subr.mxu0 0.0
    %v2643 = vand.u32 %v173, 4294901760
    %v2644 = vsub.f32 %v173, %v2643
    %v2645 = vand.u32 %v2644, 4294901760
    %2646 = vmatpush1.msra.mxu0 %v2645
    %2647 = vmatprep.subr.mxu0 0.0
    %v2648 = vand.u32 %v174, 4294901760
    %v2649 = vsub.f32 %v174, %v2648
    %v2650 = vand.u32 %v2649, 4294901760
    %2651 = vmatpush1.msra.mxu0 %v2650
    %2652 = vmatprep.subr.mxu0 0.0
    %v2653 = vand.u32 %v175, 4294901760
    %v2654 = vsub.f32 %v175, %v2653
    %v2655 = vand.u32 %v2654, 4294901760
    %2656 = vmatpush1.msra.mxu0 %v2655
    %2657 = vmatprep.subr.mxu0 0.0
    %v2658 = vand.u32 %v176, 4294901760
    %v2659 = vsub.f32 %v176, %v2658
    %v2660 = vand.u32 %v2659, 4294901760
    %2661 = vmatpush1.msra.mxu0 %v2660
    %2662 = vmatprep.subr.mxu0 0.0
    %v2663 = vand.u32 %v177, 4294901760
    %v2664 = vsub.f32 %v177, %v2663
    %v2665 = vand.u32 %v2664, 4294901760
    %2666 = vmatpush1.msra.mxu0 %v2665
    %2667 = vmatprep.subr.mxu0 0.0
    %v2668 = vand.u32 %v178, 4294901760
    %v2669 = vsub.f32 %v178, %v2668
    %v2670 = vand.u32 %v2669, 4294901760
    %2671 = vmatpush1.msra.mxu0 %v2670
    %2672 = vmatprep.subr.mxu0 0.0
    %v2673 = vand.u32 %v179, 4294901760
    %v2674 = vsub.f32 %v179, %v2673
    %v2675 = vand.u32 %v2674, 4294901760
    %2676 = vmatpush1.msra.mxu0 %v2675
    %2677 = vmatprep.subr.mxu0 0.0
    %v2678 = vand.u32 %v180, 4294901760
    %v2679 = vsub.f32 %v180, %v2678
    %v2680 = vand.u32 %v2679, 4294901760
    %2681 = vmatpush1.msra.mxu0 %v2680
    %2682 = vmatprep.subr.mxu0 0.0
    %v2683 = vand.u32 %v181, 4294901760
    %v2684 = vsub.f32 %v181, %v2683
    %v2685 = vand.u32 %v2684, 4294901760
    %2686 = vmatpush1.msra.mxu0 %v2685
    %2687 = vmatprep.subr.mxu0 0.0
    %v2688 = vand.u32 %v182, 4294901760
    %v2689 = vsub.f32 %v182, %v2688
    %v2690 = vand.u32 %v2689, 4294901760
    %2691 = vmatpush1.msra.mxu0 %v2690
    %2692 = vmatprep.subr.mxu0 0.0
    %v2693 = vand.u32 %v183, 4294901760
    %v2694 = vsub.f32 %v183, %v2693
    %v2695 = vand.u32 %v2694, 4294901760
    %2696 = vmatpush1.msra.mxu0 %v2695
    %v2697 = vand.u32 %v85, 4294901760
    %2698 = vmatprep.mubr.f32.mxu0 %v2697
    %v2699 = vand.u32 %v84, 4294901760
    %2700 = vmatmul.mubr.f32.gmra.mrb[0].mxu0 %v2699
    %v2701 = vpop.f32.mrb[0].mxu0
    %v2702 = vadd.f32 %v2534, %v2701
    %v2703 = vpop.f32.mrb[0].mxu0
    %2704 = vdwg.mxu0
    %2705 = vmatprep.subr.mxu0 0.0
    %v2706 = vand.u32 %v152, 4294901760
    %2707 = vmatpush1.msra.mxu0 %v2706
    %2708 = vmatprep.subr.mxu0 0.0
    %v2709 = vand.u32 %v153, 4294901760
    %2710 = vmatpush1.msra.mxu0 %v2709
    %2711 = vmatprep.subr.mxu0 0.0
    %v2712 = vand.u32 %v154, 4294901760
    %2713 = vmatpush1.msra.mxu0 %v2712
    %2714 = vmatprep.subr.mxu0 0.0
    %v2715 = vand.u32 %v155, 4294901760
    %2716 = vmatpush1.msra.mxu0 %v2715
    %2717 = vmatprep.subr.mxu0 0.0
    %v2718 = vand.u32 %v156, 4294901760
    %2719 = vmatpush1.msra.mxu0 %v2718
    %2720 = vmatprep.subr.mxu0 0.0
    %v2721 = vand.u32 %v157, 4294901760
    %2722 = vmatpush1.msra.mxu0 %v2721
    %2723 = vmatprep.subr.mxu0 0.0
    %v2724 = vand.u32 %v158, 4294901760
    %2725 = vmatpush1.msra.mxu0 %v2724
    %2726 = vmatprep.subr.mxu0 0.0
    %v2727 = vand.u32 %v159, 4294901760
    %2728 = vmatpush1.msra.mxu0 %v2727
    %2729 = vmatprep.subr.mxu0 0.0
    %v2730 = vand.u32 %v160, 4294901760
    %2731 = vmatpush1.msra.mxu0 %v2730
    %2732 = vmatprep.subr.mxu0 0.0
    %v2733 = vand.u32 %v161, 4294901760
    %2734 = vmatpush1.msra.mxu0 %v2733
    %2735 = vmatprep.subr.mxu0 0.0
    %v2736 = vand.u32 %v162, 4294901760
    %2737 = vmatpush1.msra.mxu0 %v2736
    %2738 = vmatprep.subr.mxu0 0.0
    %v2739 = vand.u32 %v163, 4294901760
    %2740 = vmatpush1.msra.mxu0 %v2739
    %2741 = vmatprep.subr.mxu0 0.0
    %v2742 = vand.u32 %v164, 4294901760
    %2743 = vmatpush1.msra.mxu0 %v2742
    %2744 = vmatprep.subr.mxu0 0.0
    %v2745 = vand.u32 %v165, 4294901760
    %2746 = vmatpush1.msra.mxu0 %v2745
    %2747 = vmatprep.subr.mxu0 0.0
    %v2748 = vand.u32 %v166, 4294901760
    %2749 = vmatpush1.msra.mxu0 %v2748
    %2750 = vmatprep.subr.mxu0 0.0
    %v2751 = vand.u32 %v167, 4294901760
    %2752 = vmatpush1.msra.mxu0 %v2751
    %2753 = vmatprep.subr.mxu0 0.0
    %v2754 = vand.u32 %v168, 4294901760
    %2755 = vmatpush1.msra.mxu0 %v2754
    %2756 = vmatprep.subr.mxu0 0.0
    %v2757 = vand.u32 %v169, 4294901760
    %2758 = vmatpush1.msra.mxu0 %v2757
    %2759 = vmatprep.subr.mxu0 0.0
    %v2760 = vand.u32 %v170, 4294901760
    %2761 = vmatpush1.msra.mxu0 %v2760
    %2762 = vmatprep.subr.mxu0 0.0
    %v2763 = vand.u32 %v171, 4294901760
    %2764 = vmatpush1.msra.mxu0 %v2763
    %2765 = vmatprep.subr.mxu0 0.0
    %v2766 = vand.u32 %v172, 4294901760
    %2767 = vmatpush1.msra.mxu0 %v2766
    %2768 = vmatprep.subr.mxu0 0.0
    %v2769 = vand.u32 %v173, 4294901760
    %2770 = vmatpush1.msra.mxu0 %v2769
    %2771 = vmatprep.subr.mxu0 0.0
    %v2772 = vand.u32 %v174, 4294901760
    %2773 = vmatpush1.msra.mxu0 %v2772
    %2774 = vmatprep.subr.mxu0 0.0
    %v2775 = vand.u32 %v175, 4294901760
    %2776 = vmatpush1.msra.mxu0 %v2775
    %2777 = vmatprep.subr.mxu0 0.0
    %v2778 = vand.u32 %v176, 4294901760
    %2779 = vmatpush1.msra.mxu0 %v2778
    %2780 = vmatprep.subr.mxu0 0.0
    %v2781 = vand.u32 %v177, 4294901760
    %2782 = vmatpush1.msra.mxu0 %v2781
    %2783 = vmatprep.subr.mxu0 0.0
    %v2784 = vand.u32 %v178, 4294901760
    %2785 = vmatpush1.msra.mxu0 %v2784
    %2786 = vmatprep.subr.mxu0 0.0
    %v2787 = vand.u32 %v179, 4294901760
    %2788 = vmatpush1.msra.mxu0 %v2787
    %2789 = vmatprep.subr.mxu0 0.0
    %v2790 = vand.u32 %v180, 4294901760
    %2791 = vmatpush1.msra.mxu0 %v2790
    %2792 = vmatprep.subr.mxu0 0.0
    %v2793 = vand.u32 %v181, 4294901760
    %2794 = vmatpush1.msra.mxu0 %v2793
    %2795 = vmatprep.subr.mxu0 0.0
    %v2796 = vand.u32 %v182, 4294901760
    %2797 = vmatpush1.msra.mxu0 %v2796
    %2798 = vmatprep.subr.mxu0 0.0
    %v2799 = vand.u32 %v183, 4294901760
    %2800 = vmatpush1.msra.mxu0 %v2799
    %v2801 = vand.u32 %v85, 4294901760
    %2802 = vmatprep.mubr.f32.mxu0 %v2801
    %v2803 = vand.u32 %v84, 4294901760
    %2804 = vmatmul.mubr.f32.gmra.mrb[0].mxu0 %v2803
    %v2805 = vpop.f32.mrb[0].mxu0
    %v2806 = vadd.f32 %v2702, %v2805
    %v2807 = vpop.f32.mrb[0].mxu0
    %2808 = vdwg.mxu0
    %2809 = vmatprep.subr.mxu0 0.0
    %v2810 = vand.u32 %v184, 4294901760
    %2811 = vmatpush1.msra.mxu0 %v2810
    %2812 = vmatprep.subr.mxu0 0.0
    %v2813 = vand.u32 %v185, 4294901760
    %2814 = vmatpush1.msra.mxu0 %v2813
    %2815 = vmatprep.subr.mxu0 0.0
    %v2816 = vand.u32 %v186, 4294901760
    %2817 = vmatpush1.msra.mxu0 %v2816
    %2818 = vmatprep.subr.mxu0 0.0
    %v2819 = vand.u32 %v187, 4294901760
    %2820 = vmatpush1.msra.mxu0 %v2819
    %2821 = vmatprep.subr.mxu0 0.0
    %v2822 = vand.u32 %v188, 4294901760
    %2823 = vmatpush1.msra.mxu0 %v2822
    %2824 = vmatprep.subr.mxu0 0.0
    %v2825 = vand.u32 %v189, 4294901760
    %2826 = vmatpush1.msra.mxu0 %v2825
    %2827 = vmatprep.subr.mxu0 0.0
    %v2828 = vand.u32 %v190, 4294901760
    %2829 = vmatpush1.msra.mxu0 %v2828
    %2830 = vmatprep.subr.mxu0 0.0
    %v2831 = vand.u32 %v191, 4294901760
    %2832 = vmatpush1.msra.mxu0 %v2831
    %2833 = vmatprep.subr.mxu0 0.0
    %v2834 = vand.u32 %v192, 4294901760
    %2835 = vmatpush1.msra.mxu0 %v2834
    %2836 = vmatprep.subr.mxu0 0.0
    %v2837 = vand.u32 %v193, 4294901760
    %2838 = vmatpush1.msra.mxu0 %v2837
    %2839 = vmatprep.subr.mxu0 0.0
    %v2840 = vand.u32 %v194, 4294901760
    %2841 = vmatpush1.msra.mxu0 %v2840
    %2842 = vmatprep.subr.mxu0 0.0
    %v2843 = vand.u32 %v195, 4294901760
    %2844 = vmatpush1.msra.mxu0 %v2843
    %2845 = vmatprep.subr.mxu0 0.0
    %v2846 = vand.u32 %v196, 4294901760
    %2847 = vmatpush1.msra.mxu0 %v2846
    %2848 = vmatprep.subr.mxu0 0.0
    %v2849 = vand.u32 %v197, 4294901760
    %2850 = vmatpush1.msra.mxu0 %v2849
    %2851 = vmatprep.subr.mxu0 0.0
    %v2852 = vand.u32 %v198, 4294901760
    %2853 = vmatpush1.msra.mxu0 %v2852
    %2854 = vmatprep.subr.mxu0 0.0
    %v2855 = vand.u32 %v199, 4294901760
    %2856 = vmatpush1.msra.mxu0 %v2855
    %2857 = vmatprep.subr.mxu0 0.0
    %v2858 = vand.u32 %v200, 4294901760
    %2859 = vmatpush1.msra.mxu0 %v2858
    %2860 = vmatprep.subr.mxu0 0.0
    %v2861 = vand.u32 %v201, 4294901760
    %2862 = vmatpush1.msra.mxu0 %v2861
    %2863 = vmatprep.subr.mxu0 0.0
    %v2864 = vand.u32 %v202, 4294901760
    %2865 = vmatpush1.msra.mxu0 %v2864
    %2866 = vmatprep.subr.mxu0 0.0
    %v2867 = vand.u32 %v203, 4294901760
    %2868 = vmatpush1.msra.mxu0 %v2867
    %2869 = vmatprep.subr.mxu0 0.0
    %v2870 = vand.u32 %v204, 4294901760
    %2871 = vmatpush1.msra.mxu0 %v2870
    %2872 = vmatprep.subr.mxu0 0.0
    %v2873 = vand.u32 %v205, 4294901760
    %2874 = vmatpush1.msra.mxu0 %v2873
    %2875 = vmatprep.subr.mxu0 0.0
    %v2876 = vand.u32 %v206, 4294901760
    %2877 = vmatpush1.msra.mxu0 %v2876
    %2878 = vmatprep.subr.mxu0 0.0
    %v2879 = vand.u32 %v207, 4294901760
    %2880 = vmatpush1.msra.mxu0 %v2879
    %2881 = vmatprep.subr.mxu0 0.0
    %v2882 = vand.u32 %v208, 4294901760
    %2883 = vmatpush1.msra.mxu0 %v2882
    %2884 = vmatprep.subr.mxu0 0.0
    %v2885 = vand.u32 %v209, 4294901760
    %2886 = vmatpush1.msra.mxu0 %v2885
    %2887 = vmatprep.subr.mxu0 0.0
    %v2888 = vand.u32 %v210, 4294901760
    %2889 = vmatpush1.msra.mxu0 %v2888
    %2890 = vmatprep.subr.mxu0 0.0
    %v2891 = vand.u32 %v211, 4294901760
    %2892 = vmatpush1.msra.mxu0 %v2891
    %2893 = vmatprep.subr.mxu0 0.0
    %v2894 = vand.u32 %v212, 4294901760
    %2895 = vmatpush1.msra.mxu0 %v2894
    %2896 = vmatprep.subr.mxu0 0.0
    %v2897 = vand.u32 %v213, 4294901760
    %2898 = vmatpush1.msra.mxu0 %v2897
    %2899 = vmatprep.subr.mxu0 0.0
    %v2900 = vand.u32 %v214, 4294901760
    %2901 = vmatpush1.msra.mxu0 %v2900
    %2902 = vmatprep.subr.mxu0 0.0
    %v2903 = vand.u32 %v215, 4294901760
    %2904 = vmatpush1.msra.mxu0 %v2903
    %v2905 = vand.u32 %v87, 4294901760
    %v2906 = vsub.f32 %v87, %v2905
    %v2907 = vand.u32 %v2906, 4294901760
    %v2908 = vsub.f32 %v2906, %v2907
    %v2909 = vand.u32 %v2908, 4294901760
    %2910 = vmatprep.mubr.f32.mxu0 %v2909
    %v2911 = vand.u32 %v86, 4294901760
    %v2912 = vsub.f32 %v86, %v2911
    %v2913 = vand.u32 %v2912, 4294901760
    %v2914 = vsub.f32 %v2912, %v2913
    %v2915 = vand.u32 %v2914, 4294901760
    %2916 = vmatmul.mubr.f32.gmra.mrb[0].mxu0 %v2915
    %v2917 = vpop.f32.mrb[0].mxu0
    %v2918 = vadd.f32 %v2806, %v2917
    %v2919 = vpop.f32.mrb[0].mxu0
    %2920 = vdwg.mxu0
    %2921 = vmatprep.subr.mxu0 0.0
    %v2922 = vand.u32 %v184, 4294901760
    %v2923 = vsub.f32 %v184, %v2922
    %v2924 = vand.u32 %v2923, 4294901760
    %v2925 = vsub.f32 %v2923, %v2924
    %v2926 = vand.u32 %v2925, 4294901760
    %2927 = vmatpush1.msra.mxu0 %v2926
    %2928 = vmatprep.subr.mxu0 0.0
    %v2929 = vand.u32 %v185, 4294901760
    %v2930 = vsub.f32 %v185, %v2929
    %v2931 = vand.u32 %v2930, 4294901760
    %v2932 = vsub.f32 %v2930, %v2931
    %v2933 = vand.u32 %v2932, 4294901760
    %2934 = vmatpush1.msra.mxu0 %v2933
    %2935 = vmatprep.subr.mxu0 0.0
    %v2936 = vand.u32 %v186, 4294901760
    %v2937 = vsub.f32 %v186, %v2936
    %v2938 = vand.u32 %v2937, 4294901760
    %v2939 = vsub.f32 %v2937, %v2938
    %v2940 = vand.u32 %v2939, 4294901760
    %2941 = vmatpush1.msra.mxu0 %v2940
    %2942 = vmatprep.subr.mxu0 0.0
    %v2943 = vand.u32 %v187, 4294901760
    %v2944 = vsub.f32 %v187, %v2943
    %v2945 = vand.u32 %v2944, 4294901760
    %v2946 = vsub.f32 %v2944, %v2945
    %v2947 = vand.u32 %v2946, 4294901760
    %2948 = vmatpush1.msra.mxu0 %v2947
    %2949 = vmatprep.subr.mxu0 0.0
    %v2950 = vand.u32 %v188, 4294901760
    %v2951 = vsub.f32 %v188, %v2950
    %v2952 = vand.u32 %v2951, 4294901760
    %v2953 = vsub.f32 %v2951, %v2952
    %v2954 = vand.u32 %v2953, 4294901760
    %2955 = vmatpush1.msra.mxu0 %v2954
    %2956 = vmatprep.subr.mxu0 0.0
    %v2957 = vand.u32 %v189, 4294901760
    %v2958 = vsub.f32 %v189, %v2957
    %v2959 = vand.u32 %v2958, 4294901760
    %v2960 = vsub.f32 %v2958, %v2959
    %v2961 = vand.u32 %v2960, 4294901760
    %2962 = vmatpush1.msra.mxu0 %v2961
    %2963 = vmatprep.subr.mxu0 0.0
    %v2964 = vand.u32 %v190, 4294901760
    %v2965 = vsub.f32 %v190, %v2964
    %v2966 = vand.u32 %v2965, 4294901760
    %v2967 = vsub.f32 %v2965, %v2966
    %v2968 = vand.u32 %v2967, 4294901760
    %2969 = vmatpush1.msra.mxu0 %v2968
    %2970 = vmatprep.subr.mxu0 0.0
    %v2971 = vand.u32 %v191, 4294901760
    %v2972 = vsub.f32 %v191, %v2971
    %v2973 = vand.u32 %v2972, 4294901760
    %v2974 = vsub.f32 %v2972, %v2973
    %v2975 = vand.u32 %v2974, 4294901760
    %2976 = vmatpush1.msra.mxu0 %v2975
    %2977 = vmatprep.subr.mxu0 0.0
    %v2978 = vand.u32 %v192, 4294901760
    %v2979 = vsub.f32 %v192, %v2978
    %v2980 = vand.u32 %v2979, 4294901760
    %v2981 = vsub.f32 %v2979, %v2980
    %v2982 = vand.u32 %v2981, 4294901760
    %2983 = vmatpush1.msra.mxu0 %v2982
    %2984 = vmatprep.subr.mxu0 0.0
    %v2985 = vand.u32 %v193, 4294901760
    %v2986 = vsub.f32 %v193, %v2985
    %v2987 = vand.u32 %v2986, 4294901760
    %v2988 = vsub.f32 %v2986, %v2987
    %v2989 = vand.u32 %v2988, 4294901760
    %2990 = vmatpush1.msra.mxu0 %v2989
    %2991 = vmatprep.subr.mxu0 0.0
    %v2992 = vand.u32 %v194, 4294901760
    %v2993 = vsub.f32 %v194, %v2992
    %v2994 = vand.u32 %v2993, 4294901760
    %v2995 = vsub.f32 %v2993, %v2994
    %v2996 = vand.u32 %v2995, 4294901760
    %2997 = vmatpush1.msra.mxu0 %v2996
    %2998 = vmatprep.subr.mxu0 0.0
    %v2999 = vand.u32 %v195, 4294901760
    %v3000 = vsub.f32 %v195, %v2999
    %v3001 = vand.u32 %v3000, 4294901760
    %v3002 = vsub.f32 %v3000, %v3001
    %v3003 = vand.u32 %v3002, 4294901760
    %3004 = vmatpush1.msra.mxu0 %v3003
    %3005 = vmatprep.subr.mxu0 0.0
    %v3006 = vand.u32 %v196, 4294901760
    %v3007 = vsub.f32 %v196, %v3006
    %v3008 = vand.u32 %v3007, 4294901760
    %v3009 = vsub.f32 %v3007, %v3008
    %v3010 = vand.u32 %v3009, 4294901760
    %3011 = vmatpush1.msra.mxu0 %v3010
    %3012 = vmatprep.subr.mxu0 0.0
    %v3013 = vand.u32 %v197, 4294901760
    %v3014 = vsub.f32 %v197, %v3013
    %v3015 = vand.u32 %v3014, 4294901760
    %v3016 = vsub.f32 %v3014, %v3015
    %v3017 = vand.u32 %v3016, 4294901760
    %3018 = vmatpush1.msra.mxu0 %v3017
    %3019 = vmatprep.subr.mxu0 0.0
    %v3020 = vand.u32 %v198, 4294901760
    %v3021 = vsub.f32 %v198, %v3020
    %v3022 = vand.u32 %v3021, 4294901760
    %v3023 = vsub.f32 %v3021, %v3022
    %v3024 = vand.u32 %v3023, 4294901760
    %3025 = vmatpush1.msra.mxu0 %v3024
    %3026 = vmatprep.subr.mxu0 0.0
    %v3027 = vand.u32 %v199, 4294901760
    %v3028 = vsub.f32 %v199, %v3027
    %v3029 = vand.u32 %v3028, 4294901760
    %v3030 = vsub.f32 %v3028, %v3029
    %v3031 = vand.u32 %v3030, 4294901760
    %3032 = vmatpush1.msra.mxu0 %v3031
    %3033 = vmatprep.subr.mxu0 0.0
    %v3034 = vand.u32 %v200, 4294901760
    %v3035 = vsub.f32 %v200, %v3034
    %v3036 = vand.u32 %v3035, 4294901760
    %v3037 = vsub.f32 %v3035, %v3036
    %v3038 = vand.u32 %v3037, 4294901760
    %3039 = vmatpush1.msra.mxu0 %v3038
    %3040 = vmatprep.subr.mxu0 0.0
    %v3041 = vand.u32 %v201, 4294901760
    %v3042 = vsub.f32 %v201, %v3041
    %v3043 = vand.u32 %v3042, 4294901760
    %v3044 = vsub.f32 %v3042, %v3043
    %v3045 = vand.u32 %v3044, 4294901760
    %3046 = vmatpush1.msra.mxu0 %v3045
    %3047 = vmatprep.subr.mxu0 0.0
    %v3048 = vand.u32 %v202, 4294901760
    %v3049 = vsub.f32 %v202, %v3048
    %v3050 = vand.u32 %v3049, 4294901760
    %v3051 = vsub.f32 %v3049, %v3050
    %v3052 = vand.u32 %v3051, 4294901760
    %3053 = vmatpush1.msra.mxu0 %v3052
    %3054 = vmatprep.subr.mxu0 0.0
    %v3055 = vand.u32 %v203, 4294901760
    %v3056 = vsub.f32 %v203, %v3055
    %v3057 = vand.u32 %v3056, 4294901760
    %v3058 = vsub.f32 %v3056, %v3057
    %v3059 = vand.u32 %v3058, 4294901760
    %3060 = vmatpush1.msra.mxu0 %v3059
    %3061 = vmatprep.subr.mxu0 0.0
    %v3062 = vand.u32 %v204, 4294901760
    %v3063 = vsub.f32 %v204, %v3062
    %v3064 = vand.u32 %v3063, 4294901760
    %v3065 = vsub.f32 %v3063, %v3064
    %v3066 = vand.u32 %v3065, 4294901760
    %3067 = vmatpush1.msra.mxu0 %v3066
    %3068 = vmatprep.subr.mxu0 0.0
    %v3069 = vand.u32 %v205, 4294901760
    %v3070 = vsub.f32 %v205, %v3069
    %v3071 = vand.u32 %v3070, 4294901760
    %v3072 = vsub.f32 %v3070, %v3071
    %v3073 = vand.u32 %v3072, 4294901760
    %3074 = vmatpush1.msra.mxu0 %v3073
    %3075 = vmatprep.subr.mxu0 0.0
    %v3076 = vand.u32 %v206, 4294901760
    %v3077 = vsub.f32 %v206, %v3076
    %v3078 = vand.u32 %v3077, 4294901760
    %v3079 = vsub.f32 %v3077, %v3078
    %v3080 = vand.u32 %v3079, 4294901760
    %3081 = vmatpush1.msra.mxu0 %v3080
    %3082 = vmatprep.subr.mxu0 0.0
    %v3083 = vand.u32 %v207, 4294901760
    %v3084 = vsub.f32 %v207, %v3083
    %v3085 = vand.u32 %v3084, 4294901760
    %v3086 = vsub.f32 %v3084, %v3085
    %v3087 = vand.u32 %v3086, 4294901760
    %3088 = vmatpush1.msra.mxu0 %v3087
    %3089 = vmatprep.subr.mxu0 0.0
    %v3090 = vand.u32 %v208, 4294901760
    %v3091 = vsub.f32 %v208, %v3090
    %v3092 = vand.u32 %v3091, 4294901760
    %v3093 = vsub.f32 %v3091, %v3092
    %v3094 = vand.u32 %v3093, 4294901760
    %3095 = vmatpush1.msra.mxu0 %v3094
    %3096 = vmatprep.subr.mxu0 0.0
    %v3097 = vand.u32 %v209, 4294901760
    %v3098 = vsub.f32 %v209, %v3097
    %v3099 = vand.u32 %v3098, 4294901760
    %v3100 = vsub.f32 %v3098, %v3099
    %v3101 = vand.u32 %v3100, 4294901760
    %3102 = vmatpush1.msra.mxu0 %v3101
    %3103 = vmatprep.subr.mxu0 0.0
    %v3104 = vand.u32 %v210, 4294901760
    %v3105 = vsub.f32 %v210, %v3104
    %v3106 = vand.u32 %v3105, 4294901760
    %v3107 = vsub.f32 %v3105, %v3106
    %v3108 = vand.u32 %v3107, 4294901760
    %3109 = vmatpush1.msra.mxu0 %v3108
    %3110 = vmatprep.subr.mxu0 0.0
    %v3111 = vand.u32 %v211, 4294901760
    %v3112 = vsub.f32 %v211, %v3111
    %v3113 = vand.u32 %v3112, 4294901760
    %v3114 = vsub.f32 %v3112, %v3113
    %v3115 = vand.u32 %v3114, 4294901760
    %3116 = vmatpush1.msra.mxu0 %v3115
    %3117 = vmatprep.subr.mxu0 0.0
    %v3118 = vand.u32 %v212, 4294901760
    %v3119 = vsub.f32 %v212, %v3118
    %v3120 = vand.u32 %v3119, 4294901760
    %v3121 = vsub.f32 %v3119, %v3120
    %v3122 = vand.u32 %v3121, 4294901760
    %3123 = vmatpush1.msra.mxu0 %v3122
    %3124 = vmatprep.subr.mxu0 0.0
    %v3125 = vand.u32 %v213, 4294901760
    %v3126 = vsub.f32 %v213, %v3125
    %v3127 = vand.u32 %v3126, 4294901760
    %v3128 = vsub.f32 %v3126, %v3127
    %v3129 = vand.u32 %v3128, 4294901760
    %3130 = vmatpush1.msra.mxu0 %v3129
    %3131 = vmatprep.subr.mxu0 0.0
    %v3132 = vand.u32 %v214, 4294901760
    %v3133 = vsub.f32 %v214, %v3132
    %v3134 = vand.u32 %v3133, 4294901760
    %v3135 = vsub.f32 %v3133, %v3134
    %v3136 = vand.u32 %v3135, 4294901760
    %3137 = vmatpush1.msra.mxu0 %v3136
    %3138 = vmatprep.subr.mxu0 0.0
    %v3139 = vand.u32 %v215, 4294901760
    %v3140 = vsub.f32 %v215, %v3139
    %v3141 = vand.u32 %v3140, 4294901760
    %v3142 = vsub.f32 %v3140, %v3141
    %v3143 = vand.u32 %v3142, 4294901760
    %3144 = vmatpush1.msra.mxu0 %v3143
    %v3145 = vand.u32 %v87, 4294901760
    %3146 = vmatprep.mubr.f32.mxu0 %v3145
    %v3147 = vand.u32 %v86, 4294901760
    %3148 = vmatmul.mubr.f32.gmra.mrb[0].mxu0 %v3147
    %v3149 = vpop.f32.mrb[0].mxu0
    %v3150 = vadd.f32 %v2918, %v3149
    %v3151 = vpop.f32.mrb[0].mxu0
    %3152 = vdwg.mxu0
    %3153 = vmatprep.subr.mxu0 0.0
    %v3154 = vand.u32 %v184, 4294901760
    %v3155 = vsub.f32 %v184, %v3154
    %3156 = vmatpush1.msra.mxu0 %v3155
    %3157 = vmatprep.subr.mxu0 0.0
    %v3158 = vand.u32 %v185, 4294901760
    %v3159 = vsub.f32 %v185, %v3158
    %3160 = vmatpush1.msra.mxu0 %v3159
    %3161 = vmatprep.subr.mxu0 0.0
    %v3162 = vand.u32 %v186, 4294901760
    %v3163 = vsub.f32 %v186, %v3162
    %3164 = vmatpush1.msra.mxu0 %v3163
    %3165 = vmatprep.subr.mxu0 0.0
    %v3166 = vand.u32 %v187, 4294901760
    %v3167 = vsub.f32 %v187, %v3166
    %3168 = vmatpush1.msra.mxu0 %v3167
    %3169 = vmatprep.subr.mxu0 0.0
    %v3170 = vand.u32 %v188, 4294901760
    %v3171 = vsub.f32 %v188, %v3170
    %3172 = vmatpush1.msra.mxu0 %v3171
    %3173 = vmatprep.subr.mxu0 0.0
    %v3174 = vand.u32 %v189, 4294901760
    %v3175 = vsub.f32 %v189, %v3174
    %3176 = vmatpush1.msra.mxu0 %v3175
    %3177 = vmatprep.subr.mxu0 0.0
    %v3178 = vand.u32 %v190, 4294901760
    %v3179 = vsub.f32 %v190, %v3178
    %3180 = vmatpush1.msra.mxu0 %v3179
    %3181 = vmatprep.subr.mxu0 0.0
    %v3182 = vand.u32 %v191, 4294901760
    %v3183 = vsub.f32 %v191, %v3182
    %3184 = vmatpush1.msra.mxu0 %v3183
    %3185 = vmatprep.subr.mxu0 0.0
    %v3186 = vand.u32 %v192, 4294901760
    %v3187 = vsub.f32 %v192, %v3186
    %3188 = vmatpush1.msra.mxu0 %v3187
    %3189 = vmatprep.subr.mxu0 0.0
    %v3190 = vand.u32 %v193, 4294901760
    %v3191 = vsub.f32 %v193, %v3190
    %3192 = vmatpush1.msra.mxu0 %v3191
    %3193 = vmatprep.subr.mxu0 0.0
    %v3194 = vand.u32 %v194, 4294901760
    %v3195 = vsub.f32 %v194, %v3194
    %3196 = vmatpush1.msra.mxu0 %v3195
    %3197 = vmatprep.subr.mxu0 0.0
    %v3198 = vand.u32 %v195, 4294901760
    %v3199 = vsub.f32 %v195, %v3198
    %3200 = vmatpush1.msra.mxu0 %v3199
    %3201 = vmatprep.subr.mxu0 0.0
    %v3202 = vand.u32 %v196, 4294901760
    %v3203 = vsub.f32 %v196, %v3202
    %3204 = vmatpush1.msra.mxu0 %v3203
    %3205 = vmatprep.subr.mxu0 0.0
    %v3206 = vand.u32 %v197, 4294901760
    %v3207 = vsub.f32 %v197, %v3206
    %3208 = vmatpush1.msra.mxu0 %v3207
    %3209 = vmatprep.subr.mxu0 0.0
    %v3210 = vand.u32 %v198, 4294901760
    %v3211 = vsub.f32 %v198, %v3210
    %3212 = vmatpush1.msra.mxu0 %v3211
    %3213 = vmatprep.subr.mxu0 0.0
    %v3214 = vand.u32 %v199, 4294901760
    %v3215 = vsub.f32 %v199, %v3214
    %3216 = vmatpush1.msra.mxu0 %v3215
    %3217 = vmatprep.subr.mxu0 0.0
    %v3218 = vand.u32 %v200, 4294901760
    %v3219 = vsub.f32 %v200, %v3218
    %3220 = vmatpush1.msra.mxu0 %v3219
    %3221 = vmatprep.subr.mxu0 0.0
    %v3222 = vand.u32 %v201, 4294901760
    %v3223 = vsub.f32 %v201, %v3222
    %3224 = vmatpush1.msra.mxu0 %v3223
    %3225 = vmatprep.subr.mxu0 0.0
    %v3226 = vand.u32 %v202, 4294901760
    %v3227 = vsub.f32 %v202, %v3226
    %3228 = vmatpush1.msra.mxu0 %v3227
    %3229 = vmatprep.subr.mxu0 0.0
    %v3230 = vand.u32 %v203, 4294901760
    %v3231 = vsub.f32 %v203, %v3230
    %3232 = vmatpush1.msra.mxu0 %v3231
    %3233 = vmatprep.subr.mxu0 0.0
    %v3234 = vand.u32 %v204, 4294901760
    %v3235 = vsub.f32 %v204, %v3234
    %3236 = vmatpush1.msra.mxu0 %v3235
    %3237 = vmatprep.subr.mxu0 0.0
    %v3238 = vand.u32 %v205, 4294901760
    %v3239 = vsub.f32 %v205, %v3238
    %3240 = vmatpush1.msra.mxu0 %v3239
    %3241 = vmatprep.subr.mxu0 0.0
    %v3242 = vand.u32 %v206, 4294901760
    %v3243 = vsub.f32 %v206, %v3242
    %3244 = vmatpush1.msra.mxu0 %v3243
    %3245 = vmatprep.subr.mxu0 0.0
    %v3246 = vand.u32 %v207, 4294901760
    %v3247 = vsub.f32 %v207, %v3246
    %3248 = vmatpush1.msra.mxu0 %v3247
    %3249 = vmatprep.subr.mxu0 0.0
    %v3250 = vand.u32 %v208, 4294901760
    %v3251 = vsub.f32 %v208, %v3250
    %3252 = vmatpush1.msra.mxu0 %v3251
    %3253 = vmatprep.subr.mxu0 0.0
    %v3254 = vand.u32 %v209, 4294901760
    %v3255 = vsub.f32 %v209, %v3254
    %3256 = vmatpush1.msra.mxu0 %v3255
    %3257 = vmatprep.subr.mxu0 0.0
    %v3258 = vand.u32 %v210, 4294901760
    %v3259 = vsub.f32 %v210, %v3258
    %3260 = vmatpush1.msra.mxu0 %v3259
    %3261 = vmatprep.subr.mxu0 0.0
    %v3262 = vand.u32 %v211, 4294901760
    %v3263 = vsub.f32 %v211, %v3262
    %3264 = vmatpush1.msra.mxu0 %v3263
    %3265 = vmatprep.subr.mxu0 0.0
    %v3266 = vand.u32 %v212, 4294901760
    %v3267 = vsub.f32 %v212, %v3266
    %3268 = vmatpush1.msra.mxu0 %v3267
    %3269 = vmatprep.subr.mxu0 0.0
    %v3270 = vand.u32 %v213, 4294901760
    %v3271 = vsub.f32 %v213, %v3270
    %3272 = vmatpush1.msra.mxu0 %v3271
    %3273 = vmatprep.subr.mxu0 0.0
    %v3274 = vand.u32 %v214, 4294901760
    %v3275 = vsub.f32 %v214, %v3274
    %3276 = vmatpush1.msra.mxu0 %v3275
    %3277 = vmatprep.subr.mxu0 0.0
    %v3278 = vand.u32 %v215, 4294901760
    %v3279 = vsub.f32 %v215, %v3278
    %3280 = vmatpush1.msra.mxu0 %v3279
    %v3281 = vand.u32 %v87, 4294901760
    %v3282 = vsub.f32 %v87, %v3281
    %3283 = vmatprep.mubr.f32.mxu0 %v3282
    %v3284 = vand.u32 %v86, 4294901760
    %v3285 = vsub.f32 %v86, %v3284
    %3286 = vmatmul.mubr.f32.gmra.mrb[0].mxu0 %v3285
    %v3287 = vpop.f32.mrb[0].mxu0
    %v3288 = vadd.f32 %v3150, %v3287
    %v3289 = vpop.f32.mrb[0].mxu0
    %3290 = vdwg.mxu0
    %3291 = vmatprep.subr.mxu0 0.0
    %v3292 = vand.u32 %v184, 4294901760
    %3293 = vmatpush1.msra.mxu0 %v3292
    %3294 = vmatprep.subr.mxu0 0.0
    %v3295 = vand.u32 %v185, 4294901760
    %3296 = vmatpush1.msra.mxu0 %v3295
    %3297 = vmatprep.subr.mxu0 0.0
    %v3298 = vand.u32 %v186, 4294901760
    %3299 = vmatpush1.msra.mxu0 %v3298
    %3300 = vmatprep.subr.mxu0 0.0
    %v3301 = vand.u32 %v187, 4294901760
    %3302 = vmatpush1.msra.mxu0 %v3301
    %3303 = vmatprep.subr.mxu0 0.0
    %v3304 = vand.u32 %v188, 4294901760
    %3305 = vmatpush1.msra.mxu0 %v3304
    %3306 = vmatprep.subr.mxu0 0.0
    %v3307 = vand.u32 %v189, 4294901760
    %3308 = vmatpush1.msra.mxu0 %v3307
    %3309 = vmatprep.subr.mxu0 0.0
    %v3310 = vand.u32 %v190, 4294901760
    %3311 = vmatpush1.msra.mxu0 %v3310
    %3312 = vmatprep.subr.mxu0 0.0
    %v3313 = vand.u32 %v191, 4294901760
    %3314 = vmatpush1.msra.mxu0 %v3313
    %3315 = vmatprep.subr.mxu0 0.0
    %v3316 = vand.u32 %v192, 4294901760
    %3317 = vmatpush1.msra.mxu0 %v3316
    %3318 = vmatprep.subr.mxu0 0.0
    %v3319 = vand.u32 %v193, 4294901760
    %3320 = vmatpush1.msra.mxu0 %v3319
    %3321 = vmatprep.subr.mxu0 0.0
    %v3322 = vand.u32 %v194, 4294901760
    %3323 = vmatpush1.msra.mxu0 %v3322
    %3324 = vmatprep.subr.mxu0 0.0
    %v3325 = vand.u32 %v195, 4294901760
    %3326 = vmatpush1.msra.mxu0 %v3325
    %3327 = vmatprep.subr.mxu0 0.0
    %v3328 = vand.u32 %v196, 4294901760
    %3329 = vmatpush1.msra.mxu0 %v3328
    %3330 = vmatprep.subr.mxu0 0.0
    %v3331 = vand.u32 %v197, 4294901760
    %3332 = vmatpush1.msra.mxu0 %v3331
    %3333 = vmatprep.subr.mxu0 0.0
    %v3334 = vand.u32 %v198, 4294901760
    %3335 = vmatpush1.msra.mxu0 %v3334
    %3336 = vmatprep.subr.mxu0 0.0
    %v3337 = vand.u32 %v199, 4294901760
    %3338 = vmatpush1.msra.mxu0 %v3337
    %3339 = vmatprep.subr.mxu0 0.0
    %v3340 = vand.u32 %v200, 4294901760
    %3341 = vmatpush1.msra.mxu0 %v3340
    %3342 = vmatprep.subr.mxu0 0.0
    %v3343 = vand.u32 %v201, 4294901760
    %3344 = vmatpush1.msra.mxu0 %v3343
    %3345 = vmatprep.subr.mxu0 0.0
    %v3346 = vand.u32 %v202, 4294901760
    %3347 = vmatpush1.msra.mxu0 %v3346
    %3348 = vmatprep.subr.mxu0 0.0
    %v3349 = vand.u32 %v203, 4294901760
    %3350 = vmatpush1.msra.mxu0 %v3349
    %3351 = vmatprep.subr.mxu0 0.0
    %v3352 = vand.u32 %v204, 4294901760
    %3353 = vmatpush1.msra.mxu0 %v3352
    %3354 = vmatprep.subr.mxu0 0.0
    %v3355 = vand.u32 %v205, 4294901760
    %3356 = vmatpush1.msra.mxu0 %v3355
    %3357 = vmatprep.subr.mxu0 0.0
    %v3358 = vand.u32 %v206, 4294901760
    %3359 = vmatpush1.msra.mxu0 %v3358
    %3360 = vmatprep.subr.mxu0 0.0
    %v3361 = vand.u32 %v207, 4294901760
    %3362 = vmatpush1.msra.mxu0 %v3361
    %3363 = vmatprep.subr.mxu0 0.0
    %v3364 = vand.u32 %v208, 4294901760
    %3365 = vmatpush1.msra.mxu0 %v3364
    %3366 = vmatprep.subr.mxu0 0.0
    %v3367 = vand.u32 %v209, 4294901760
    %3368 = vmatpush1.msra.mxu0 %v3367
    %3369 = vmatprep.subr.mxu0 0.0
    %v3370 = vand.u32 %v210, 4294901760
    %3371 = vmatpush1.msra.mxu0 %v3370
    %3372 = vmatprep.subr.mxu0 0.0
    %v3373 = vand.u32 %v211, 4294901760
    %3374 = vmatpush1.msra.mxu0 %v3373
    %3375 = vmatprep.subr.mxu0 0.0
    %v3376 = vand.u32 %v212, 4294901760
    %3377 = vmatpush1.msra.mxu0 %v3376
    %3378 = vmatprep.subr.mxu0 0.0
    %v3379 = vand.u32 %v213, 4294901760
    %3380 = vmatpush1.msra.mxu0 %v3379
    %3381 = vmatprep.subr.mxu0 0.0
    %v3382 = vand.u32 %v214, 4294901760
    %3383 = vmatpush1.msra.mxu0 %v3382
    %3384 = vmatprep.subr.mxu0 0.0
    %v3385 = vand.u32 %v215, 4294901760
    %3386 = vmatpush1.msra.mxu0 %v3385
    %v3387 = vand.u32 %v87, 4294901760
    %v3388 = vsub.f32 %v87, %v3387
    %v3389 = vand.u32 %v3388, 4294901760
    %3390 = vmatprep.mubr.f32.mxu0 %v3389
    %v3391 = vand.u32 %v86, 4294901760
    %v3392 = vsub.f32 %v86, %v3391
    %v3393 = vand.u32 %v3392, 4294901760
    %3394 = vmatmul.mubr.f32.gmra.mrb[0].mxu0 %v3393
    %v3395 = vpop.f32.mrb[0].mxu0
    %v3396 = vadd.f32 %v3288, %v3395
    %v3397 = vpop.f32.mrb[0].mxu0
    %3398 = vdwg.mxu0
    %3399 = vmatprep.subr.mxu0 0.0
    %v3400 = vand.u32 %v184, 4294901760
    %v3401 = vsub.f32 %v184, %v3400
    %v3402 = vand.u32 %v3401, 4294901760
    %3403 = vmatpush1.msra.mxu0 %v3402
    %3404 = vmatprep.subr.mxu0 0.0
    %v3405 = vand.u32 %v185, 4294901760
    %v3406 = vsub.f32 %v185, %v3405
    %v3407 = vand.u32 %v3406, 4294901760
    %3408 = vmatpush1.msra.mxu0 %v3407
    %3409 = vmatprep.subr.mxu0 0.0
    %v3410 = vand.u32 %v186, 4294901760
    %v3411 = vsub.f32 %v186, %v3410
    %v3412 = vand.u32 %v3411, 4294901760
    %3413 = vmatpush1.msra.mxu0 %v3412
    %3414 = vmatprep.subr.mxu0 0.0
    %v3415 = vand.u32 %v187, 4294901760
    %v3416 = vsub.f32 %v187, %v3415
    %v3417 = vand.u32 %v3416, 4294901760
    %3418 = vmatpush1.msra.mxu0 %v3417
    %3419 = vmatprep.subr.mxu0 0.0
    %v3420 = vand.u32 %v188, 4294901760
    %v3421 = vsub.f32 %v188, %v3420
    %v3422 = vand.u32 %v3421, 4294901760
    %3423 = vmatpush1.msra.mxu0 %v3422
    %3424 = vmatprep.subr.mxu0 0.0
    %v3425 = vand.u32 %v189, 4294901760
    %v3426 = vsub.f32 %v189, %v3425
    %v3427 = vand.u32 %v3426, 4294901760
    %3428 = vmatpush1.msra.mxu0 %v3427
    %3429 = vmatprep.subr.mxu0 0.0
    %v3430 = vand.u32 %v190, 4294901760
    %v3431 = vsub.f32 %v190, %v3430
    %v3432 = vand.u32 %v3431, 4294901760
    %3433 = vmatpush1.msra.mxu0 %v3432
    %3434 = vmatprep.subr.mxu0 0.0
    %v3435 = vand.u32 %v191, 4294901760
    %v3436 = vsub.f32 %v191, %v3435
    %v3437 = vand.u32 %v3436, 4294901760
    %3438 = vmatpush1.msra.mxu0 %v3437
    %3439 = vmatprep.subr.mxu0 0.0
    %v3440 = vand.u32 %v192, 4294901760
    %v3441 = vsub.f32 %v192, %v3440
    %v3442 = vand.u32 %v3441, 4294901760
    %3443 = vmatpush1.msra.mxu0 %v3442
    %3444 = vmatprep.subr.mxu0 0.0
    %v3445 = vand.u32 %v193, 4294901760
    %v3446 = vsub.f32 %v193, %v3445
    %v3447 = vand.u32 %v3446, 4294901760
    %3448 = vmatpush1.msra.mxu0 %v3447
    %3449 = vmatprep.subr.mxu0 0.0
    %v3450 = vand.u32 %v194, 4294901760
    %v3451 = vsub.f32 %v194, %v3450
    %v3452 = vand.u32 %v3451, 4294901760
    %3453 = vmatpush1.msra.mxu0 %v3452
    %3454 = vmatprep.subr.mxu0 0.0
    %v3455 = vand.u32 %v195, 4294901760
    %v3456 = vsub.f32 %v195, %v3455
    %v3457 = vand.u32 %v3456, 4294901760
    %3458 = vmatpush1.msra.mxu0 %v3457
    %3459 = vmatprep.subr.mxu0 0.0
    %v3460 = vand.u32 %v196, 4294901760
    %v3461 = vsub.f32 %v196, %v3460
    %v3462 = vand.u32 %v3461, 4294901760
    %3463 = vmatpush1.msra.mxu0 %v3462
    %3464 = vmatprep.subr.mxu0 0.0
    %v3465 = vand.u32 %v197, 4294901760
    %v3466 = vsub.f32 %v197, %v3465
    %v3467 = vand.u32 %v3466, 4294901760
    %3468 = vmatpush1.msra.mxu0 %v3467
    %3469 = vmatprep.subr.mxu0 0.0
    %v3470 = vand.u32 %v198, 4294901760
    %v3471 = vsub.f32 %v198, %v3470
    %v3472 = vand.u32 %v3471, 4294901760
    %3473 = vmatpush1.msra.mxu0 %v3472
    %3474 = vmatprep.subr.mxu0 0.0
    %v3475 = vand.u32 %v199, 4294901760
    %v3476 = vsub.f32 %v199, %v3475
    %v3477 = vand.u32 %v3476, 4294901760
    %3478 = vmatpush1.msra.mxu0 %v3477
    %3479 = vmatprep.subr.mxu0 0.0
    %v3480 = vand.u32 %v200, 4294901760
    %v3481 = vsub.f32 %v200, %v3480
    %v3482 = vand.u32 %v3481, 4294901760
    %3483 = vmatpush1.msra.mxu0 %v3482
    %3484 = vmatprep.subr.mxu0 0.0
    %v3485 = vand.u32 %v201, 4294901760
    %v3486 = vsub.f32 %v201, %v3485
    %v3487 = vand.u32 %v3486, 4294901760
    %3488 = vmatpush1.msra.mxu0 %v3487
    %3489 = vmatprep.subr.mxu0 0.0
    %v3490 = vand.u32 %v202, 4294901760
    %v3491 = vsub.f32 %v202, %v3490
    %v3492 = vand.u32 %v3491, 4294901760
    %3493 = vmatpush1.msra.mxu0 %v3492
    %3494 = vmatprep.subr.mxu0 0.0
    %v3495 = vand.u32 %v203, 4294901760
    %v3496 = vsub.f32 %v203, %v3495
    %v3497 = vand.u32 %v3496, 4294901760
    %3498 = vmatpush1.msra.mxu0 %v3497
    %3499 = vmatprep.subr.mxu0 0.0
    %v3500 = vand.u32 %v204, 4294901760
    %v3501 = vsub.f32 %v204, %v3500
    %v3502 = vand.u32 %v3501, 4294901760
    %3503 = vmatpush1.msra.mxu0 %v3502
    %3504 = vmatprep.subr.mxu0 0.0
    %v3505 = vand.u32 %v205, 4294901760
    %v3506 = vsub.f32 %v205, %v3505
    %v3507 = vand.u32 %v3506, 4294901760
    %3508 = vmatpush1.msra.mxu0 %v3507
    %3509 = vmatprep.subr.mxu0 0.0
    %v3510 = vand.u32 %v206, 4294901760
    %v3511 = vsub.f32 %v206, %v3510
    %v3512 = vand.u32 %v3511, 4294901760
    %3513 = vmatpush1.msra.mxu0 %v3512
    %3514 = vmatprep.subr.mxu0 0.0
    %v3515 = vand.u32 %v207, 4294901760
    %v3516 = vsub.f32 %v207, %v3515
    %v3517 = vand.u32 %v3516, 4294901760
    %3518 = vmatpush1.msra.mxu0 %v3517
    %3519 = vmatprep.subr.mxu0 0.0
    %v3520 = vand.u32 %v208, 4294901760
    %v3521 = vsub.f32 %v208, %v3520
    %v3522 = vand.u32 %v3521, 4294901760
    %3523 = vmatpush1.msra.mxu0 %v3522
    %3524 = vmatprep.subr.mxu0 0.0
    %v3525 = vand.u32 %v209, 4294901760
    %v3526 = vsub.f32 %v209, %v3525
    %v3527 = vand.u32 %v3526, 4294901760
    %3528 = vmatpush1.msra.mxu0 %v3527
    %3529 = vmatprep.subr.mxu0 0.0
    %v3530 = vand.u32 %v210, 4294901760
    %v3531 = vsub.f32 %v210, %v3530
    %v3532 = vand.u32 %v3531, 4294901760
    %3533 = vmatpush1.msra.mxu0 %v3532
    %3534 = vmatprep.subr.mxu0 0.0
    %v3535 = vand.u32 %v211, 4294901760
    %v3536 = vsub.f32 %v211, %v3535
    %v3537 = vand.u32 %v3536, 4294901760
    %3538 = vmatpush1.msra.mxu0 %v3537
    %3539 = vmatprep.subr.mxu0 0.0
    %v3540 = vand.u32 %v212, 4294901760
    %v3541 = vsub.f32 %v212, %v3540
    %v3542 = vand.u32 %v3541, 4294901760
    %3543 = vmatpush1.msra.mxu0 %v3542
    %3544 = vmatprep.subr.mxu0 0.0
    %v3545 = vand.u32 %v213, 4294901760
    %v3546 = vsub.f32 %v213, %v3545
    %v3547 = vand.u32 %v3546, 4294901760
    %3548 = vmatpush1.msra.mxu0 %v3547
    %3549 = vmatprep.subr.mxu0 0.0
    %v3550 = vand.u32 %v214, 4294901760
    %v3551 = vsub.f32 %v214, %v3550
    %v3552 = vand.u32 %v3551, 4294901760
    %3553 = vmatpush1.msra.mxu0 %v3552
    %3554 = vmatprep.subr.mxu0 0.0
    %v3555 = vand.u32 %v215, 4294901760
    %v3556 = vsub.f32 %v215, %v3555
    %v3557 = vand.u32 %v3556, 4294901760
    %3558 = vmatpush1.msra.mxu0 %v3557
    %v3559 = vand.u32 %v87, 4294901760
    %3560 = vmatprep.mubr.f32.mxu0 %v3559
    %v3561 = vand.u32 %v86, 4294901760
    %3562 = vmatmul.mubr.f32.gmra.mrb[0].mxu0 %v3561
    %v3563 = vpop.f32.mrb[0].mxu0
    %v3564 = vadd.f32 %v3396, %v3563
    %v3565 = vpop.f32.mrb[0].mxu0
    %3566 = vdwg.mxu0
    %3567 = vmatprep.subr.mxu0 0.0
    %v3568 = vand.u32 %v184, 4294901760
    %3569 = vmatpush1.msra.mxu0 %v3568
    %3570 = vmatprep.subr.mxu0 0.0
    %v3571 = vand.u32 %v185, 4294901760
    %3572 = vmatpush1.msra.mxu0 %v3571
    %3573 = vmatprep.subr.mxu0 0.0
    %v3574 = vand.u32 %v186, 4294901760
    %3575 = vmatpush1.msra.mxu0 %v3574
    %3576 = vmatprep.subr.mxu0 0.0
    %v3577 = vand.u32 %v187, 4294901760
    %3578 = vmatpush1.msra.mxu0 %v3577
    %3579 = vmatprep.subr.mxu0 0.0
    %v3580 = vand.u32 %v188, 4294901760
    %3581 = vmatpush1.msra.mxu0 %v3580
    %3582 = vmatprep.subr.mxu0 0.0
    %v3583 = vand.u32 %v189, 4294901760
    %3584 = vmatpush1.msra.mxu0 %v3583
    %3585 = vmatprep.subr.mxu0 0.0
    %v3586 = vand.u32 %v190, 4294901760
    %3587 = vmatpush1.msra.mxu0 %v3586
    %3588 = vmatprep.subr.mxu0 0.0
    %v3589 = vand.u32 %v191, 4294901760
    %3590 = vmatpush1.msra.mxu0 %v3589
    %3591 = vmatprep.subr.mxu0 0.0
    %v3592 = vand.u32 %v192, 4294901760
    %3593 = vmatpush1.msra.mxu0 %v3592
    %3594 = vmatprep.subr.mxu0 0.0
    %v3595 = vand.u32 %v193, 4294901760
    %3596 = vmatpush1.msra.mxu0 %v3595
    %3597 = vmatprep.subr.mxu0 0.0
    %v3598 = vand.u32 %v194, 4294901760
    %3599 = vmatpush1.msra.mxu0 %v3598
    %3600 = vmatprep.subr.mxu0 0.0
    %v3601 = vand.u32 %v195, 4294901760
    %3602 = vmatpush1.msra.mxu0 %v3601
    %3603 = vmatprep.subr.mxu0 0.0
    %v3604 = vand.u32 %v196, 4294901760
    %3605 = vmatpush1.msra.mxu0 %v3604
    %3606 = vmatprep.subr.mxu0 0.0
    %v3607 = vand.u32 %v197, 4294901760
    %3608 = vmatpush1.msra.mxu0 %v3607
    %3609 = vmatprep.subr.mxu0 0.0
    %v3610 = vand.u32 %v198, 4294901760
    %3611 = vmatpush1.msra.mxu0 %v3610
    %3612 = vmatprep.subr.mxu0 0.0
    %v3613 = vand.u32 %v199, 4294901760
    %3614 = vmatpush1.msra.mxu0 %v3613
    %3615 = vmatprep.subr.mxu0 0.0
    %v3616 = vand.u32 %v200, 4294901760
    %3617 = vmatpush1.msra.mxu0 %v3616
    %3618 = vmatprep.subr.mxu0 0.0
    %v3619 = vand.u32 %v201, 4294901760
    %3620 = vmatpush1.msra.mxu0 %v3619
    %3621 = vmatprep.subr.mxu0 0.0
    %v3622 = vand.u32 %v202, 4294901760
    %3623 = vmatpush1.msra.mxu0 %v3622
    %3624 = vmatprep.subr.mxu0 0.0
    %v3625 = vand.u32 %v203, 4294901760
    %3626 = vmatpush1.msra.mxu0 %v3625
    %3627 = vmatprep.subr.mxu0 0.0
    %v3628 = vand.u32 %v204, 4294901760
    %3629 = vmatpush1.msra.mxu0 %v3628
    %3630 = vmatprep.subr.mxu0 0.0
    %v3631 = vand.u32 %v205, 4294901760
    %3632 = vmatpush1.msra.mxu0 %v3631
    %3633 = vmatprep.subr.mxu0 0.0
    %v3634 = vand.u32 %v206, 4294901760
    %3635 = vmatpush1.msra.mxu0 %v3634
    %3636 = vmatprep.subr.mxu0 0.0
    %v3637 = vand.u32 %v207, 4294901760
    %3638 = vmatpush1.msra.mxu0 %v3637
    %3639 = vmatprep.subr.mxu0 0.0
    %v3640 = vand.u32 %v208, 4294901760
    %3641 = vmatpush1.msra.mxu0 %v3640
    %3642 = vmatprep.subr.mxu0 0.0
    %v3643 = vand.u32 %v209, 4294901760
    %3644 = vmatpush1.msra.mxu0 %v3643
    %3645 = vmatprep.subr.mxu0 0.0
    %v3646 = vand.u32 %v210, 4294901760
    %3647 = vmatpush1.msra.mxu0 %v3646
    %3648 = vmatprep.subr.mxu0 0.0
    %v3649 = vand.u32 %v211, 4294901760
    %3650 = vmatpush1.msra.mxu0 %v3649
    %3651 = vmatprep.subr.mxu0 0.0
    %v3652 = vand.u32 %v212, 4294901760
    %3653 = vmatpush1.msra.mxu0 %v3652
    %3654 = vmatprep.subr.mxu0 0.0
    %v3655 = vand.u32 %v213, 4294901760
    %3656 = vmatpush1.msra.mxu0 %v3655
    %3657 = vmatprep.subr.mxu0 0.0
    %v3658 = vand.u32 %v214, 4294901760
    %3659 = vmatpush1.msra.mxu0 %v3658
    %3660 = vmatprep.subr.mxu0 0.0
    %v3661 = vand.u32 %v215, 4294901760
    %3662 = vmatpush1.msra.mxu0 %v3661
    %v3663 = vand.u32 %v87, 4294901760
    %3664 = vmatprep.mubr.f32.mxu0 %v3663
    %v3665 = vand.u32 %v86, 4294901760
    %3666 = vmatmul.mubr.f32.gmra.mrb[0].mxu0 %v3665
    %v3667 = vpop.f32.mrb[0].mxu0
    %v3668 = vadd.f32 %v3564, %v3667
    %v3669 = vpop.f32.mrb[0].mxu0
    %3670 = vdwg.mxu0
    %v3671 = vmax.f32 %v3668, 0.0
    %v3672 = vld [vmem:[#allocation7] sm:$0xff]
    %v3673 = vld [vmem:[#allocation7 + $0x8] sm:$0xff]
    %v3674 = vld [vmem:[#allocation7 + $0x10] sm:$0xff]
    %v3675 = vld [vmem:[#allocation7 + $0x18] sm:$0xff]
    %v3676 = vld [vmem:[#allocation7 + $0x20] sm:$0xff]
    %v3677 = vld [vmem:[#allocation7 + $0x28] sm:$0xff]
    %v3678 = vld [vmem:[#allocation7 + $0x30] sm:$0xff]
    %v3679 = vld [vmem:[#allocation7 + $0x38] sm:$0xff]
    %v3680 = vld [vmem:[#allocation7 + $0x40] sm:$0xff]
    %v3681 = vld [vmem:[#allocation7 + $0x48] sm:$0xff]
    %v3682 = vld [vmem:[#allocation7 + $0x50] sm:$0xff]
    %v3683 = vld [vmem:[#allocation7 + $0x58] sm:$0xff]
    %v3684 = vld [vmem:[#allocation7 + $0x60] sm:$0xff]
    %v3685 = vld [vmem:[#allocation7 + $0x68] sm:$0xff]
    %v3686 = vld [vmem:[#allocation7 + $0x70] sm:$0xff]
    %v3687 = vld [vmem:[#allocation7 + $0x78] sm:$0xff]
    %v3688 = vld [vmem:[%s4] sm:$0x1]
    %v3690 = vlaneseq
    %v3691 = vshrl.u32 %v3690, 7
    %v3692 = vsub.s32 0, %v3691
    %v3693 = vrot.slane %v3688, %v3692
    %3695 = vmatprep.subr.mxu0 0.0
    %v3696 = vand.u32 %v3672, 4294901760
    %3697 = vmatpush1.msra.mxu0 %v3696
    %3698 = vmatprep.subr.mxu0 0.0
    %v3699 = vand.u32 %v3673, 4294901760
    %3700 = vmatpush1.msra.mxu0 %v3699
    %3701 = vmatprep.subr.mxu0 0.0
    %v3702 = vand.u32 %v3674, 4294901760
    %3703 = vmatpush1.msra.mxu0 %v3702
    %3704 = vmatprep.subr.mxu0 0.0
    %v3705 = vand.u32 %v3675, 4294901760
    %3706 = vmatpush1.msra.mxu0 %v3705
    %3707 = vmatprep.subr.mxu0 0.0
    %v3708 = vand.u32 %v3676, 4294901760
    %3709 = vmatpush1.msra.mxu0 %v3708
    %3710 = vmatprep.subr.mxu0 0.0
    %v3711 = vand.u32 %v3677, 4294901760
    %3712 = vmatpush1.msra.mxu0 %v3711
    %3713 = vmatprep.subr.mxu0 0.0
    %v3714 = vand.u32 %v3678, 4294901760
    %3715 = vmatpush1.msra.mxu0 %v3714
    %3716 = vmatprep.subr.mxu0 0.0
    %v3717 = vand.u32 %v3679, 4294901760
    %3718 = vmatpush1.msra.mxu0 %v3717
    %3719 = vmatprep.subr.mxu0 0.0
    %v3720 = vand.u32 %v3680, 4294901760
    %3721 = vmatpush1.msra.mxu0 %v3720
    %3722 = vmatprep.subr.mxu0 0.0
    %v3723 = vand.u32 %v3681, 4294901760
    %3724 = vmatpush1.msra.mxu0 %v3723
    %3725 = vmatprep.subr.mxu0 0.0
    %v3726 = vand.u32 %v3682, 4294901760
    %3727 = vmatpush1.msra.mxu0 %v3726
    %3728 = vmatprep.subr.mxu0 0.0
    %v3729 = vand.u32 %v3683, 4294901760
    %3730 = vmatpush1.msra.mxu0 %v3729
    %3731 = vmatprep.subr.mxu0 0.0
    %v3732 = vand.u32 %v3684, 4294901760
    %3733 = vmatpush1.msra.mxu0 %v3732
    %3734 = vmatprep.subr.mxu0 0.0
    %v3735 = vand.u32 %v3685, 4294901760
    %3736 = vmatpush1.msra.mxu0 %v3735
    %3737 = vmatprep.subr.mxu0 0.0
    %v3738 = vand.u32 %v3686, 4294901760
    %3739 = vmatpush1.msra.mxu0 %v3738
    %3740 = vmatprep.subr.mxu0 0.0
    %v3741 = vand.u32 %v3687, 4294901760
    %3742 = vmatpush1.msra.mxu0 %v3741
    %3743 = vmatprep.subr.mxu0 0.0
    %3744 = vmatpush1.msra.mxu0 0.0
    %3745 = vmatprep.subr.mxu0 0.0
    %3746 = vmatpush1.msra.mxu0 0.0
    %3747 = vmatprep.subr.mxu0 0.0
    %3748 = vmatpush1.msra.mxu0 0.0
    %3749 = vmatprep.subr.mxu0 0.0
    %3750 = vmatpush1.msra.mxu0 0.0
    %3751 = vmatprep.subr.mxu0 0.0
    %3752 = vmatpush1.msra.mxu0 0.0
    %3753 = vmatprep.subr.mxu0 0.0
    %3754 = vmatpush1.msra.mxu0 0.0
    %3755 = vmatprep.subr.mxu0 0.0
    %3756 = vmatpush1.msra.mxu0 0.0
    %3757 = vmatprep.subr.mxu0 0.0
    %3758 = vmatpush1.msra.mxu0 0.0
    %3759 = vmatprep.subr.mxu0 0.0
    %3760 = vmatpush1.msra.mxu0 0.0
    %3761 = vmatprep.subr.mxu0 0.0
    %3762 = vmatpush1.msra.mxu0 0.0
    %3763 = vmatprep.subr.mxu0 0.0
    %3764 = vmatpush1.msra.mxu0 0.0
    %3765 = vmatprep.subr.mxu0 0.0
    %3766 = vmatpush1.msra.mxu0 0.0
    %3767 = vmatprep.subr.mxu0 0.0
    %3768 = vmatpush1.msra.mxu0 0.0
    %3769 = vmatprep.subr.mxu0 0.0
    %3770 = vmatpush1.msra.mxu0 0.0
    %3771 = vmatprep.subr.mxu0 0.0
    %3772 = vmatpush1.msra.mxu0 0.0
    %3773 = vmatprep.subr.mxu0 0.0
    %3774 = vmatpush1.msra.mxu0 0.0
    %3775 = vmatprep.mubr.f32.mxu0 0.0
    %v3776 = vand.u32 %v3671, 4294901760
    %v3777 = vsub.f32 %v3671, %v3776
    %v3778 = vand.u32 %v3777, 4294901760
    %v3779 = vsub.f32 %v3777, %v3778
    %v3780 = vand.u32 %v3779, 4294901760
    %3781 = vmatmul.mubr.f32.gmra.mrb[0].mxu0 %v3780
    %v3782 = vpop.f32.mrb[0].mxu0
    %v3783 = vadd.f32 %v3693, %v3782
    %v3784 = vpop.f32.mrb[0].mxu0
    %3785 = vdwg.mxu0
    %3786 = vmatprep.subr.mxu0 0.0
    %v3787 = vand.u32 %v3672, 4294901760
    %v3788 = vsub.f32 %v3672, %v3787
    %v3789 = vand.u32 %v3788, 4294901760
    %v3790 = vsub.f32 %v3788, %v3789
    %v3791 = vand.u32 %v3790, 4294901760
    %3792 = vmatpush1.msra.mxu0 %v3791
    %3793 = vmatprep.subr.mxu0 0.0
    %v3794 = vand.u32 %v3673, 4294901760
    %v3795 = vsub.f32 %v3673, %v3794
    %v3796 = vand.u32 %v3795, 4294901760
    %v3797 = vsub.f32 %v3795, %v3796
    %v3798 = vand.u32 %v3797, 4294901760
    %3799 = vmatpush1.msra.mxu0 %v3798
    %3800 = vmatprep.subr.mxu0 0.0
    %v3801 = vand.u32 %v3674, 4294901760
    %v3802 = vsub.f32 %v3674, %v3801
    %v3803 = vand.u32 %v3802, 4294901760
    %v3804 = vsub.f32 %v3802, %v3803
    %v3805 = vand.u32 %v3804, 4294901760
    %3806 = vmatpush1.msra.mxu0 %v3805
    %3807 = vmatprep.subr.mxu0 0.0
    %v3808 = vand.u32 %v3675, 4294901760
    %v3809 = vsub.f32 %v3675, %v3808
    %v3810 = vand.u32 %v3809, 4294901760
    %v3811 = vsub.f32 %v3809, %v3810
    %v3812 = vand.u32 %v3811, 4294901760
    %3813 = vmatpush1.msra.mxu0 %v3812
    %3814 = vmatprep.subr.mxu0 0.0
    %v3815 = vand.u32 %v3676, 4294901760
    %v3816 = vsub.f32 %v3676, %v3815
    %v3817 = vand.u32 %v3816, 4294901760
    %v3818 = vsub.f32 %v3816, %v3817
    %v3819 = vand.u32 %v3818, 4294901760
    %3820 = vmatpush1.msra.mxu0 %v3819
    %3821 = vmatprep.subr.mxu0 0.0
    %v3822 = vand.u32 %v3677, 4294901760
    %v3823 = vsub.f32 %v3677, %v3822
    %v3824 = vand.u32 %v3823, 4294901760
    %v3825 = vsub.f32 %v3823, %v3824
    %v3826 = vand.u32 %v3825, 4294901760
    %3827 = vmatpush1.msra.mxu0 %v3826
    %3828 = vmatprep.subr.mxu0 0.0
    %v3829 = vand.u32 %v3678, 4294901760
    %v3830 = vsub.f32 %v3678, %v3829
    %v3831 = vand.u32 %v3830, 4294901760
    %v3832 = vsub.f32 %v3830, %v3831
    %v3833 = vand.u32 %v3832, 4294901760
    %3834 = vmatpush1.msra.mxu0 %v3833
    %3835 = vmatprep.subr.mxu0 0.0
    %v3836 = vand.u32 %v3679, 4294901760
    %v3837 = vsub.f32 %v3679, %v3836
    %v3838 = vand.u32 %v3837, 4294901760
    %v3839 = vsub.f32 %v3837, %v3838
    %v3840 = vand.u32 %v3839, 4294901760
    %3841 = vmatpush1.msra.mxu0 %v3840
    %3842 = vmatprep.subr.mxu0 0.0
    %v3843 = vand.u32 %v3680, 4294901760
    %v3844 = vsub.f32 %v3680, %v3843
    %v3845 = vand.u32 %v3844, 4294901760
    %v3846 = vsub.f32 %v3844, %v3845
    %v3847 = vand.u32 %v3846, 4294901760
    %3848 = vmatpush1.msra.mxu0 %v3847
    %3849 = vmatprep.subr.mxu0 0.0
    %v3850 = vand.u32 %v3681, 4294901760
    %v3851 = vsub.f32 %v3681, %v3850
    %v3852 = vand.u32 %v3851, 4294901760
    %v3853 = vsub.f32 %v3851, %v3852
    %v3854 = vand.u32 %v3853, 4294901760
    %3855 = vmatpush1.msra.mxu0 %v3854
    %3856 = vmatprep.subr.mxu0 0.0
    %v3857 = vand.u32 %v3682, 4294901760
    %v3858 = vsub.f32 %v3682, %v3857
    %v3859 = vand.u32 %v3858, 4294901760
    %v3860 = vsub.f32 %v3858, %v3859
    %v3861 = vand.u32 %v3860, 4294901760
    %3862 = vmatpush1.msra.mxu0 %v3861
    %3863 = vmatprep.subr.mxu0 0.0
    %v3864 = vand.u32 %v3683, 4294901760
    %v3865 = vsub.f32 %v3683, %v3864
    %v3866 = vand.u32 %v3865, 4294901760
    %v3867 = vsub.f32 %v3865, %v3866
    %v3868 = vand.u32 %v3867, 4294901760
    %3869 = vmatpush1.msra.mxu0 %v3868
    %3870 = vmatprep.subr.mxu0 0.0
    %v3871 = vand.u32 %v3684, 4294901760
    %v3872 = vsub.f32 %v3684, %v3871
    %v3873 = vand.u32 %v3872, 4294901760
    %v3874 = vsub.f32 %v3872, %v3873
    %v3875 = vand.u32 %v3874, 4294901760
    %3876 = vmatpush1.msra.mxu0 %v3875
    %3877 = vmatprep.subr.mxu0 0.0
    %v3878 = vand.u32 %v3685, 4294901760
    %v3879 = vsub.f32 %v3685, %v3878
    %v3880 = vand.u32 %v3879, 4294901760
    %v3881 = vsub.f32 %v3879, %v3880
    %v3882 = vand.u32 %v3881, 4294901760
    %3883 = vmatpush1.msra.mxu0 %v3882
    %3884 = vmatprep.subr.mxu0 0.0
    %v3885 = vand.u32 %v3686, 4294901760
    %v3886 = vsub.f32 %v3686, %v3885
    %v3887 = vand.u32 %v3886, 4294901760
    %v3888 = vsub.f32 %v3886, %v3887
    %v3889 = vand.u32 %v3888, 4294901760
    %3890 = vmatpush1.msra.mxu0 %v3889
    %3891 = vmatprep.subr.mxu0 0.0
    %v3892 = vand.u32 %v3687, 4294901760
    %v3893 = vsub.f32 %v3687, %v3892
    %v3894 = vand.u32 %v3893, 4294901760
    %v3895 = vsub.f32 %v3893, %v3894
    %v3896 = vand.u32 %v3895, 4294901760
    %3897 = vmatpush1.msra.mxu0 %v3896
    %3898 = vmatprep.subr.mxu0 0.0
    %3899 = vmatpush1.msra.mxu0 0.0
    %3900 = vmatprep.subr.mxu0 0.0
    %3901 = vmatpush1.msra.mxu0 0.0
    %3902 = vmatprep.subr.mxu0 0.0
    %3903 = vmatpush1.msra.mxu0 0.0
    %3904 = vmatprep.subr.mxu0 0.0
    %3905 = vmatpush1.msra.mxu0 0.0
    %3906 = vmatprep.subr.mxu0 0.0
    %3907 = vmatpush1.msra.mxu0 0.0
    %3908 = vmatprep.subr.mxu0 0.0
    %3909 = vmatpush1.msra.mxu0 0.0
    %3910 = vmatprep.subr.mxu0 0.0
    %3911 = vmatpush1.msra.mxu0 0.0
    %3912 = vmatprep.subr.mxu0 0.0
    %3913 = vmatpush1.msra.mxu0 0.0
    %3914 = vmatprep.subr.mxu0 0.0
    %3915 = vmatpush1.msra.mxu0 0.0
    %3916 = vmatprep.subr.mxu0 0.0
    %3917 = vmatpush1.msra.mxu0 0.0
    %3918 = vmatprep.subr.mxu0 0.0
    %3919 = vmatpush1.msra.mxu0 0.0
    %3920 = vmatprep.subr.mxu0 0.0
    %3921 = vmatpush1.msra.mxu0 0.0
    %3922 = vmatprep.subr.mxu0 0.0
    %3923 = vmatpush1.msra.mxu0 0.0
    %3924 = vmatprep.subr.mxu0 0.0
    %3925 = vmatpush1.msra.mxu0 0.0
    %3926 = vmatprep.subr.mxu0 0.0
    %3927 = vmatpush1.msra.mxu0 0.0
    %3928 = vmatprep.subr.mxu0 0.0
    %3929 = vmatpush1.msra.mxu0 0.0
    %3930 = vmatprep.mubr.f32.mxu0 0.0
    %v3931 = vand.u32 %v3671, 4294901760
    %3932 = vmatmul.mubr.f32.gmra.mrb[0].mxu0 %v3931
    %v3933 = vpop.f32.mrb[0].mxu0
    %v3934 = vadd.f32 %v3783, %v3933
    %v3935 = vpop.f32.mrb[0].mxu0
    %3936 = vdwg.mxu0
    %3937 = vmatprep.subr.mxu0 0.0
    %v3938 = vand.u32 %v3672, 4294901760
    %v3939 = vsub.f32 %v3672, %v3938
    %3940 = vmatpush1.msra.mxu0 %v3939
    %3941 = vmatprep.subr.mxu0 0.0
    %v3942 = vand.u32 %v3673, 4294901760
    %v3943 = vsub.f32 %v3673, %v3942
    %3944 = vmatpush1.msra.mxu0 %v3943
    %3945 = vmatprep.subr.mxu0 0.0
    %v3946 = vand.u32 %v3674, 4294901760
    %v3947 = vsub.f32 %v3674, %v3946
    %3948 = vmatpush1.msra.mxu0 %v3947
    %3949 = vmatprep.subr.mxu0 0.0
    %v3950 = vand.u32 %v3675, 4294901760
    %v3951 = vsub.f32 %v3675, %v3950
    %3952 = vmatpush1.msra.mxu0 %v3951
    %3953 = vmatprep.subr.mxu0 0.0
    %v3954 = vand.u32 %v3676, 4294901760
    %v3955 = vsub.f32 %v3676, %v3954
    %3956 = vmatpush1.msra.mxu0 %v3955
    %3957 = vmatprep.subr.mxu0 0.0
    %v3958 = vand.u32 %v3677, 4294901760
    %v3959 = vsub.f32 %v3677, %v3958
    %3960 = vmatpush1.msra.mxu0 %v3959
    %3961 = vmatprep.subr.mxu0 0.0
    %v3962 = vand.u32 %v3678, 4294901760
    %v3963 = vsub.f32 %v3678, %v3962
    %3964 = vmatpush1.msra.mxu0 %v3963
    %3965 = vmatprep.subr.mxu0 0.0
    %v3966 = vand.u32 %v3679, 4294901760
    %v3967 = vsub.f32 %v3679, %v3966
    %3968 = vmatpush1.msra.mxu0 %v3967
    %3969 = vmatprep.subr.mxu0 0.0
    %v3970 = vand.u32 %v3680, 4294901760
    %v3971 = vsub.f32 %v3680, %v3970
    %3972 = vmatpush1.msra.mxu0 %v3971
    %3973 = vmatprep.subr.mxu0 0.0
    %v3974 = vand.u32 %v3681, 4294901760
    %v3975 = vsub.f32 %v3681, %v3974
    %3976 = vmatpush1.msra.mxu0 %v3975
    %3977 = vmatprep.subr.mxu0 0.0
    %v3978 = vand.u32 %v3682, 4294901760
    %v3979 = vsub.f32 %v3682, %v3978
    %3980 = vmatpush1.msra.mxu0 %v3979
    %3981 = vmatprep.subr.mxu0 0.0
    %v3982 = vand.u32 %v3683, 4294901760
    %v3983 = vsub.f32 %v3683, %v3982
    %3984 = vmatpush1.msra.mxu0 %v3983
    %3985 = vmatprep.subr.mxu0 0.0
    %v3986 = vand.u32 %v3684, 4294901760
    %v3987 = vsub.f32 %v3684, %v3986
    %3988 = vmatpush1.msra.mxu0 %v3987
    %3989 = vmatprep.subr.mxu0 0.0
    %v3990 = vand.u32 %v3685, 4294901760
    %v3991 = vsub.f32 %v3685, %v3990
    %3992 = vmatpush1.msra.mxu0 %v3991
    %3993 = vmatprep.subr.mxu0 0.0
    %v3994 = vand.u32 %v3686, 4294901760
    %v3995 = vsub.f32 %v3686, %v3994
    %3996 = vmatpush1.msra.mxu0 %v3995
    %3997 = vmatprep.subr.mxu0 0.0
    %v3998 = vand.u32 %v3687, 4294901760
    %v3999 = vsub.f32 %v3687, %v3998
    %4000 = vmatpush1.msra.mxu0 %v3999
    %4001 = vmatprep.subr.mxu0 0.0
    %4002 = vmatpush1.msra.mxu0 0.0
    %4003 = vmatprep.subr.mxu0 0.0
    %4004 = vmatpush1.msra.mxu0 0.0
    %4005 = vmatprep.subr.mxu0 0.0
    %4006 = vmatpush1.msra.mxu0 0.0
    %4007 = vmatprep.subr.mxu0 0.0
    %4008 = vmatpush1.msra.mxu0 0.0
    %4009 = vmatprep.subr.mxu0 0.0
    %4010 = vmatpush1.msra.mxu0 0.0
    %4011 = vmatprep.subr.mxu0 0.0
    %4012 = vmatpush1.msra.mxu0 0.0
    %4013 = vmatprep.subr.mxu0 0.0
    %4014 = vmatpush1.msra.mxu0 0.0
    %4015 = vmatprep.subr.mxu0 0.0
    %4016 = vmatpush1.msra.mxu0 0.0
    %4017 = vmatprep.subr.mxu0 0.0
    %4018 = vmatpush1.msra.mxu0 0.0
    %4019 = vmatprep.subr.mxu0 0.0
    %4020 = vmatpush1.msra.mxu0 0.0
    %4021 = vmatprep.subr.mxu0 0.0
    %4022 = vmatpush1.msra.mxu0 0.0
    %4023 = vmatprep.subr.mxu0 0.0
    %4024 = vmatpush1.msra.mxu0 0.0
    %4025 = vmatprep.subr.mxu0 0.0
    %4026 = vmatpush1.msra.mxu0 0.0
    %4027 = vmatprep.subr.mxu0 0.0
    %4028 = vmatpush1.msra.mxu0 0.0
    %4029 = vmatprep.subr.mxu0 0.0
    %4030 = vmatpush1.msra.mxu0 0.0
    %4031 = vmatprep.subr.mxu0 0.0
    %4032 = vmatpush1.msra.mxu0 0.0
    %4033 = vmatprep.mubr.f32.mxu0 0.0
    %v4034 = vand.u32 %v3671, 4294901760
    %v4035 = vsub.f32 %v3671, %v4034
    %4036 = vmatmul.mubr.f32.gmra.mrb[0].mxu0 %v4035
    %v4037 = vpop.f32.mrb[0].mxu0
    %v4038 = vadd.f32 %v3934, %v4037
    %v4039 = vpop.f32.mrb[0].mxu0
    %4040 = vdwg.mxu0
    %4041 = vmatprep.subr.mxu0 0.0
    %v4042 = vand.u32 %v3672, 4294901760
    %4043 = vmatpush1.msra.mxu0 %v4042
    %4044 = vmatprep.subr.mxu0 0.0
    %v4045 = vand.u32 %v3673, 4294901760
    %4046 = vmatpush1.msra.mxu0 %v4045
    %4047 = vmatprep.subr.mxu0 0.0
    %v4048 = vand.u32 %v3674, 4294901760
    %4049 = vmatpush1.msra.mxu0 %v4048
    %4050 = vmatprep.subr.mxu0 0.0
    %v4051 = vand.u32 %v3675, 4294901760
    %4052 = vmatpush1.msra.mxu0 %v4051
    %4053 = vmatprep.subr.mxu0 0.0
    %v4054 = vand.u32 %v3676, 4294901760
    %4055 = vmatpush1.msra.mxu0 %v4054
    %4056 = vmatprep.subr.mxu0 0.0
    %v4057 = vand.u32 %v3677, 4294901760
    %4058 = vmatpush1.msra.mxu0 %v4057
    %4059 = vmatprep.subr.mxu0 0.0
    %v4060 = vand.u32 %v3678, 4294901760
    %4061 = vmatpush1.msra.mxu0 %v4060
    %4062 = vmatprep.subr.mxu0 0.0
    %v4063 = vand.u32 %v3679, 4294901760
    %4064 = vmatpush1.msra.mxu0 %v4063
    %4065 = vmatprep.subr.mxu0 0.0
    %v4066 = vand.u32 %v3680, 4294901760
    %4067 = vmatpush1.msra.mxu0 %v4066
    %4068 = vmatprep.subr.mxu0 0.0
    %v4069 = vand.u32 %v3681, 4294901760
    %4070 = vmatpush1.msra.mxu0 %v4069
    %4071 = vmatprep.subr.mxu0 0.0
    %v4072 = vand.u32 %v3682, 4294901760
    %4073 = vmatpush1.msra.mxu0 %v4072
    %4074 = vmatprep.subr.mxu0 0.0
    %v4075 = vand.u32 %v3683, 4294901760
    %4076 = vmatpush1.msra.mxu0 %v4075
    %4077 = vmatprep.subr.mxu0 0.0
    %v4078 = vand.u32 %v3684, 4294901760
    %4079 = vmatpush1.msra.mxu0 %v4078
    %4080 = vmatprep.subr.mxu0 0.0
    %v4081 = vand.u32 %v3685, 4294901760
    %4082 = vmatpush1.msra.mxu0 %v4081
    %4083 = vmatprep.subr.mxu0 0.0
    %v4084 = vand.u32 %v3686, 4294901760
    %4085 = vmatpush1.msra.mxu0 %v4084
    %4086 = vmatprep.subr.mxu0 0.0
    %v4087 = vand.u32 %v3687, 4294901760
    %4088 = vmatpush1.msra.mxu0 %v4087
    %4089 = vmatprep.subr.mxu0 0.0
    %4090 = vmatpush1.msra.mxu0 0.0
    %4091 = vmatprep.subr.mxu0 0.0
    %4092 = vmatpush1.msra.mxu0 0.0
    %4093 = vmatprep.subr.mxu0 0.0
    %4094 = vmatpush1.msra.mxu0 0.0
    %4095 = vmatprep.subr.mxu0 0.0
    %4096 = vmatpush1.msra.mxu0 0.0
    %4097 = vmatprep.subr.mxu0 0.0
    %4098 = vmatpush1.msra.mxu0 0.0
    %4099 = vmatprep.subr.mxu0 0.0
    %4100 = vmatpush1.msra.mxu0 0.0
    %4101 = vmatprep.subr.mxu0 0.0
    %4102 = vmatpush1.msra.mxu0 0.0
    %4103 = vmatprep.subr.mxu0 0.0
    %4104 = vmatpush1.msra.mxu0 0.0
    %4105 = vmatprep.subr.mxu0 0.0
    %4106 = vmatpush1.msra.mxu0 0.0
    %4107 = vmatprep.subr.mxu0 0.0
    %4108 = vmatpush1.msra.mxu0 0.0
    %4109 = vmatprep.subr.mxu0 0.0
    %4110 = vmatpush1.msra.mxu0 0.0
    %4111 = vmatprep.subr.mxu0 0.0
    %4112 = vmatpush1.msra.mxu0 0.0
    %4113 = vmatprep.subr.mxu0 0.0
    %4114 = vmatpush1.msra.mxu0 0.0
    %4115 = vmatprep.subr.mxu0 0.0
    %4116 = vmatpush1.msra.mxu0 0.0
    %4117 = vmatprep.subr.mxu0 0.0
    %4118 = vmatpush1.msra.mxu0 0.0
    %4119 = vmatprep.subr.mxu0 0.0
    %4120 = vmatpush1.msra.mxu0 0.0
    %4121 = vmatprep.mubr.f32.mxu0 0.0
    %v4122 = vand.u32 %v3671, 4294901760
    %v4123 = vsub.f32 %v3671, %v4122
    %v4124 = vand.u32 %v4123, 4294901760
    %4125 = vmatmul.mubr.f32.gmra.mrb[0].mxu0 %v4124
    %v4126 = vpop.f32.mrb[0].mxu0
    %v4127 = vadd.f32 %v4038, %v4126
    %v4128 = vpop.f32.mrb[0].mxu0
    %4129 = vdwg.mxu0
    %4130 = vmatprep.subr.mxu0 0.0
    %v4131 = vand.u32 %v3672, 4294901760
    %v4132 = vsub.f32 %v3672, %v4131
    %v4133 = vand.u32 %v4132, 4294901760
    %4134 = vmatpush1.msra.mxu0 %v4133
    %4135 = vmatprep.subr.mxu0 0.0
    %v4136 = vand.u32 %v3673, 4294901760
    %v4137 = vsub.f32 %v3673, %v4136
    %v4138 = vand.u32 %v4137, 4294901760
    %4139 = vmatpush1.msra.mxu0 %v4138
    %4140 = vmatprep.subr.mxu0 0.0
    %v4141 = vand.u32 %v3674, 4294901760
    %v4142 = vsub.f32 %v3674, %v4141
    %v4143 = vand.u32 %v4142, 4294901760
    %4144 = vmatpush1.msra.mxu0 %v4143
    %4145 = vmatprep.subr.mxu0 0.0
    %v4146 = vand.u32 %v3675, 4294901760
    %v4147 = vsub.f32 %v3675, %v4146
    %v4148 = vand.u32 %v4147, 4294901760
    %4149 = vmatpush1.msra.mxu0 %v4148
    %4150 = vmatprep.subr.mxu0 0.0
    %v4151 = vand.u32 %v3676, 4294901760
    %v4152 = vsub.f32 %v3676, %v4151
    %v4153 = vand.u32 %v4152, 4294901760
    %4154 = vmatpush1.msra.mxu0 %v4153
    %4155 = vmatprep.subr.mxu0 0.0
    %v4156 = vand.u32 %v3677, 4294901760
    %v4157 = vsub.f32 %v3677, %v4156
    %v4158 = vand.u32 %v4157, 4294901760
    %4159 = vmatpush1.msra.mxu0 %v4158
    %4160 = vmatprep.subr.mxu0 0.0
    %v4161 = vand.u32 %v3678, 4294901760
    %v4162 = vsub.f32 %v3678, %v4161
    %v4163 = vand.u32 %v4162, 4294901760
    %4164 = vmatpush1.msra.mxu0 %v4163
    %4165 = vmatprep.subr.mxu0 0.0
    %v4166 = vand.u32 %v3679, 4294901760
    %v4167 = vsub.f32 %v3679, %v4166
    %v4168 = vand.u32 %v4167, 4294901760
    %4169 = vmatpush1.msra.mxu0 %v4168
    %4170 = vmatprep.subr.mxu0 0.0
    %v4171 = vand.u32 %v3680, 4294901760
    %v4172 = vsub.f32 %v3680, %v4171
    %v4173 = vand.u32 %v4172, 4294901760
    %4174 = vmatpush1.msra.mxu0 %v4173
    %4175 = vmatprep.subr.mxu0 0.0
    %v4176 = vand.u32 %v3681, 4294901760
    %v4177 = vsub.f32 %v3681, %v4176
    %v4178 = vand.u32 %v4177, 4294901760
    %4179 = vmatpush1.msra.mxu0 %v4178
    %4180 = vmatprep.subr.mxu0 0.0
    %v4181 = vand.u32 %v3682, 4294901760
    %v4182 = vsub.f32 %v3682, %v4181
    %v4183 = vand.u32 %v4182, 4294901760
    %4184 = vmatpush1.msra.mxu0 %v4183
    %4185 = vmatprep.subr.mxu0 0.0
    %v4186 = vand.u32 %v3683, 4294901760
    %v4187 = vsub.f32 %v3683, %v4186
    %v4188 = vand.u32 %v4187, 4294901760
    %4189 = vmatpush1.msra.mxu0 %v4188
    %4190 = vmatprep.subr.mxu0 0.0
    %v4191 = vand.u32 %v3684, 4294901760
    %v4192 = vsub.f32 %v3684, %v4191
    %v4193 = vand.u32 %v4192, 4294901760
    %4194 = vmatpush1.msra.mxu0 %v4193
    %4195 = vmatprep.subr.mxu0 0.0
    %v4196 = vand.u32 %v3685, 4294901760
    %v4197 = vsub.f32 %v3685, %v4196
    %v4198 = vand.u32 %v4197, 4294901760
    %4199 = vmatpush1.msra.mxu0 %v4198
    %4200 = vmatprep.subr.mxu0 0.0
    %v4201 = vand.u32 %v3686, 4294901760
    %v4202 = vsub.f32 %v3686, %v4201
    %v4203 = vand.u32 %v4202, 4294901760
    %4204 = vmatpush1.msra.mxu0 %v4203
    %4205 = vmatprep.subr.mxu0 0.0
    %v4206 = vand.u32 %v3687, 4294901760
    %v4207 = vsub.f32 %v3687, %v4206
    %v4208 = vand.u32 %v4207, 4294901760
    %4209 = vmatpush1.msra.mxu0 %v4208
    %4210 = vmatprep.subr.mxu0 0.0
    %4211 = vmatpush1.msra.mxu0 0.0
    %4212 = vmatprep.subr.mxu0 0.0
    %4213 = vmatpush1.msra.mxu0 0.0
    %4214 = vmatprep.subr.mxu0 0.0
    %4215 = vmatpush1.msra.mxu0 0.0
    %4216 = vmatprep.subr.mxu0 0.0
    %4217 = vmatpush1.msra.mxu0 0.0
    %4218 = vmatprep.subr.mxu0 0.0
    %4219 = vmatpush1.msra.mxu0 0.0
    %4220 = vmatprep.subr.mxu0 0.0
    %4221 = vmatpush1.msra.mxu0 0.0
    %4222 = vmatprep.subr.mxu0 0.0
    %4223 = vmatpush1.msra.mxu0 0.0
    %4224 = vmatprep.subr.mxu0 0.0
    %4225 = vmatpush1.msra.mxu0 0.0
    %4226 = vmatprep.subr.mxu0 0.0
    %4227 = vmatpush1.msra.mxu0 0.0
    %4228 = vmatprep.subr.mxu0 0.0
    %4229 = vmatpush1.msra.mxu0 0.0
    %4230 = vmatprep.subr.mxu0 0.0
    %4231 = vmatpush1.msra.mxu0 0.0
    %4232 = vmatprep.subr.mxu0 0.0
    %4233 = vmatpush1.msra.mxu0 0.0
    %4234 = vmatprep.subr.mxu0 0.0
    %4235 = vmatpush1.msra.mxu0 0.0
    %4236 = vmatprep.subr.mxu0 0.0
    %4237 = vmatpush1.msra.mxu0 0.0
    %4238 = vmatprep.subr.mxu0 0.0
    %4239 = vmatpush1.msra.mxu0 0.0
    %4240 = vmatprep.subr.mxu0 0.0
    %4241 = vmatpush1.msra.mxu0 0.0
    %4242 = vmatprep.mubr.f32.mxu0 0.0
    %v4243 = vand.u32 %v3671, 4294901760
    %4244 = vmatmul.mubr.f32.gmra.mrb[0].mxu0 %v4243
    %v4245 = vpop.f32.mrb[0].mxu0
    %v4246 = vadd.f32 %v4127, %v4245
    %v4247 = vpop.f32.mrb[0].mxu0
    %4248 = vdwg.mxu0
    %4249 = vmatprep.subr.mxu0 0.0
    %v4250 = vand.u32 %v3672, 4294901760
    %4251 = vmatpush1.msra.mxu0 %v4250
    %4252 = vmatprep.subr.mxu0 0.0
    %v4253 = vand.u32 %v3673, 4294901760
    %4254 = vmatpush1.msra.mxu0 %v4253
    %4255 = vmatprep.subr.mxu0 0.0
    %v4256 = vand.u32 %v3674, 4294901760
    %4257 = vmatpush1.msra.mxu0 %v4256
    %4258 = vmatprep.subr.mxu0 0.0
    %v4259 = vand.u32 %v3675, 4294901760
    %4260 = vmatpush1.msra.mxu0 %v4259
    %4261 = vmatprep.subr.mxu0 0.0
    %v4262 = vand.u32 %v3676, 4294901760
    %4263 = vmatpush1.msra.mxu0 %v4262
    %4264 = vmatprep.subr.mxu0 0.0
    %v4265 = vand.u32 %v3677, 4294901760
    %4266 = vmatpush1.msra.mxu0 %v4265
    %4267 = vmatprep.subr.mxu0 0.0
    %v4268 = vand.u32 %v3678, 4294901760
    %4269 = vmatpush1.msra.mxu0 %v4268
    %4270 = vmatprep.subr.mxu0 0.0
    %v4271 = vand.u32 %v3679, 4294901760
    %4272 = vmatpush1.msra.mxu0 %v4271
    %4273 = vmatprep.subr.mxu0 0.0
    %v4274 = vand.u32 %v3680, 4294901760
    %4275 = vmatpush1.msra.mxu0 %v4274
    %4276 = vmatprep.subr.mxu0 0.0
    %v4277 = vand.u32 %v3681, 4294901760
    %4278 = vmatpush1.msra.mxu0 %v4277
    %4279 = vmatprep.subr.mxu0 0.0
    %v4280 = vand.u32 %v3682, 4294901760
    %4281 = vmatpush1.msra.mxu0 %v4280
    %4282 = vmatprep.subr.mxu0 0.0
    %v4283 = vand.u32 %v3683, 4294901760
    %4284 = vmatpush1.msra.mxu0 %v4283
    %4285 = vmatprep.subr.mxu0 0.0
    %v4286 = vand.u32 %v3684, 4294901760
    %4287 = vmatpush1.msra.mxu0 %v4286
    %4288 = vmatprep.subr.mxu0 0.0
    %v4289 = vand.u32 %v3685, 4294901760
    %4290 = vmatpush1.msra.mxu0 %v4289
    %4291 = vmatprep.subr.mxu0 0.0
    %v4292 = vand.u32 %v3686, 4294901760
    %4293 = vmatpush1.msra.mxu0 %v4292
    %4294 = vmatprep.subr.mxu0 0.0
    %v4295 = vand.u32 %v3687, 4294901760
    %4296 = vmatpush1.msra.mxu0 %v4295
    %4297 = vmatprep.subr.mxu0 0.0
    %4298 = vmatpush1.msra.mxu0 0.0
    %4299 = vmatprep.subr.mxu0 0.0
    %4300 = vmatpush1.msra.mxu0 0.0
    %4301 = vmatprep.subr.mxu0 0.0
    %4302 = vmatpush1.msra.mxu0 0.0
    %4303 = vmatprep.subr.mxu0 0.0
    %4304 = vmatpush1.msra.mxu0 0.0
    %4305 = vmatprep.subr.mxu0 0.0
    %4306 = vmatpush1.msra.mxu0 0.0
    %4307 = vmatprep.subr.mxu0 0.0
    %4308 = vmatpush1.msra.mxu0 0.0
    %4309 = vmatprep.subr.mxu0 0.0
    %4310 = vmatpush1.msra.mxu0 0.0
    %4311 = vmatprep.subr.mxu0 0.0
    %4312 = vmatpush1.msra.mxu0 0.0
    %4313 = vmatprep.subr.mxu0 0.0
    %4314 = vmatpush1.msra.mxu0 0.0
    %4315 = vmatprep.subr.mxu0 0.0
    %4316 = vmatpush1.msra.mxu0 0.0
    %4317 = vmatprep.subr.mxu0 0.0
    %4318 = vmatpush1.msra.mxu0 0.0
    %4319 = vmatprep.subr.mxu0 0.0
    %4320 = vmatpush1.msra.mxu0 0.0
    %4321 = vmatprep.subr.mxu0 0.0
    %4322 = vmatpush1.msra.mxu0 0.0
    %4323 = vmatprep.subr.mxu0 0.0
    %4324 = vmatpush1.msra.mxu0 0.0
    %4325 = vmatprep.subr.mxu0 0.0
    %4326 = vmatpush1.msra.mxu0 0.0
    %4327 = vmatprep.subr.mxu0 0.0
    %4328 = vmatpush1.msra.mxu0 0.0
    %4329 = vmatprep.mubr.f32.mxu0 0.0
    %v4330 = vand.u32 %v3671, 4294901760
    %4331 = vmatmul.mubr.f32.gmra.mrb[0].mxu0 %v4330
    %v4332 = vpop.f32.mrb[0].mxu0
    %v4333 = vadd.f32 %v4246, %v4332
    %v4334 = vpop.f32.mrb[0].mxu0
    %4335 = vdwg.mxu0
    %v4336 = vmax.f32 %v4333, 0.0
    %v4337 = vld [vmem:[#allocation8] sm:$0xff]
    %v4338 = vld [vmem:[#allocation8 + $0x8] sm:$0xff]
    %v4339 = vld [vmem:[#allocation8 + $0x10] sm:$0xff]
    %v4340 = vld [vmem:[#allocation8 + $0x18] sm:$0xff]
    %v4341 = vld [vmem:[#allocation8 + $0x20] sm:$0xff]
    %v4342 = vld [vmem:[#allocation8 + $0x28] sm:$0xff]
    %v4343 = vld [vmem:[#allocation8 + $0x30] sm:$0xff]
    %v4344 = vld [vmem:[#allocation8 + $0x38] sm:$0xff]
    %v4345 = vld [vmem:[#allocation8 + $0x40] sm:$0xff]
    %v4346 = vld [vmem:[#allocation8 + $0x48] sm:$0xff]
    %v4347 = vld [vmem:[#allocation8 + $0x50] sm:$0xff]
    %v4348 = vld [vmem:[#allocation8 + $0x58] sm:$0xff]
    %v4349 = vld [vmem:[#allocation8 + $0x60] sm:$0xff]
    %v4350 = vld [vmem:[#allocation8 + $0x68] sm:$0xff]
    %v4351 = vld [vmem:[#allocation8 + $0x70] sm:$0xff]
    %v4352 = vld [vmem:[#allocation8 + $0x78] sm:$0xff]
    %v4353 = vld [vmem:[%s6] sm:$0x1]
    %v4355 = vlaneseq
    %v4356 = vshrl.u32 %v4355, 7
    %v4357 = vsub.s32 0, %v4356
    %v4358 = vrot.slane %v4353, %v4357
    %4360 = vmatprep.subr.mxu0 0.0
    %v4361 = vand.u32 %v4337, 4294901760
    %4362 = vmatpush1.msra.mxu0 %v4361
    %4363 = vmatprep.subr.mxu0 0.0
    %v4364 = vand.u32 %v4338, 4294901760
    %4365 = vmatpush1.msra.mxu0 %v4364
    %4366 = vmatprep.subr.mxu0 0.0
    %v4367 = vand.u32 %v4339, 4294901760
    %4368 = vmatpush1.msra.mxu0 %v4367
    %4369 = vmatprep.subr.mxu0 0.0
    %v4370 = vand.u32 %v4340, 4294901760
    %4371 = vmatpush1.msra.mxu0 %v4370
    %4372 = vmatprep.subr.mxu0 0.0
    %v4373 = vand.u32 %v4341, 4294901760
    %4374 = vmatpush1.msra.mxu0 %v4373
    %4375 = vmatprep.subr.mxu0 0.0
    %v4376 = vand.u32 %v4342, 4294901760
    %4377 = vmatpush1.msra.mxu0 %v4376
    %4378 = vmatprep.subr.mxu0 0.0
    %v4379 = vand.u32 %v4343, 4294901760
    %4380 = vmatpush1.msra.mxu0 %v4379
    %4381 = vmatprep.subr.mxu0 0.0
    %v4382 = vand.u32 %v4344, 4294901760
    %4383 = vmatpush1.msra.mxu0 %v4382
    %4384 = vmatprep.subr.mxu0 0.0
    %v4385 = vand.u32 %v4345, 4294901760
    %4386 = vmatpush1.msra.mxu0 %v4385
    %4387 = vmatprep.subr.mxu0 0.0
    %v4388 = vand.u32 %v4346, 4294901760
    %4389 = vmatpush1.msra.mxu0 %v4388
    %4390 = vmatprep.subr.mxu0 0.0
    %v4391 = vand.u32 %v4347, 4294901760
    %4392 = vmatpush1.msra.mxu0 %v4391
    %4393 = vmatprep.subr.mxu0 0.0
    %v4394 = vand.u32 %v4348, 4294901760
    %4395 = vmatpush1.msra.mxu0 %v4394
    %4396 = vmatprep.subr.mxu0 0.0
    %v4397 = vand.u32 %v4349, 4294901760
    %4398 = vmatpush1.msra.mxu0 %v4397
    %4399 = vmatprep.subr.mxu0 0.0
    %v4400 = vand.u32 %v4350, 4294901760
    %4401 = vmatpush1.msra.mxu0 %v4400
    %4402 = vmatprep.subr.mxu0 0.0
    %v4403 = vand.u32 %v4351, 4294901760
    %4404 = vmatpush1.msra.mxu0 %v4403
    %4405 = vmatprep.subr.mxu0 0.0
    %v4406 = vand.u32 %v4352, 4294901760
    %4407 = vmatpush1.msra.mxu0 %v4406
    %4408 = vmatprep.subr.mxu0 0.0
    %4409 = vmatpush1.msra.mxu0 0.0
    %4410 = vmatprep.subr.mxu0 0.0
    %4411 = vmatpush1.msra.mxu0 0.0
    %4412 = vmatprep.subr.mxu0 0.0
    %4413 = vmatpush1.msra.mxu0 0.0
    %4414 = vmatprep.subr.mxu0 0.0
    %4415 = vmatpush1.msra.mxu0 0.0
    %4416 = vmatprep.subr.mxu0 0.0
    %4417 = vmatpush1.msra.mxu0 0.0
    %4418 = vmatprep.subr.mxu0 0.0
    %4419 = vmatpush1.msra.mxu0 0.0
    %4420 = vmatprep.subr.mxu0 0.0
    %4421 = vmatpush1.msra.mxu0 0.0
    %4422 = vmatprep.subr.mxu0 0.0
    %4423 = vmatpush1.msra.mxu0 0.0
    %4424 = vmatprep.subr.mxu0 0.0
    %4425 = vmatpush1.msra.mxu0 0.0
    %4426 = vmatprep.subr.mxu0 0.0
    %4427 = vmatpush1.msra.mxu0 0.0
    %4428 = vmatprep.subr.mxu0 0.0
    %4429 = vmatpush1.msra.mxu0 0.0
    %4430 = vmatprep.subr.mxu0 0.0
    %4431 = vmatpush1.msra.mxu0 0.0
    %4432 = vmatprep.subr.mxu0 0.0
    %4433 = vmatpush1.msra.mxu0 0.0
    %4434 = vmatprep.subr.mxu0 0.0
    %4435 = vmatpush1.msra.mxu0 0.0
    %4436 = vmatprep.subr.mxu0 0.0
    %4437 = vmatpush1.msra.mxu0 0.0
    %4438 = vmatprep.subr.mxu0 0.0
    %4439 = vmatpush1.msra.mxu0 0.0
    %4440 = vmatprep.mubr.f32.mxu0 0.0
    %v4441 = vand.u32 %v4336, 4294901760
    %v4442 = vsub.f32 %v4336, %v4441
    %v4443 = vand.u32 %v4442, 4294901760
    %v4444 = vsub.f32 %v4442, %v4443
    %v4445 = vand.u32 %v4444, 4294901760
    %4446 = vmatmul.mubr.f32.gmra.mrb[0].mxu0 %v4445
    %v4447 = vpop.f32.mrb[0].mxu0
    %v4448 = vadd.f32 %v4358, %v4447
    %v4449 = vpop.f32.mrb[0].mxu0
    %4450 = vdwg.mxu0
    %4451 = vmatprep.subr.mxu0 0.0
    %v4452 = vand.u32 %v4337, 4294901760
    %v4453 = vsub.f32 %v4337, %v4452
    %v4454 = vand.u32 %v4453, 4294901760
    %v4455 = vsub.f32 %v4453, %v4454
    %v4456 = vand.u32 %v4455, 4294901760
    %4457 = vmatpush1.msra.mxu0 %v4456
    %4458 = vmatprep.subr.mxu0 0.0
    %v4459 = vand.u32 %v4338, 4294901760
    %v4460 = vsub.f32 %v4338, %v4459
    %v4461 = vand.u32 %v4460, 4294901760
    %v4462 = vsub.f32 %v4460, %v4461
    %v4463 = vand.u32 %v4462, 4294901760
    %4464 = vmatpush1.msra.mxu0 %v4463
    %4465 = vmatprep.subr.mxu0 0.0
    %v4466 = vand.u32 %v4339, 4294901760
    %v4467 = vsub.f32 %v4339, %v4466
    %v4468 = vand.u32 %v4467, 4294901760
    %v4469 = vsub.f32 %v4467, %v4468
    %v4470 = vand.u32 %v4469, 4294901760
    %4471 = vmatpush1.msra.mxu0 %v4470
    %4472 = vmatprep.subr.mxu0 0.0
    %v4473 = vand.u32 %v4340, 4294901760
    %v4474 = vsub.f32 %v4340, %v4473
    %v4475 = vand.u32 %v4474, 4294901760
    %v4476 = vsub.f32 %v4474, %v4475
    %v4477 = vand.u32 %v4476, 4294901760
    %4478 = vmatpush1.msra.mxu0 %v4477
    %4479 = vmatprep.subr.mxu0 0.0
    %v4480 = vand.u32 %v4341, 4294901760
    %v4481 = vsub.f32 %v4341, %v4480
    %v4482 = vand.u32 %v4481, 4294901760
    %v4483 = vsub.f32 %v4481, %v4482
    %v4484 = vand.u32 %v4483, 4294901760
    %4485 = vmatpush1.msra.mxu0 %v4484
    %4486 = vmatprep.subr.mxu0 0.0
    %v4487 = vand.u32 %v4342, 4294901760
    %v4488 = vsub.f32 %v4342, %v4487
    %v4489 = vand.u32 %v4488, 4294901760
    %v4490 = vsub.f32 %v4488, %v4489
    %v4491 = vand.u32 %v4490, 4294901760
    %4492 = vmatpush1.msra.mxu0 %v4491
    %4493 = vmatprep.subr.mxu0 0.0
    %v4494 = vand.u32 %v4343, 4294901760
    %v4495 = vsub.f32 %v4343, %v4494
    %v4496 = vand.u32 %v4495, 4294901760
    %v4497 = vsub.f32 %v4495, %v4496
    %v4498 = vand.u32 %v4497, 4294901760
    %4499 = vmatpush1.msra.mxu0 %v4498
    %4500 = vmatprep.subr.mxu0 0.0
    %v4501 = vand.u32 %v4344, 4294901760
    %v4502 = vsub.f32 %v4344, %v4501
    %v4503 = vand.u32 %v4502, 4294901760
    %v4504 = vsub.f32 %v4502, %v4503
    %v4505 = vand.u32 %v4504, 4294901760
    %4506 = vmatpush1.msra.mxu0 %v4505
    %4507 = vmatprep.subr.mxu0 0.0
    %v4508 = vand.u32 %v4345, 4294901760
    %v4509 = vsub.f32 %v4345, %v4508
    %v4510 = vand.u32 %v4509, 4294901760
    %v4511 = vsub.f32 %v4509, %v4510
    %v4512 = vand.u32 %v4511, 4294901760
    %4513 = vmatpush1.msra.mxu0 %v4512
    %4514 = vmatprep.subr.mxu0 0.0
    %v4515 = vand.u32 %v4346, 4294901760
    %v4516 = vsub.f32 %v4346, %v4515
    %v4517 = vand.u32 %v4516, 4294901760
    %v4518 = vsub.f32 %v4516, %v4517
    %v4519 = vand.u32 %v4518, 4294901760
    %4520 = vmatpush1.msra.mxu0 %v4519
    %4521 = vmatprep.subr.mxu0 0.0
    %v4522 = vand.u32 %v4347, 4294901760
    %v4523 = vsub.f32 %v4347, %v4522
    %v4524 = vand.u32 %v4523, 4294901760
    %v4525 = vsub.f32 %v4523, %v4524
    %v4526 = vand.u32 %v4525, 4294901760
    %4527 = vmatpush1.msra.mxu0 %v4526
    %4528 = vmatprep.subr.mxu0 0.0
    %v4529 = vand.u32 %v4348, 4294901760
    %v4530 = vsub.f32 %v4348, %v4529
    %v4531 = vand.u32 %v4530, 4294901760
    %v4532 = vsub.f32 %v4530, %v4531
    %v4533 = vand.u32 %v4532, 4294901760
    %4534 = vmatpush1.msra.mxu0 %v4533
    %4535 = vmatprep.subr.mxu0 0.0
    %v4536 = vand.u32 %v4349, 4294901760
    %v4537 = vsub.f32 %v4349, %v4536
    %v4538 = vand.u32 %v4537, 4294901760
    %v4539 = vsub.f32 %v4537, %v4538
    %v4540 = vand.u32 %v4539, 4294901760
    %4541 = vmatpush1.msra.mxu0 %v4540
    %4542 = vmatprep.subr.mxu0 0.0
    %v4543 = vand.u32 %v4350, 4294901760
    %v4544 = vsub.f32 %v4350, %v4543
    %v4545 = vand.u32 %v4544, 4294901760
    %v4546 = vsub.f32 %v4544, %v4545
    %v4547 = vand.u32 %v4546, 4294901760
    %4548 = vmatpush1.msra.mxu0 %v4547
    %4549 = vmatprep.subr.mxu0 0.0
    %v4550 = vand.u32 %v4351, 4294901760
    %v4551 = vsub.f32 %v4351, %v4550
    %v4552 = vand.u32 %v4551, 4294901760
    %v4553 = vsub.f32 %v4551, %v4552
    %v4554 = vand.u32 %v4553, 4294901760
    %4555 = vmatpush1.msra.mxu0 %v4554
    %4556 = vmatprep.subr.mxu0 0.0
    %v4557 = vand.u32 %v4352, 4294901760
    %v4558 = vsub.f32 %v4352, %v4557
    %v4559 = vand.u32 %v4558, 4294901760
    %v4560 = vsub.f32 %v4558, %v4559
    %v4561 = vand.u32 %v4560, 4294901760
    %4562 = vmatpush1.msra.mxu0 %v4561
    %4563 = vmatprep.subr.mxu0 0.0
    %4564 = vmatpush1.msra.mxu0 0.0
    %4565 = vmatprep.subr.mxu0 0.0
    %4566 = vmatpush1.msra.mxu0 0.0
    %4567 = vmatprep.subr.mxu0 0.0
    %4568 = vmatpush1.msra.mxu0 0.0
    %4569 = vmatprep.subr.mxu0 0.0
    %4570 = vmatpush1.msra.mxu0 0.0
    %4571 = vmatprep.subr.mxu0 0.0
    %4572 = vmatpush1.msra.mxu0 0.0
    %4573 = vmatprep.subr.mxu0 0.0
    %4574 = vmatpush1.msra.mxu0 0.0
    %4575 = vmatprep.subr.mxu0 0.0
    %4576 = vmatpush1.msra.mxu0 0.0
    %4577 = vmatprep.subr.mxu0 0.0
    %4578 = vmatpush1.msra.mxu0 0.0
    %4579 = vmatprep.subr.mxu0 0.0
    %4580 = vmatpush1.msra.mxu0 0.0
    %4581 = vmatprep.subr.mxu0 0.0
    %4582 = vmatpush1.msra.mxu0 0.0
    %4583 = vmatprep.subr.mxu0 0.0
    %4584 = vmatpush1.msra.mxu0 0.0
    %4585 = vmatprep.subr.mxu0 0.0
    %4586 = vmatpush1.msra.mxu0 0.0
    %4587 = vmatprep.subr.mxu0 0.0
    %4588 = vmatpush1.msra.mxu0 0.0
    %4589 = vmatprep.subr.mxu0 0.0
    %4590 = vmatpush1.msra.mxu0 0.0
    %4591 = vmatprep.subr.mxu0 0.0
    %4592 = vmatpush1.msra.mxu0 0.0
    %4593 = vmatprep.subr.mxu0 0.0
    %4594 = vmatpush1.msra.mxu0 0.0
    %4595 = vmatprep.mubr.f32.mxu0 0.0
    %v4596 = vand.u32 %v4336, 4294901760
    %4597 = vmatmul.mubr.f32.gmra.mrb[0].mxu0 %v4596
    %v4598 = vpop.f32.mrb[0].mxu0
    %v4599 = vadd.f32 %v4448, %v4598
    %v4600 = vpop.f32.mrb[0].mxu0
    %4601 = vdwg.mxu0
    %4602 = vmatprep.subr.mxu0 0.0
    %v4603 = vand.u32 %v4337, 4294901760
    %v4604 = vsub.f32 %v4337, %v4603
    %4605 = vmatpush1.msra.mxu0 %v4604
    %4606 = vmatprep.subr.mxu0 0.0
    %v4607 = vand.u32 %v4338, 4294901760
    %v4608 = vsub.f32 %v4338, %v4607
    %4609 = vmatpush1.msra.mxu0 %v4608
    %4610 = vmatprep.subr.mxu0 0.0
    %v4611 = vand.u32 %v4339, 4294901760
    %v4612 = vsub.f32 %v4339, %v4611
    %4613 = vmatpush1.msra.mxu0 %v4612
    %4614 = vmatprep.subr.mxu0 0.0
    %v4615 = vand.u32 %v4340, 4294901760
    %v4616 = vsub.f32 %v4340, %v4615
    %4617 = vmatpush1.msra.mxu0 %v4616
    %4618 = vmatprep.subr.mxu0 0.0
    %v4619 = vand.u32 %v4341, 4294901760
    %v4620 = vsub.f32 %v4341, %v4619
    %4621 = vmatpush1.msra.mxu0 %v4620
    %4622 = vmatprep.subr.mxu0 0.0
    %v4623 = vand.u32 %v4342, 4294901760
    %v4624 = vsub.f32 %v4342, %v4623
    %4625 = vmatpush1.msra.mxu0 %v4624
    %4626 = vmatprep.subr.mxu0 0.0
    %v4627 = vand.u32 %v4343, 4294901760
    %v4628 = vsub.f32 %v4343, %v4627
    %4629 = vmatpush1.msra.mxu0 %v4628
    %4630 = vmatprep.subr.mxu0 0.0
    %v4631 = vand.u32 %v4344, 4294901760
    %v4632 = vsub.f32 %v4344, %v4631
    %4633 = vmatpush1.msra.mxu0 %v4632
    %4634 = vmatprep.subr.mxu0 0.0
    %v4635 = vand.u32 %v4345, 4294901760
    %v4636 = vsub.f32 %v4345, %v4635
    %4637 = vmatpush1.msra.mxu0 %v4636
    %4638 = vmatprep.subr.mxu0 0.0
    %v4639 = vand.u32 %v4346, 4294901760
    %v4640 = vsub.f32 %v4346, %v4639
    %4641 = vmatpush1.msra.mxu0 %v4640
    %4642 = vmatprep.subr.mxu0 0.0
    %v4643 = vand.u32 %v4347, 4294901760
    %v4644 = vsub.f32 %v4347, %v4643
    %4645 = vmatpush1.msra.mxu0 %v4644
    %4646 = vmatprep.subr.mxu0 0.0
    %v4647 = vand.u32 %v4348, 4294901760
    %v4648 = vsub.f32 %v4348, %v4647
    %4649 = vmatpush1.msra.mxu0 %v4648
    %4650 = vmatprep.subr.mxu0 0.0
    %v4651 = vand.u32 %v4349, 4294901760
    %v4652 = vsub.f32 %v4349, %v4651
    %4653 = vmatpush1.msra.mxu0 %v4652
    %4654 = vmatprep.subr.mxu0 0.0
    %v4655 = vand.u32 %v4350, 4294901760
    %v4656 = vsub.f32 %v4350, %v4655
    %4657 = vmatpush1.msra.mxu0 %v4656
    %4658 = vmatprep.subr.mxu0 0.0
    %v4659 = vand.u32 %v4351, 4294901760
    %v4660 = vsub.f32 %v4351, %v4659
    %4661 = vmatpush1.msra.mxu0 %v4660
    %4662 = vmatprep.subr.mxu0 0.0
    %v4663 = vand.u32 %v4352, 4294901760
    %v4664 = vsub.f32 %v4352, %v4663
    %4665 = vmatpush1.msra.mxu0 %v4664
    %4666 = vmatprep.subr.mxu0 0.0
    %4667 = vmatpush1.msra.mxu0 0.0
    %4668 = vmatprep.subr.mxu0 0.0
    %4669 = vmatpush1.msra.mxu0 0.0
    %4670 = vmatprep.subr.mxu0 0.0
    %4671 = vmatpush1.msra.mxu0 0.0
    %4672 = vmatprep.subr.mxu0 0.0
    %4673 = vmatpush1.msra.mxu0 0.0
    %4674 = vmatprep.subr.mxu0 0.0
    %4675 = vmatpush1.msra.mxu0 0.0
    %4676 = vmatprep.subr.mxu0 0.0
    %4677 = vmatpush1.msra.mxu0 0.0
    %4678 = vmatprep.subr.mxu0 0.0
    %4679 = vmatpush1.msra.mxu0 0.0
    %4680 = vmatprep.subr.mxu0 0.0
    %4681 = vmatpush1.msra.mxu0 0.0
    %4682 = vmatprep.subr.mxu0 0.0
    %4683 = vmatpush1.msra.mxu0 0.0
    %4684 = vmatprep.subr.mxu0 0.0
    %4685 = vmatpush1.msra.mxu0 0.0
    %4686 = vmatprep.subr.mxu0 0.0
    %4687 = vmatpush1.msra.mxu0 0.0
    %4688 = vmatprep.subr.mxu0 0.0
    %4689 = vmatpush1.msra.mxu0 0.0
    %4690 = vmatprep.subr.mxu0 0.0
    %4691 = vmatpush1.msra.mxu0 0.0
    %4692 = vmatprep.subr.mxu0 0.0
    %4693 = vmatpush1.msra.mxu0 0.0
    %4694 = vmatprep.subr.mxu0 0.0
    %4695 = vmatpush1.msra.mxu0 0.0
    %4696 = vmatprep.subr.mxu0 0.0
    %4697 = vmatpush1.msra.mxu0 0.0
    %4698 = vmatprep.mubr.f32.mxu0 0.0
    %v4699 = vand.u32 %v4336, 4294901760
    %v4700 = vsub.f32 %v4336, %v4699
    %4701 = vmatmul.mubr.f32.gmra.mrb[0].mxu0 %v4700
    %v4702 = vpop.f32.mrb[0].mxu0
    %v4703 = vadd.f32 %v4599, %v4702
    %v4704 = vpop.f32.mrb[0].mxu0
    %4705 = vdwg.mxu0
    %4706 = vmatprep.subr.mxu0 0.0
    %v4707 = vand.u32 %v4337, 4294901760
    %4708 = vmatpush1.msra.mxu0 %v4707
    %4709 = vmatprep.subr.mxu0 0.0
    %v4710 = vand.u32 %v4338, 4294901760
    %4711 = vmatpush1.msra.mxu0 %v4710
    %4712 = vmatprep.subr.mxu0 0.0
    %v4713 = vand.u32 %v4339, 4294901760
    %4714 = vmatpush1.msra.mxu0 %v4713
    %4715 = vmatprep.subr.mxu0 0.0
    %v4716 = vand.u32 %v4340, 4294901760
    %4717 = vmatpush1.msra.mxu0 %v4716
    %4718 = vmatprep.subr.mxu0 0.0
    %v4719 = vand.u32 %v4341, 4294901760
    %4720 = vmatpush1.msra.mxu0 %v4719
    %4721 = vmatprep.subr.mxu0 0.0
    %v4722 = vand.u32 %v4342, 4294901760
    %4723 = vmatpush1.msra.mxu0 %v4722
    %4724 = vmatprep.subr.mxu0 0.0
    %v4725 = vand.u32 %v4343, 4294901760
    %4726 = vmatpush1.msra.mxu0 %v4725
    %4727 = vmatprep.subr.mxu0 0.0
    %v4728 = vand.u32 %v4344, 4294901760
    %4729 = vmatpush1.msra.mxu0 %v4728
    %4730 = vmatprep.subr.mxu0 0.0
    %v4731 = vand.u32 %v4345, 4294901760
    %4732 = vmatpush1.msra.mxu0 %v4731
    %4733 = vmatprep.subr.mxu0 0.0
    %v4734 = vand.u32 %v4346, 4294901760
    %4735 = vmatpush1.msra.mxu0 %v4734
    %4736 = vmatprep.subr.mxu0 0.0
    %v4737 = vand.u32 %v4347, 4294901760
    %4738 = vmatpush1.msra.mxu0 %v4737
    %4739 = vmatprep.subr.mxu0 0.0
    %v4740 = vand.u32 %v4348, 4294901760
    %4741 = vmatpush1.msra.mxu0 %v4740
    %4742 = vmatprep.subr.mxu0 0.0
    %v4743 = vand.u32 %v4349, 4294901760
    %4744 = vmatpush1.msra.mxu0 %v4743
    %4745 = vmatprep.subr.mxu0 0.0
    %v4746 = vand.u32 %v4350, 4294901760
    %4747 = vmatpush1.msra.mxu0 %v4746
    %4748 = vmatprep.subr.mxu0 0.0
    %v4749 = vand.u32 %v4351, 4294901760
    %4750 = vmatpush1.msra.mxu0 %v4749
    %4751 = vmatprep.subr.mxu0 0.0
    %v4752 = vand.u32 %v4352, 4294901760
    %4753 = vmatpush1.msra.mxu0 %v4752
    %4754 = vmatprep.subr.mxu0 0.0
    %4755 = vmatpush1.msra.mxu0 0.0
    %4756 = vmatprep.subr.mxu0 0.0
    %4757 = vmatpush1.msra.mxu0 0.0
    %4758 = vmatprep.subr.mxu0 0.0
    %4759 = vmatpush1.msra.mxu0 0.0
    %4760 = vmatprep.subr.mxu0 0.0
    %4761 = vmatpush1.msra.mxu0 0.0
    %4762 = vmatprep.subr.mxu0 0.0
    %4763 = vmatpush1.msra.mxu0 0.0
    %4764 = vmatprep.subr.mxu0 0.0
    %4765 = vmatpush1.msra.mxu0 0.0
    %4766 = vmatprep.subr.mxu0 0.0
    %4767 = vmatpush1.msra.mxu0 0.0
    %4768 = vmatprep.subr.mxu0 0.0
    %4769 = vmatpush1.msra.mxu0 0.0
    %4770 = vmatprep.subr.mxu0 0.0
    %4771 = vmatpush1.msra.mxu0 0.0
    %4772 = vmatprep.subr.mxu0 0.0
    %4773 = vmatpush1.msra.mxu0 0.0
    %4774 = vmatprep.subr.mxu0 0.0
    %4775 = vmatpush1.msra.mxu0 0.0
    %4776 = vmatprep.subr.mxu0 0.0
    %4777 = vmatpush1.msra.mxu0 0.0
    %4778 = vmatprep.subr.mxu0 0.0
    %4779 = vmatpush1.msra.mxu0 0.0
    %4780 = vmatprep.subr.mxu0 0.0
    %4781 = vmatpush1.msra.mxu0 0.0
    %4782 = vmatprep.subr.mxu0 0.0
    %4783 = vmatpush1.msra.mxu0 0.0
    %4784 = vmatprep.subr.mxu0 0.0
    %4785 = vmatpush1.msra.mxu0 0.0
    %4786 = vmatprep.mubr.f32.mxu0 0.0
    %v4787 = vand.u32 %v4336, 4294901760
    %v4788 = vsub.f32 %v4336, %v4787
    %v4789 = vand.u32 %v4788, 4294901760
    %4790 = vmatmul.mubr.f32.gmra.mrb[0].mxu0 %v4789
    %v4791 = vpop.f32.mrb[0].mxu0
    %v4792 = vadd.f32 %v4703, %v4791
    %v4793 = vpop.f32.mrb[0].mxu0
    %4794 = vdwg.mxu0
    %4795 = vmatprep.subr.mxu0 0.0
    %v4796 = vand.u32 %v4337, 4294901760
    %v4797 = vsub.f32 %v4337, %v4796
    %v4798 = vand.u32 %v4797, 4294901760
    %4799 = vmatpush1.msra.mxu0 %v4798
    %4800 = vmatprep.subr.mxu0 0.0
    %v4801 = vand.u32 %v4338, 4294901760
    %v4802 = vsub.f32 %v4338, %v4801
    %v4803 = vand.u32 %v4802, 4294901760
    %4804 = vmatpush1.msra.mxu0 %v4803
    %4805 = vmatprep.subr.mxu0 0.0
    %v4806 = vand.u32 %v4339, 4294901760
    %v4807 = vsub.f32 %v4339, %v4806
    %v4808 = vand.u32 %v4807, 4294901760
    %4809 = vmatpush1.msra.mxu0 %v4808
    %4810 = vmatprep.subr.mxu0 0.0
    %v4811 = vand.u32 %v4340, 4294901760
    %v4812 = vsub.f32 %v4340, %v4811
    %v4813 = vand.u32 %v4812, 4294901760
    %4814 = vmatpush1.msra.mxu0 %v4813
    %4815 = vmatprep.subr.mxu0 0.0
    %v4816 = vand.u32 %v4341, 4294901760
    %v4817 = vsub.f32 %v4341, %v4816
    %v4818 = vand.u32 %v4817, 4294901760
    %4819 = vmatpush1.msra.mxu0 %v4818
    %4820 = vmatprep.subr.mxu0 0.0
    %v4821 = vand.u32 %v4342, 4294901760
    %v4822 = vsub.f32 %v4342, %v4821
    %v4823 = vand.u32 %v4822, 4294901760
    %4824 = vmatpush1.msra.mxu0 %v4823
    %4825 = vmatprep.subr.mxu0 0.0
    %v4826 = vand.u32 %v4343, 4294901760
    %v4827 = vsub.f32 %v4343, %v4826
    %v4828 = vand.u32 %v4827, 4294901760
    %4829 = vmatpush1.msra.mxu0 %v4828
    %4830 = vmatprep.subr.mxu0 0.0
    %v4831 = vand.u32 %v4344, 4294901760
    %v4832 = vsub.f32 %v4344, %v4831
    %v4833 = vand.u32 %v4832, 4294901760
    %4834 = vmatpush1.msra.mxu0 %v4833
    %4835 = vmatprep.subr.mxu0 0.0
    %v4836 = vand.u32 %v4345, 4294901760
    %v4837 = vsub.f32 %v4345, %v4836
    %v4838 = vand.u32 %v4837, 4294901760
    %4839 = vmatpush1.msra.mxu0 %v4838
    %4840 = vmatprep.subr.mxu0 0.0
    %v4841 = vand.u32 %v4346, 4294901760
    %v4842 = vsub.f32 %v4346, %v4841
    %v4843 = vand.u32 %v4842, 4294901760
    %4844 = vmatpush1.msra.mxu0 %v4843
    %4845 = vmatprep.subr.mxu0 0.0
    %v4846 = vand.u32 %v4347, 4294901760
    %v4847 = vsub.f32 %v4347, %v4846
    %v4848 = vand.u32 %v4847, 4294901760
    %4849 = vmatpush1.msra.mxu0 %v4848
    %4850 = vmatprep.subr.mxu0 0.0
    %v4851 = vand.u32 %v4348, 4294901760
    %v4852 = vsub.f32 %v4348, %v4851
    %v4853 = vand.u32 %v4852, 4294901760
    %4854 = vmatpush1.msra.mxu0 %v4853
    %4855 = vmatprep.subr.mxu0 0.0
    %v4856 = vand.u32 %v4349, 4294901760
    %v4857 = vsub.f32 %v4349, %v4856
    %v4858 = vand.u32 %v4857, 4294901760
    %4859 = vmatpush1.msra.mxu0 %v4858
    %4860 = vmatprep.subr.mxu0 0.0
    %v4861 = vand.u32 %v4350, 4294901760
    %v4862 = vsub.f32 %v4350, %v4861
    %v4863 = vand.u32 %v4862, 4294901760
    %4864 = vmatpush1.msra.mxu0 %v4863
    %4865 = vmatprep.subr.mxu0 0.0
    %v4866 = vand.u32 %v4351, 4294901760
    %v4867 = vsub.f32 %v4351, %v4866
    %v4868 = vand.u32 %v4867, 4294901760
    %4869 = vmatpush1.msra.mxu0 %v4868
    %4870 = vmatprep.subr.mxu0 0.0
    %v4871 = vand.u32 %v4352, 4294901760
    %v4872 = vsub.f32 %v4352, %v4871
    %v4873 = vand.u32 %v4872, 4294901760
    %4874 = vmatpush1.msra.mxu0 %v4873
    %4875 = vmatprep.subr.mxu0 0.0
    %4876 = vmatpush1.msra.mxu0 0.0
    %4877 = vmatprep.subr.mxu0 0.0
    %4878 = vmatpush1.msra.mxu0 0.0
    %4879 = vmatprep.subr.mxu0 0.0
    %4880 = vmatpush1.msra.mxu0 0.0
    %4881 = vmatprep.subr.mxu0 0.0
    %4882 = vmatpush1.msra.mxu0 0.0
    %4883 = vmatprep.subr.mxu0 0.0
    %4884 = vmatpush1.msra.mxu0 0.0
    %4885 = vmatprep.subr.mxu0 0.0
    %4886 = vmatpush1.msra.mxu0 0.0
    %4887 = vmatprep.subr.mxu0 0.0
    %4888 = vmatpush1.msra.mxu0 0.0
    %4889 = vmatprep.subr.mxu0 0.0
    %4890 = vmatpush1.msra.mxu0 0.0
    %4891 = vmatprep.subr.mxu0 0.0
    %4892 = vmatpush1.msra.mxu0 0.0
    %4893 = vmatprep.subr.mxu0 0.0
    %4894 = vmatpush1.msra.mxu0 0.0
    %4895 = vmatprep.subr.mxu0 0.0
    %4896 = vmatpush1.msra.mxu0 0.0
    %4897 = vmatprep.subr.mxu0 0.0
    %4898 = vmatpush1.msra.mxu0 0.0
    %4899 = vmatprep.subr.mxu0 0.0
    %4900 = vmatpush1.msra.mxu0 0.0
    %4901 = vmatprep.subr.mxu0 0.0
    %4902 = vmatpush1.msra.mxu0 0.0
    %4903 = vmatprep.subr.mxu0 0.0
    %4904 = vmatpush1.msra.mxu0 0.0
    %4905 = vmatprep.subr.mxu0 0.0
    %4906 = vmatpush1.msra.mxu0 0.0
    %4907 = vmatprep.mubr.f32.mxu0 0.0
    %v4908 = vand.u32 %v4336, 4294901760
    %4909 = vmatmul.mubr.f32.gmra.mrb[0].mxu0 %v4908
    %v4910 = vpop.f32.mrb[0].mxu0
    %v4911 = vadd.f32 %v4792, %v4910
    %v4912 = vpop.f32.mrb[0].mxu0
    %4913 = vdwg.mxu0
    %4914 = vmatprep.subr.mxu0 0.0
    %v4915 = vand.u32 %v4337, 4294901760
    %4916 = vmatpush1.msra.mxu0 %v4915
    %4917 = vmatprep.subr.mxu0 0.0
    %v4918 = vand.u32 %v4338, 4294901760
    %4919 = vmatpush1.msra.mxu0 %v4918
    %4920 = vmatprep.subr.mxu0 0.0
    %v4921 = vand.u32 %v4339, 4294901760
    %4922 = vmatpush1.msra.mxu0 %v4921
    %4923 = vmatprep.subr.mxu0 0.0
    %v4924 = vand.u32 %v4340, 4294901760
    %4925 = vmatpush1.msra.mxu0 %v4924
    %4926 = vmatprep.subr.mxu0 0.0
    %v4927 = vand.u32 %v4341, 4294901760
    %4928 = vmatpush1.msra.mxu0 %v4927
    %4929 = vmatprep.subr.mxu0 0.0
    %v4930 = vand.u32 %v4342, 4294901760
    %4931 = vmatpush1.msra.mxu0 %v4930
    %4932 = vmatprep.subr.mxu0 0.0
    %v4933 = vand.u32 %v4343, 4294901760
    %4934 = vmatpush1.msra.mxu0 %v4933
    %4935 = vmatprep.subr.mxu0 0.0
    %v4936 = vand.u32 %v4344, 4294901760
    %4937 = vmatpush1.msra.mxu0 %v4936
    %4938 = vmatprep.subr.mxu0 0.0
    %v4939 = vand.u32 %v4345, 4294901760
    %4940 = vmatpush1.msra.mxu0 %v4939
    %4941 = vmatprep.subr.mxu0 0.0
    %v4942 = vand.u32 %v4346, 4294901760
    %4943 = vmatpush1.msra.mxu0 %v4942
    %4944 = vmatprep.subr.mxu0 0.0
    %v4945 = vand.u32 %v4347, 4294901760
    %4946 = vmatpush1.msra.mxu0 %v4945
    %4947 = vmatprep.subr.mxu0 0.0
    %v4948 = vand.u32 %v4348, 4294901760
    %4949 = vmatpush1.msra.mxu0 %v4948
    %4950 = vmatprep.subr.mxu0 0.0
    %v4951 = vand.u32 %v4349, 4294901760
    %4952 = vmatpush1.msra.mxu0 %v4951
    %4953 = vmatprep.subr.mxu0 0.0
    %v4954 = vand.u32 %v4350, 4294901760
    %4955 = vmatpush1.msra.mxu0 %v4954
    %4956 = vmatprep.subr.mxu0 0.0
    %v4957 = vand.u32 %v4351, 4294901760
    %4958 = vmatpush1.msra.mxu0 %v4957
    %4959 = vmatprep.subr.mxu0 0.0
    %v4960 = vand.u32 %v4352, 4294901760
    %4961 = vmatpush1.msra.mxu0 %v4960
    %4962 = vmatprep.subr.mxu0 0.0
    %4963 = vmatpush1.msra.mxu0 0.0
    %4964 = vmatprep.subr.mxu0 0.0
    %4965 = vmatpush1.msra.mxu0 0.0
    %4966 = vmatprep.subr.mxu0 0.0
    %4967 = vmatpush1.msra.mxu0 0.0
    %4968 = vmatprep.subr.mxu0 0.0
    %4969 = vmatpush1.msra.mxu0 0.0
    %4970 = vmatprep.subr.mxu0 0.0
    %4971 = vmatpush1.msra.mxu0 0.0
    %4972 = vmatprep.subr.mxu0 0.0
    %4973 = vmatpush1.msra.mxu0 0.0
    %4974 = vmatprep.subr.mxu0 0.0
    %4975 = vmatpush1.msra.mxu0 0.0
    %4976 = vmatprep.subr.mxu0 0.0
    %4977 = vmatpush1.msra.mxu0 0.0
    %4978 = vmatprep.subr.mxu0 0.0
    %4979 = vmatpush1.msra.mxu0 0.0
    %4980 = vmatprep.subr.mxu0 0.0
    %4981 = vmatpush1.msra.mxu0 0.0
    %4982 = vmatprep.subr.mxu0 0.0
    %4983 = vmatpush1.msra.mxu0 0.0
    %4984 = vmatprep.subr.mxu0 0.0
    %4985 = vmatpush1.msra.mxu0 0.0
    %4986 = vmatprep.subr.mxu0 0.0
    %4987 = vmatpush1.msra.mxu0 0.0
    %4988 = vmatprep.subr.mxu0 0.0
    %4989 = vmatpush1.msra.mxu0 0.0
    %4990 = vmatprep.subr.mxu0 0.0
    %4991 = vmatpush1.msra.mxu0 0.0
    %4992 = vmatprep.subr.mxu0 0.0
    %4993 = vmatpush1.msra.mxu0 0.0
    %4994 = vmatprep.mubr.f32.mxu0 0.0
    %v4995 = vand.u32 %v4336, 4294901760
    %4996 = vmatmul.mubr.f32.gmra.mrb[0].mxu0 %v4995
    %v4997 = vpop.f32.mrb[0].mxu0
    %v4998 = vadd.f32 %v4911, %v4997
    %v4999 = vpop.f32.mrb[0].mxu0
    %5000 = vdwg.mxu0
    %5001 = vst [vmem:[#allocation10] sm:$0xff] %v4998
    // Predicated region
    $region46: #{tpu_custom_call.1} parent=1 // pred_check
      _
    $region47: #{tpu_custom_call.1} parent=1 // pred_check_branch
      %5003 = sbr.rel (0) target = $region49
    $region48: #{tpu_custom_call.1} parent=1 // pred_region
      %s5005 = ssub.s32 128, 128
      %5006 = vsyncadd [#allocation4], %s5005
      %s5008 = sshll.u32 [#allocation10], 4
      %s5009 = int_to_ptr.vmem [resolvable:$true] %s5008
      %5011 = dma.vmem_to_hbm [thread:$0]  %s5009, 128, %s7, [#allocation4]
    $region49: #{tpu_custom_call.1} parent=1 // pred_fallthru
      _
    // Predicated region
    $region50: #{tpu_custom_call.1} parent=1 // pred_check
      _
    $region51: #{tpu_custom_call.1} parent=1 // pred_check_branch
      %5013 = sbr.rel (0) target = $region53
    $region52: #{tpu_custom_call.1} parent=1 // pred_region
      %5014 = dma.done [#allocation4], 128
    $region53: #{tpu_custom_call.1} parent=1 // pred_fallthru
      _
    %5015 = vsyncpa [#allocation3], 1
    %5016 = vsyncpa [#allocation6], 1
    %5017 = vsyncpa [#allocation9], 1
    %5018 = vsyncpa [#allocation4], 1

</llo_original>
